<compile_context>
chip_gen: v5e
topology: v5e:2x2
jax: 0.10.0
libtpu: 0.0.40
codegen_flags: <defaults>
</compile_context>

<pallas_src>
import jax
import jax.numpy as jnp
import numpy as np
from jax.experimental import pallas as pl
from jax.experimental.pallas import tpu as pltpu

# MXU operand dtype for the conv matmuls (accumulation is always f32).
_MXU_DTYPE = jnp.bfloat16  # set to jnp.float32 for bit-strict f32 conv operands


# ---------------------------------------------------------------------------
# Host-side parameter / auxiliary preparation (tiny, one-time).
# ---------------------------------------------------------------------------
def _linear_interp_matrix(out_size, in_size):
    """(out_size, in_size) matrix for 1-D linear interpolation, align_corners=True."""
    if in_size == 1:
        return np.ones((out_size, 1), np.float32)
    coords = np.arange(out_size, dtype=np.float64) * (in_size - 1) / (out_size - 1)
    i0 = np.floor(coords).astype(np.int64)
    i1 = np.minimum(i0 + 1, in_size - 1)
    frac = (coords - i0).astype(np.float32)
    u = np.zeros((out_size, in_size), np.float32)
    u[np.arange(out_size), i0] += 1.0 - frac
    u[np.arange(out_size), i1] += frac
    return u


def _upsample_flat_matrix(D, H, W):
    """(S1, S2) matrix M so that x1u_flat = x1_flat @ M, with spatial dims
    flattened row-major as d*H*W + h*W + w (so reshapes stay bitcasts)."""
    u_d = _linear_interp_matrix(2 * D, D)
    u_h = _linear_interp_matrix(2 * H, H)
    m = np.kron(u_d, np.kron(u_h, np.eye(W, dtype=np.float32)))  # (S2, S1)
    return jnp.asarray(m.T)                                      # (S1, S2)


def _tap_valid_masks(D2, H2, W):
    """(9, S2) f32: mask[kd*3+kh, s]==1 iff conv tap (kd,kh) reads an in-bounds
    ('same'-padded) element at flattened spatial position s."""
    s = np.arange(D2 * H2 * W)
    d = s // (H2 * W)
    h = (s // W) % H2
    masks = []
    for kd in range(3):
        for kh in range(3):
            dd, hh = d + kd - 1, h + kh - 1
            masks.append((dd >= 0) & (dd < D2) & (hh >= 0) & (hh < H2))
    return jnp.asarray(np.stack(masks).astype(np.float32))


def fold_bn(w, b, gamma, beta, mean, var, eps=1e-5):
    """Fold eval-mode BatchNorm3d into a Conv3d with kernel (3,3,1).
    w: (Cout, Cin, 3, 3, 1) PyTorch layout -> (Cout, Cin, 3, 3) f32, (Cout,) f32."""
    scale = gamma / jnp.sqrt(var + eps)
    w_f = w[..., 0] * scale[:, None, None, None]
    b_f = (b - mean) * scale + beta
    return w_f, b_f


def conv_to_matmul(w_f, b_f):
    """(Cout, Cin, 3, 3) folded conv -> (Cout, 9*Cin) matmul weights; column
    order is kd-major, kh, cin-minor (must match the kernel's im2col order)."""
    cout = w_f.shape[0]
    wmat = jnp.transpose(w_f, (0, 2, 3, 1)).reshape(cout, -1)
    return wmat.astype(_MXU_DTYPE), b_f.reshape(cout, 1).astype(jnp.float32)


def prepare_up_params(w_f1, b_f1, w_f2, b_f2, D, H, W):
    w1, b1 = conv_to_matmul(w_f1, b_f1)
    w2, b2 = conv_to_matmul(w_f2, b_f2)
    return {
        "w1": w1, "b1": b1, "w2": w2, "b2": b2,
        "ust": _upsample_flat_matrix(D, H, W),          # (S1, S2) f32
        "mask": _tap_valid_masks(2 * D, 2 * H, W),      # (9, S2) f32
    }


# ---------------------------------------------------------------------------
# Fused Pallas kernel: upsample + concat + (conv3x3x1 + BN + ReLU) x 2.
# ---------------------------------------------------------------------------
def up_forward(x1, x2, params):
    """x1: (N, C1, D, H, W); x2: (N, C2, 2D, 2H, W) -> (N, Cout, 2D, 2H, W)."""
    N, C1, D, H, W = x1.shape
    N2, C2, D2, H2, W2 = x2.shape
    assert N2 == N and D2 == 2 * D and H2 == 2 * H and W2 == W
    cin = C1 + C2
    cout = params["w1"].shape[0]
    S1 = D * H * W
    S2 = D2 * H2 * W
    HW2 = H2 * W
    # Lane-aligned halo so every (kd, kh) tap is a static in-bounds lane slice.
    pad = ((HW2 + W + 127) // 128) * 128
    spad = S2 + 2 * pad
    cwork = max(cin, cout)
    taps = [(kd, kh) for kd in range(3) for kh in range(3)]

    def kernel(x1_ref, x2_ref, ust_ref, mask_ref, w1_ref, b1_ref, w2_ref, b2_ref,
               o_ref, xpad_ref):
        # Zero the halo once per step; the interior is fully overwritten below.
        xpad_ref[:, :pad] = jnp.zeros((cwork, pad), jnp.float32)
        xpad_ref[:, pad + S2:] = jnp.zeros((cwork, pad), jnp.float32)

        # Trilinear upsample of x1 as one MXU matmul (f32), then channel concat
        # [x2, up(x1)] (torch.cat order) straight into the haloed VMEM scratch.
        x1u = jnp.dot(x1_ref[0], ust_ref[...], preferred_element_type=jnp.float32)
        xpad_ref[0:cin, pad:pad + S2] = jnp.concatenate([x2_ref[0], x1u], axis=0)

        def conv_bn_relu(n_in, w_ref, b_ref):
            # im2col: 9 lane-shifted + border-masked views stacked to K = 9*n_in,
            # then a single lane-dense MXU matmul with f32 accumulation.
            pieces = []
            for t, (kd, kh) in enumerate(taps):
                off = pad + (kd - 1) * HW2 + (kh - 1) * W
                x_t = xpad_ref[0:n_in, off:off + S2]
                if not (kd == 1 and kh == 1):
                    x_t = x_t * mask_ref[t:t + 1, :]
                pieces.append(x_t)
            p = jnp.concatenate(pieces, axis=0).astype(_MXU_DTYPE)     # (9*n_in, S2)
            y = jnp.dot(w_ref[...].astype(_MXU_DTYPE), p,
                        preferred_element_type=jnp.float32)            # (Cout, S2)
            return jnp.maximum(y + b_ref[...], 0.0)                    # f32 epilogue

        y1 = conv_bn_relu(cin, w1_ref, b1_ref)
        xpad_ref[0:cout, pad:pad + S2] = y1      # layer-2 input stays in VMEM
        y2 = conv_bn_relu(cout, w2_ref, b2_ref)
        o_ref[0] = y2.astype(o_ref.dtype)

    out_flat = pl.pallas_call(
        kernel,
        out_shape=jax.ShapeDtypeStruct((N, cout, S2), x2.dtype),
        grid_spec=pltpu.PrefetchScalarGridSpec(
            num_scalar_prefetch=0,
            grid=(N,),
            in_specs=[
                pl.BlockSpec((1, C1, S1), lambda n: (n, 0, 0)),
                pl.BlockSpec((1, C2, S2), lambda n: (n, 0, 0)),
                pl.BlockSpec((S1, S2), lambda n: (0, 0)),
                pl.BlockSpec((9, S2), lambda n: (0, 0)),
                pl.BlockSpec(params["w1"].shape, lambda n: (0, 0)),
                pl.BlockSpec((cout, 1), lambda n: (0, 0)),
                pl.BlockSpec(params["w2"].shape, lambda n: (0, 0)),
                pl.BlockSpec((cout, 1), lambda n: (0, 0)),
            ],
            out_specs=pl.BlockSpec((1, cout, S2), lambda n: (n, 0, 0)),
            scratch_shapes=[pltpu.VMEM((cwork, spad), jnp.float32)],
        ),
        compiler_params=pltpu.CompilerParams(
            dimension_semantics=("parallel",)),
    )(x1.reshape(N, C1, S1), x2.reshape(N, C2, S2),
      params["ust"], params["mask"],
      params["w1"], params["b1"], params["w2"], params["b2"])
    # Free (bitcast) reshape back to NCDHW.
    return out_flat.reshape(N, cout, D2, H2, W)


# ---------------------------------------------------------------------------
# Plain-XLA reference (same folded weights, same MXU operand dtype).
# ---------------------------------------------------------------------------
def upsample_trilinear_2x2x1_ref(x):
    N, C, D, H, W = x.shape

    def lin(out_size, in_size):
        coords = (jnp.arange(out_size, dtype=jnp.float32)
                  * (in_size - 1) / (out_size - 1))
        i0 = jnp.floor(coords).astype(jnp.int32)
        i1 = jnp.minimum(i0 + 1, in_size - 1)
        return i0, i1, coords - i0.astype(jnp.float32)

    d0, d1, wd = lin(2 * D, D)
    h0, h1, wh = lin(2 * H, H)
    xd = (x[:, :, d0] * (1.0 - wd)[None, None, :, None, None]
          + x[:, :, d1] * wd[None, None, :, None, None])
    return (xd[:, :, :, h0] * (1.0 - wh)[None, None, None, :, None]
            + xd[:, :, :, h1] * wh[None, None, None, :, None])


def up_forward_ref(x1, x2, w_f1, b_f1, w_f2, b_f2):
    x = jnp.concatenate([x2, upsample_trilinear_2x2x1_ref(x1)], axis=1)

    def conv_bn_relu(x, w_f, b_f):
        y = jax.lax.conv_general_dilated(
            x.astype(_MXU_DTYPE), w_f[..., None].astype(_MXU_DTYPE),
            window_strides=(1, 1, 1), padding=[(1, 1), (1, 1), (0, 0)],
            dimension_numbers=("NCDHW", "OIDHW", "NCDHW"),
            preferred_element_type=jnp.float32)
        return jnp.maximum(y + b_f[None, :, None, None, None], 0.0)

    return conv_bn_relu(conv_bn_relu(x, w_f1, b_f1), w_f2, b_f2)


if __name__ == "__main__":
    key = jax.random.PRNGKey(0)
    # Small shapes: in_channels = C1 + C2 = 8, out_channels = 8.
    N, c1, c2, D, H, W = 2, 4, 4, 8, 8, 4
    in_ch, out_ch = c1 + c2, 8
    ks = jax.random.split(key, 4)
    x1 = jax.random.normal(ks[0], (N, c1, D, H, W), jnp.float32)
    x2 = jax.random.normal(ks[1], (N, c2, 2 * D, 2 * H, W), jnp.float32)

    # Deterministic Conv/BN parameters (BN folded in eval mode).
    def make_layer(k, cin, cout):
        kk = jax.random.split(k, 6)
        w = 0.1 * jax.random.normal(kk[0], (cout, cin, 3, 3, 1), jnp.float32)
        b = 0.05 * jax.random.normal(kk[1], (cout,), jnp.float32)
        gamma = 1.0 + 0.1 * jax.random.normal(kk[2], (cout,), jnp.float32)
        beta = 0.05 * jax.random.normal(kk[3], (cout,), jnp.float32)
        mean = 0.1 * jax.random.normal(kk[4], (cout,), jnp.float32)
        var = jnp.abs(1.0 + 0.1 * jax.random.normal(kk[5], (cout,), jnp.float32))
        return fold_bn(w, b, gamma, beta, mean, var)

    w_f1, b_f1 = make_layer(ks[2], in_ch, out_ch)
    w_f2, b_f2 = make_layer(ks[3], out_ch, out_ch)
    params = prepare_up_params(w_f1, b_f1, w_f2, b_f2, D, H, W)

    out = jax.block_until_ready(jax.jit(up_forward)(x1, x2, params))
    assert out.shape == (N, out_ch, 2 * D, 2 * H, W), out.shape

    ref = jax.block_until_ready(up_forward_ref(x1, x2, w_f1, b_f1, w_f2, b_f2))
    err = float(jnp.max(jnp.abs(out - ref)))
    assert jnp.allclose(out, ref, atol=2e-2, rtol=2e-2), err

    print("KERNEL_OK")
</pallas_src>

<mosaic_0001>
module attributes {stable_mosaic.version = 11 : i64} {
  func.func @kernel(%arg0: i32, %arg1: memref<1x4x256xf32, #tpu.memory_space<vmem>>, %arg2: memref<1x4x1024xf32, #tpu.memory_space<vmem>>, %arg3: memref<256x1024xf32, #tpu.memory_space<vmem>>, %arg4: memref<9x1024xf32, #tpu.memory_space<vmem>>, %arg5: memref<8x72xbf16, #tpu.memory_space<vmem>>, %arg6: memref<8x1xf32, #tpu.memory_space<vmem>>, %arg7: memref<8x72xbf16, #tpu.memory_space<vmem>>, %arg8: memref<8x1xf32, #tpu.memory_space<vmem>>, %arg9: memref<1x8x1024xf32, #tpu.memory_space<vmem>>, %arg10: memref<8x1280xf32, #tpu.memory_space<vmem>>) attributes {dimension_semantics = [#tpu.dimension_semantics<parallel>], iteration_bounds = array<i64: 2>, scalar_prefetch = 0 : i64, scratch_operands = 1 : i64, tpu.core_type = #tpu.core_type<tc>, window_params = [{transform_indices = @transform_0, window_bounds = array<i64: 1, 4, 256>}, {transform_indices = @transform_1, window_bounds = array<i64: 1, 4, 1024>}, {pipeline_mode = #tpu.pipeline_mode<synchronous>, transform_indices = @transform_2, window_bounds = array<i64: 256, 1024>}, {pipeline_mode = #tpu.pipeline_mode<synchronous>, transform_indices = @transform_3, window_bounds = array<i64: 9, 1024>}, {pipeline_mode = #tpu.pipeline_mode<synchronous>, transform_indices = @transform_4, window_bounds = array<i64: 8, 72>}, {pipeline_mode = #tpu.pipeline_mode<synchronous>, transform_indices = @transform_5, window_bounds = array<i64: 8, 1>}, {pipeline_mode = #tpu.pipeline_mode<synchronous>, transform_indices = @transform_6, window_bounds = array<i64: 8, 72>}, {pipeline_mode = #tpu.pipeline_mode<synchronous>, transform_indices = @transform_7, window_bounds = array<i64: 8, 1>}, {transform_indices = @transform_8, window_bounds = array<i64: 1, 8, 1024>}]} {
    %cst = arith.constant 0.000000e+00 : f32
    %0 = vector.broadcast %cst : f32 to vector<8x128xf32>
    %c0 = arith.constant 0 : index
    %c0_0 = arith.constant 0 : index
    %1 = vector.load %arg10[%c0, %c0_0] : memref<8x1280xf32, #tpu.memory_space<vmem>>, vector<8x128xf32>
    tpu.vector_store %arg10[%c0, %c0_0], %0 {strides = array<i32>} : memref<8x1280xf32, #tpu.memory_space<vmem>>, vector<8x128xf32>,
    %cst_1 = arith.constant 0.000000e+00 : f32
    %2 = vector.broadcast %cst_1 : f32 to vector<8x128xf32>
    %c0_2 = arith.constant 0 : index
    %c1152 = arith.constant 1152 : index
    %3 = vector.load %arg10[%c0_2, %c1152] : memref<8x1280xf32, #tpu.memory_space<vmem>>, vector<8x128xf32>
    tpu.vector_store %arg10[%c0_2, %c1152], %2 {strides = array<i32>} : memref<8x1280xf32, #tpu.memory_space<vmem>>, vector<8x128xf32>,
    %c0_3 = arith.constant 0 : index
    %c0_4 = arith.constant 0 : index
    %c0_5 = arith.constant 0 : index
    %4 = vector.load %arg1[%c0_3, %c0_4, %c0_5] : memref<1x4x256xf32, #tpu.memory_space<vmem>>, vector<1x4x256xf32>
    %5 = vector.shape_cast %4 : vector<1x4x256xf32> to vector<4x256xf32>
    %c0_6 = arith.constant 0 : index
    %c0_7 = arith.constant 0 : index
    %6 = vector.load %arg3[%c0_6, %c0_7] : memref<256x1024xf32, #tpu.memory_space<vmem>>, vector<256x1024xf32>
    %cst_8 = arith.constant dense<0.000000e+00> : vector<4x1024xf32>
    %7 = tpu.matmul %5, %6, %cst_8 {dimension_numbers = #tpu.dot_dimension_numbers<[1], [0], [0], [1], [0, 0, 1, 1], [], []>} : vector<4x256xf32>, vector<256x1024xf32>, vector<4x1024xf32> -> vector<4x1024xf32>
    %c0_9 = arith.constant 0 : index
    %c0_10 = arith.constant 0 : index
    %c0_11 = arith.constant 0 : index
    %8 = vector.load %arg2[%c0_9, %c0_10, %c0_11] : memref<1x4x1024xf32, #tpu.memory_space<vmem>>, vector<1x4x1024xf32>
    %9 = vector.shape_cast %8 : vector<1x4x1024xf32> to vector<4x1024xf32>
    %10 = tpu.concatenate %9, %7 in 0 : vector<4x1024xf32>, vector<4x1024xf32> -> vector<8x1024xf32>
    %c0_12 = arith.constant 0 : index
    %c128 = arith.constant 128 : index
    %11 = vector.load %arg10[%c0_12, %c128] : memref<8x1280xf32, #tpu.memory_space<vmem>>, vector<8x1024xf32>
    tpu.vector_store %arg10[%c0_12, %c128], %10 {strides = array<i32>} : memref<8x1280xf32, #tpu.memory_space<vmem>>, vector<8x1024xf32>,
    %c0_13 = arith.constant 0 : index
    %c60 = arith.constant 60 : index
    %12 = vector.load %arg10[%c0_13, %c60] : memref<8x1280xf32, #tpu.memory_space<vmem>>, vector<8x1024xf32>
    %c0_14 = arith.constant 0 : index
    %c0_15 = arith.constant 0 : index
    %13 = vector.load %arg4[%c0_14, %c0_15] : memref<9x1024xf32, #tpu.memory_space<vmem>>, vector<1x1024xf32>
    %14 = vector.broadcast %13 : vector<1x1024xf32> to vector<8x1024xf32>
    %15 = arith.mulf %12, %14 : vector<8x1024xf32>
    %c0_16 = arith.constant 0 : index
    %c64 = arith.constant 64 : index
    %16 = vector.load %arg10[%c0_16, %c64] : memref<8x1280xf32, #tpu.memory_space<vmem>>, vector<8x1024xf32>
    %c1 = arith.constant 1 : index
    %c0_17 = arith.constant 0 : index
    %17 = vector.load %arg4[%c1, %c0_17] : memref<9x1024xf32, #tpu.memory_space<vmem>>, vector<1x1024xf32>
    %18 = vector.broadcast %17 : vector<1x1024xf32> to vector<8x1024xf32>
    %19 = arith.mulf %16, %18 : vector<8x1024xf32>
    %c0_18 = arith.constant 0 : index
    %c68 = arith.constant 68 : index
    %20 = vector.load %arg10[%c0_18, %c68] : memref<8x1280xf32, #tpu.memory_space<vmem>>, vector<8x1024xf32>
    %c2 = arith.constant 2 : index
    %c0_19 = arith.constant 0 : index
    %21 = vector.load %arg4[%c2, %c0_19] : memref<9x1024xf32, #tpu.memory_space<vmem>>, vector<1x1024xf32>
    %22 = vector.broadcast %21 : vector<1x1024xf32> to vector<8x1024xf32>
    %23 = arith.mulf %20, %22 : vector<8x1024xf32>
    %c0_20 = arith.constant 0 : index
    %c124 = arith.constant 124 : index
    %24 = vector.load %arg10[%c0_20, %c124] : memref<8x1280xf32, #tpu.memory_space<vmem>>, vector<8x1024xf32>
    %c3 = arith.constant 3 : index
    %c0_21 = arith.constant 0 : index
    %25 = vector.load %arg4[%c3, %c0_21] : memref<9x1024xf32, #tpu.memory_space<vmem>>, vector<1x1024xf32>
    %26 = vector.broadcast %25 : vector<1x1024xf32> to vector<8x1024xf32>
    %27 = arith.mulf %24, %26 : vector<8x1024xf32>
    %c0_22 = arith.constant 0 : index
    %c128_23 = arith.constant 128 : index
    %28 = vector.load %arg10[%c0_22, %c128_23] : memref<8x1280xf32, #tpu.memory_space<vmem>>, vector<8x1024xf32>
    %c0_24 = arith.constant 0 : index
    %c132 = arith.constant 132 : index
    %29 = vector.load %arg10[%c0_24, %c132] : memref<8x1280xf32, #tpu.memory_space<vmem>>, vector<8x1024xf32>
    %c5 = arith.constant 5 : index
    %c0_25 = arith.constant 0 : index
    %30 = vector.load %arg4[%c5, %c0_25] : memref<9x1024xf32, #tpu.memory_space<vmem>>, vector<1x1024xf32>
    %31 = vector.broadcast %30 : vector<1x1024xf32> to vector<8x1024xf32>
    %32 = arith.mulf %29, %31 : vector<8x1024xf32>
    %c0_26 = arith.constant 0 : index
    %c188 = arith.constant 188 : index
    %33 = vector.load %arg10[%c0_26, %c188] : memref<8x1280xf32, #tpu.memory_space<vmem>>, vector<8x1024xf32>
    %c6 = arith.constant 6 : index
    %c0_27 = arith.constant 0 : index
    %34 = vector.load %arg4[%c6, %c0_27] : memref<9x1024xf32, #tpu.memory_space<vmem>>, vector<1x1024xf32>
    %35 = vector.broadcast %34 : vector<1x1024xf32> to vector<8x1024xf32>
    %36 = arith.mulf %33, %35 : vector<8x1024xf32>
    %c0_28 = arith.constant 0 : index
    %c192 = arith.constant 192 : index
    %37 = vector.load %arg10[%c0_28, %c192] : memref<8x1280xf32, #tpu.memory_space<vmem>>, vector<8x1024xf32>
    %c7 = arith.constant 7 : index
    %c0_29 = arith.constant 0 : index
    %38 = vector.load %arg4[%c7, %c0_29] : memref<9x1024xf32, #tpu.memory_space<vmem>>, vector<1x1024xf32>
    %39 = vector.broadcast %38 : vector<1x1024xf32> to vector<8x1024xf32>
    %40 = arith.mulf %37, %39 : vector<8x1024xf32>
    %c0_30 = arith.constant 0 : index
    %c196 = arith.constant 196 : index
    %41 = vector.load %arg10[%c0_30, %c196] : memref<8x1280xf32, #tpu.memory_space<vmem>>, vector<8x1024xf32>
    %c8 = arith.constant 8 : index
    %c0_31 = arith.constant 0 : index
    %42 = vector.load %arg4[%c8, %c0_31] : memref<9x1024xf32, #tpu.memory_space<vmem>>, vector<1x1024xf32>
    %43 = vector.broadcast %42 : vector<1x1024xf32> to vector<8x1024xf32>
    %44 = arith.mulf %41, %43 : vector<8x1024xf32>
    %45 = tpu.concatenate %15, %19, %23, %27, %28, %32, %36, %40, %44 in 0 : vector<8x1024xf32>, vector<8x1024xf32>, vector<8x1024xf32>, vector<8x1024xf32>, vector<8x1024xf32>, vector<8x1024xf32>, vector<8x1024xf32>, vector<8x1024xf32>, vector<8x1024xf32> -> vector<72x1024xf32>
    %46 = arith.truncf %45 : vector<72x1024xf32> to vector<72x1024xbf16>
    %c0_32 = arith.constant 0 : index
    %c0_33 = arith.constant 0 : index
    %47 = vector.load %arg5[%c0_32, %c0_33] : memref<8x72xbf16, #tpu.memory_space<vmem>>, vector<8x72xbf16>
    %cst_34 = arith.constant dense<0.000000e+00> : vector<8x1024xf32>
    %48 = tpu.matmul %47, %46, %cst_34 {dimension_numbers = #tpu.dot_dimension_numbers<[1], [0], [0], [1], [0, 0, 1, 1], [], []>} : vector<8x72xbf16>, vector<72x1024xbf16>, vector<8x1024xf32> -> vector<8x1024xf32>
    %c0_35 = arith.constant 0 : index
    %c0_36 = arith.constant 0 : index
    %49 = vector.load %arg6[%c0_35, %c0_36] : memref<8x1xf32, #tpu.memory_space<vmem>>, vector<8x1xf32>
    %50 = vector.broadcast %49 : vector<8x1xf32> to vector<8x1024xf32>
    %51 = arith.addf %48, %50 : vector<8x1024xf32>
    %cst_37 = arith.constant 0.000000e+00 : f32
    %52 = vector.broadcast %cst_37 : f32 to vector<8x1024xf32>
    %53 = arith.maximumf %51, %52 : vector<8x1024xf32>
    %c0_38 = arith.constant 0 : index
    %c128_39 = arith.constant 128 : index
    %54 = vector.load %arg10[%c0_38, %c128_39] : memref<8x1280xf32, #tpu.memory_space<vmem>>, vector<8x1024xf32>
    tpu.vector_store %arg10[%c0_38, %c128_39], %53 {strides = array<i32>} : memref<8x1280xf32, #tpu.memory_space<vmem>>, vector<8x1024xf32>,
    %c0_40 = arith.constant 0 : index
    %c60_41 = arith.constant 60 : index
    %55 = vector.load %arg10[%c0_40, %c60_41] : memref<8x1280xf32, #tpu.memory_space<vmem>>, vector<8x1024xf32>
    %c0_42 = arith.constant 0 : index
    %c0_43 = arith.constant 0 : index
    %56 = vector.load %arg4[%c0_42, %c0_43] : memref<9x1024xf32, #tpu.memory_space<vmem>>, vector<1x1024xf32>
    %57 = vector.broadcast %56 : vector<1x1024xf32> to vector<8x1024xf32>
    %58 = arith.mulf %55, %57 : vector<8x1024xf32>
    %c0_44 = arith.constant 0 : index
    %c64_45 = arith.constant 64 : index
    %59 = vector.load %arg10[%c0_44, %c64_45] : memref<8x1280xf32, #tpu.memory_space<vmem>>, vector<8x1024xf32>
    %c1_46 = arith.constant 1 : index
    %c0_47 = arith.constant 0 : index
    %60 = vector.load %arg4[%c1_46, %c0_47] : memref<9x1024xf32, #tpu.memory_space<vmem>>, vector<1x1024xf32>
    %61 = vector.broadcast %60 : vector<1x1024xf32> to vector<8x1024xf32>
    %62 = arith.mulf %59, %61 : vector<8x1024xf32>
    %c0_48 = arith.constant 0 : index
    %c68_49 = arith.constant 68 : index
    %63 = vector.load %arg10[%c0_48, %c68_49] : memref<8x1280xf32, #tpu.memory_space<vmem>>, vector<8x1024xf32>
    %c2_50 = arith.constant 2 : index
    %c0_51 = arith.constant 0 : index
    %64 = vector.load %arg4[%c2_50, %c0_51] : memref<9x1024xf32, #tpu.memory_space<vmem>>, vector<1x1024xf32>
    %65 = vector.broadcast %64 : vector<1x1024xf32> to vector<8x1024xf32>
    %66 = arith.mulf %63, %65 : vector<8x1024xf32>
    %c0_52 = arith.constant 0 : index
    %c124_53 = arith.constant 124 : index
    %67 = vector.load %arg10[%c0_52, %c124_53] : memref<8x1280xf32, #tpu.memory_space<vmem>>, vector<8x1024xf32>
    %c3_54 = arith.constant 3 : index
    %c0_55 = arith.constant 0 : index
    %68 = vector.load %arg4[%c3_54, %c0_55] : memref<9x1024xf32, #tpu.memory_space<vmem>>, vector<1x1024xf32>
    %69 = vector.broadcast %68 : vector<1x1024xf32> to vector<8x1024xf32>
    %70 = arith.mulf %67, %69 : vector<8x1024xf32>
    %c0_56 = arith.constant 0 : index
    %c128_57 = arith.constant 128 : index
    %71 = vector.load %arg10[%c0_56, %c128_57] : memref<8x1280xf32, #tpu.memory_space<vmem>>, vector<8x1024xf32>
    %c0_58 = arith.constant 0 : index
    %c132_59 = arith.constant 132 : index
    %72 = vector.load %arg10[%c0_58, %c132_59] : memref<8x1280xf32, #tpu.memory_space<vmem>>, vector<8x1024xf32>
    %c5_60 = arith.constant 5 : index
    %c0_61 = arith.constant 0 : index
    %73 = vector.load %arg4[%c5_60, %c0_61] : memref<9x1024xf32, #tpu.memory_space<vmem>>, vector<1x1024xf32>
    %74 = vector.broadcast %73 : vector<1x1024xf32> to vector<8x1024xf32>
    %75 = arith.mulf %72, %74 : vector<8x1024xf32>
    %c0_62 = arith.constant 0 : index
    %c188_63 = arith.constant 188 : index
    %76 = vector.load %arg10[%c0_62, %c188_63] : memref<8x1280xf32, #tpu.memory_space<vmem>>, vector<8x1024xf32>
    %c6_64 = arith.constant 6 : index
    %c0_65 = arith.constant 0 : index
    %77 = vector.load %arg4[%c6_64, %c0_65] : memref<9x1024xf32, #tpu.memory_space<vmem>>, vector<1x1024xf32>
    %78 = vector.broadcast %77 : vector<1x1024xf32> to vector<8x1024xf32>
    %79 = arith.mulf %76, %78 : vector<8x1024xf32>
    %c0_66 = arith.constant 0 : index
    %c192_67 = arith.constant 192 : index
    %80 = vector.load %arg10[%c0_66, %c192_67] : memref<8x1280xf32, #tpu.memory_space<vmem>>, vector<8x1024xf32>
    %c7_68 = arith.constant 7 : index
    %c0_69 = arith.constant 0 : index
    %81 = vector.load %arg4[%c7_68, %c0_69] : memref<9x1024xf32, #tpu.memory_space<vmem>>, vector<1x1024xf32>
    %82 = vector.broadcast %81 : vector<1x1024xf32> to vector<8x1024xf32>
    %83 = arith.mulf %80, %82 : vector<8x1024xf32>
    %c0_70 = arith.constant 0 : index
    %c196_71 = arith.constant 196 : index
    %84 = vector.load %arg10[%c0_70, %c196_71] : memref<8x1280xf32, #tpu.memory_space<vmem>>, vector<8x1024xf32>
    %c8_72 = arith.constant 8 : index
    %c0_73 = arith.constant 0 : index
    %85 = vector.load %arg4[%c8_72, %c0_73] : memref<9x1024xf32, #tpu.memory_space<vmem>>, vector<1x1024xf32>
    %86 = vector.broadcast %85 : vector<1x1024xf32> to vector<8x1024xf32>
    %87 = arith.mulf %84, %86 : vector<8x1024xf32>
    %88 = tpu.concatenate %58, %62, %66, %70, %71, %75, %79, %83, %87 in 0 : vector<8x1024xf32>, vector<8x1024xf32>, vector<8x1024xf32>, vector<8x1024xf32>, vector<8x1024xf32>, vector<8x1024xf32>, vector<8x1024xf32>, vector<8x1024xf32>, vector<8x1024xf32> -> vector<72x1024xf32>
    %89 = arith.truncf %88 : vector<72x1024xf32> to vector<72x1024xbf16>
    %c0_74 = arith.constant 0 : index
    %c0_75 = arith.constant 0 : index
    %90 = vector.load %arg7[%c0_74, %c0_75] : memref<8x72xbf16, #tpu.memory_space<vmem>>, vector<8x72xbf16>
    %cst_76 = arith.constant dense<0.000000e+00> : vector<8x1024xf32>
    %91 = tpu.matmul %90, %89, %cst_76 {dimension_numbers = #tpu.dot_dimension_numbers<[1], [0], [0], [1], [0, 0, 1, 1], [], []>} : vector<8x72xbf16>, vector<72x1024xbf16>, vector<8x1024xf32> -> vector<8x1024xf32>
    %c0_77 = arith.constant 0 : index
    %c0_78 = arith.constant 0 : index
    %92 = vector.load %arg8[%c0_77, %c0_78] : memref<8x1xf32, #tpu.memory_space<vmem>>, vector<8x1xf32>
    %93 = vector.broadcast %92 : vector<8x1xf32> to vector<8x1024xf32>
    %94 = arith.addf %91, %93 : vector<8x1024xf32>
    %cst_79 = arith.constant 0.000000e+00 : f32
    %95 = vector.broadcast %cst_79 : f32 to vector<8x1024xf32>
    %96 = arith.maximumf %94, %95 : vector<8x1024xf32>
    %c0_80 = arith.constant 0 : index
    %c0_81 = arith.constant 0 : index
    %c0_82 = arith.constant 0 : index
    %97 = vector.load %arg9[%c0_80, %c0_81, %c0_82] : memref<1x8x1024xf32, #tpu.memory_space<vmem>>, vector<1x8x1024xf32>
    %98 = vector.shape_cast %97 : vector<1x8x1024xf32> to vector<8x1024xf32>
    %99 = vector.shape_cast %96 : vector<8x1024xf32> to vector<1x8x1024xf32>
    tpu.vector_store %arg9[%c0_80, %c0_81, %c0_82], %99 {strides = array<i32>} : memref<1x8x1024xf32, #tpu.memory_space<vmem>>, vector<1x8x1024xf32>,
    return
  }
  func.func @transform_0(%arg0: i32) -> (i32, i32, i32) {
    %c0_i32 = arith.constant 0 : i32
    %c0_i32_0 = arith.constant 0 : i32
    %c0_i32_1 = arith.constant 0 : i32
    return %arg0, %c0_i32, %c0_i32_0 : i32, i32, i32
  }
  func.func @transform_1(%arg0: i32) -> (i32, i32, i32) {
    %c0_i32 = arith.constant 0 : i32
    %c0_i32_0 = arith.constant 0 : i32
    %c0_i32_1 = arith.constant 0 : i32
    return %arg0, %c0_i32, %c0_i32_0 : i32, i32, i32
  }
  func.func @transform_2(%arg0: i32) -> (i32, i32) {
    %c0_i32 = arith.constant 0 : i32
    %c0_i32_0 = arith.constant 0 : i32
    %c0_i32_1 = arith.constant 0 : i32
    return %c0_i32, %c0_i32_0 : i32, i32
  }
  func.func @transform_3(%arg0: i32) -> (i32, i32) {
    %c0_i32 = arith.constant 0 : i32
    %c0_i32_0 = arith.constant 0 : i32
    %c0_i32_1 = arith.constant 0 : i32
    return %c0_i32, %c0_i32_0 : i32, i32
  }
  func.func @transform_4(%arg0: i32) -> (i32, i32) {
    %c0_i32 = arith.constant 0 : i32
    %c0_i32_0 = arith.constant 0 : i32
    %c0_i32_1 = arith.constant 0 : i32
    return %c0_i32, %c0_i32_0 : i32, i32
  }
  func.func @transform_5(%arg0: i32) -> (i32, i32) {
    %c0_i32 = arith.constant 0 : i32
    %c0_i32_0 = arith.constant 0 : i32
    %c0_i32_1 = arith.constant 0 : i32
    return %c0_i32, %c0_i32_0 : i32, i32
  }
  func.func @transform_6(%arg0: i32) -> (i32, i32) {
    %c0_i32 = arith.constant 0 : i32
    %c0_i32_0 = arith.constant 0 : i32
    %c0_i32_1 = arith.constant 0 : i32
    return %c0_i32, %c0_i32_0 : i32, i32
  }
  func.func @transform_7(%arg0: i32) -> (i32, i32) {
    %c0_i32 = arith.constant 0 : i32
    %c0_i32_0 = arith.constant 0 : i32
    %c0_i32_1 = arith.constant 0 : i32
    return %c0_i32, %c0_i32_0 : i32, i32
  }
  func.func @transform_8(%arg0: i32) -> (i32, i32, i32) {
    %c0_i32 = arith.constant 0 : i32
    %c0_i32_0 = arith.constant 0 : i32
    %c0_i32_1 = arith.constant 0 : i32
    return %arg0, %c0_i32, %c0_i32_0 : i32, i32, i32
  }
}

</mosaic_0001>

<llo_original>
// kernel: up_forward.1
$region0: #{up_forward.1}
  #allocation0 [shape = 'u32[]', space=smem, size = 0x4, offset = 0x4, fixed_abs, tag = 'smem constant byte address 0x4 - core index']
  #allocation1 [shape = 'u32[72,128]{1,0:T(1,128)}', space=vmem, size = 0x9000, scoped, tag = 'internal scratch']
  #allocation2 [shape = 'f32[8,1280]{1,0:T(8,128)}', space=vmem, size = 0xa000, scoped, tag = 'scratch operand']
  %s0 = inlined_call_operand.vmem [shape: f32[2,4,256], index: 0, kind: input, shape index: {}]
  %s1 = inlined_call_operand.vmem [shape: f32[2,4,1024], index: 1, kind: input, shape index: {}]
  %s2 = inlined_call_operand.vmem [shape: f32[256,1024], index: 2, kind: input, shape index: {}]
  %s3 = inlined_call_operand.vmem [shape: f32[9,1024], index: 3, kind: input, shape index: {}]
  %s4 = inlined_call_operand.vmem [shape: bf16[8,72], index: 4, kind: input, shape index: {}]
  %s5 = inlined_call_operand.vmem [shape: f32[8,1], index: 5, kind: input, shape index: {}]
  %s6 = inlined_call_operand.vmem [shape: bf16[8,72], index: 6, kind: input, shape index: {}]
  %s7 = inlined_call_operand.vmem [shape: f32[8,1], index: 7, kind: input, shape index: {}]
  %s8 = inlined_call_operand.vmem [shape: f32[2,8,1024], index: 8, kind: output, shape index: {}]
  %s9 = sld [smem:[#allocation0]]
  $region65: #{up_forward.1} parent=0
    _
  %s11 = ssub.s32 1, %s9
  %s12 = scalar_select 0, %s11, %s9
  loop: start=0, step=1, limit=4
  $region2: #{up_forward.1} parent=0 // loop_pre_header
    _
  $region3: #{up_forward.1} parent=0 // loop_header
    %s14 = sphi 0, %s18
    %p15 = scmp.ge.s32.totalorder %s14, 4
    %s24 = sphi 0, %s26
    %s27 = sphi 0, %s24
    %s28 = sphi 0, %s27
    %s44 = sphi 0, %s28
    %s50 = sphi 0, %s52
    %s53 = sphi 0, %s50
    %s54 = sphi 0, %s53
    %s70 = sphi 0, %s54
    %s74 = sphi 0, %s74
    %s76 = sphi 0, %s74
    %s77 = sphi 0, %s76
    %s91 = sphi 0, %s77
    %s95 = sphi 0, %s95
    %s97 = sphi 0, %s95
    %s98 = sphi 0, %s97
    %s112 = sphi 0, %s98
    %s116 = sphi 0, %s116
    %s118 = sphi 0, %s116
    %s119 = sphi 0, %s118
    %s133 = sphi 0, %s119
    %s137 = sphi 0, %s137
    %s139 = sphi 0, %s137
    %s140 = sphi 0, %s139
    %s154 = sphi 0, %s140
    %s158 = sphi 0, %s158
    %s160 = sphi 0, %s158
    %s161 = sphi 0, %s160
    %s175 = sphi 0, %s161
    %s179 = sphi 0, %s179
    %s181 = sphi 0, %s179
    %s182 = sphi 0, %s181
    %s196 = sphi 0, %s182
    %s202 = sphi 0, %s204
    %s205 = sphi 0, %s202
    %s206 = sphi 0, %s205
    %s222 = sphi 0, %s206
  $region4: #{up_forward.1} parent=0 // loop_header_branch
    %17 = sbr.rel (%p15) target = $region8
  $region5: #{up_forward.1} parent=0 // loop_body
    %s19 = ssub.s32 %s14, 1
    %s20 = ssub.s32 %s14, 2
    %s21 = sadd.s32 %s14, 1
    %s22 = ssub.s32 %s14, %s21
    %p23 = scmp.eq.s32.totalorder %s22, 0
    %s25 = sadd.s32 %s24, 1
    %s26 = scalar_select %p23, %s24, %s25
    %p29 = pneg %p23
    %p30 = scmp.eq.s32.totalorder %s14, 1
    %p31 = por %p29, %p30
    %p32 = scmp.ne.s32.totalorder %s24, %s27
    %p33 = scmp.eq.s32.totalorder %s14, 0
    %p34 = por %p32, %p33
    %p35 = scmp.ne.s32.totalorder %s24, %s27
    %p36 = scmp.eq.s32.totalorder %s19, 1
    %p37 = por %p35, %p36
    %p38 = scmp.ne.s32.totalorder %s27, %s28
    %p39 = scmp.eq.s32.totalorder %s19, 0
    %p40 = por %p38, %p39
    %p41 = scmp.ne.s32.totalorder %s27, %s28
    %p42 = scmp.eq.s32.totalorder %s20, 1
    %p43 = por %p41, %p42
    %p45 = scmp.ne.s32.totalorder %s28, %s44
    %p46 = scmp.eq.s32.totalorder %s20, 0
    %p47 = por %p45, %p46
    %s48 = ssub.s32 %s14, %s21
    %p49 = scmp.eq.s32.totalorder %s48, 0
    %s51 = sadd.s32 %s50, 1
    %s52 = scalar_select %p49, %s50, %s51
    %p55 = pneg %p49
    %p56 = scmp.eq.s32.totalorder %s14, 1
    %p57 = por %p55, %p56
    %p58 = scmp.ne.s32.totalorder %s50, %s53
    %p59 = scmp.eq.s32.totalorder %s14, 0
    %p60 = por %p58, %p59
    %p61 = scmp.ne.s32.totalorder %s50, %s53
    %p62 = scmp.eq.s32.totalorder %s19, 1
    %p63 = por %p61, %p62
    %p64 = scmp.ne.s32.totalorder %s53, %s54
    %p65 = scmp.eq.s32.totalorder %s19, 0
    %p66 = por %p64, %p65
    %p67 = scmp.ne.s32.totalorder %s53, %s54
    %p68 = scmp.eq.s32.totalorder %s20, 1
    %p69 = por %p67, %p68
    %p71 = scmp.ne.s32.totalorder %s54, %s70
    %p72 = scmp.eq.s32.totalorder %s20, 0
    %p73 = por %p71, %p72
    %s75 = sadd.s32 %s74, 1
    %p78 = scmp.eq.s32.totalorder %s14, 1
    %p79 = scmp.ne.s32.totalorder %s74, %s76
    %p80 = scmp.eq.s32.totalorder %s14, 0
    %p81 = por %p79, %p80
    %p82 = scmp.ne.s32.totalorder %s74, %s76
    %p83 = scmp.eq.s32.totalorder %s19, 1
    %p84 = por %p82, %p83
    %p85 = scmp.ne.s32.totalorder %s76, %s77
    %p86 = scmp.eq.s32.totalorder %s19, 0
    %p87 = por %p85, %p86
    %p88 = scmp.ne.s32.totalorder %s76, %s77
    %p89 = scmp.eq.s32.totalorder %s20, 1
    %p90 = por %p88, %p89
    %p92 = scmp.ne.s32.totalorder %s77, %s91
    %p93 = scmp.eq.s32.totalorder %s20, 0
    %p94 = por %p92, %p93
    %s96 = sadd.s32 %s95, 1
    %p99 = scmp.eq.s32.totalorder %s14, 1
    %p100 = scmp.ne.s32.totalorder %s95, %s97
    %p101 = scmp.eq.s32.totalorder %s14, 0
    %p102 = por %p100, %p101
    %p103 = scmp.ne.s32.totalorder %s95, %s97
    %p104 = scmp.eq.s32.totalorder %s19, 1
    %p105 = por %p103, %p104
    %p106 = scmp.ne.s32.totalorder %s97, %s98
    %p107 = scmp.eq.s32.totalorder %s19, 0
    %p108 = por %p106, %p107
    %p109 = scmp.ne.s32.totalorder %s97, %s98
    %p110 = scmp.eq.s32.totalorder %s20, 1
    %p111 = por %p109, %p110
    %p113 = scmp.ne.s32.totalorder %s98, %s112
    %p114 = scmp.eq.s32.totalorder %s20, 0
    %p115 = por %p113, %p114
    %s117 = sadd.s32 %s116, 1
    %p120 = scmp.eq.s32.totalorder %s14, 1
    %p121 = scmp.ne.s32.totalorder %s116, %s118
    %p122 = scmp.eq.s32.totalorder %s14, 0
    %p123 = por %p121, %p122
    %p124 = scmp.ne.s32.totalorder %s116, %s118
    %p125 = scmp.eq.s32.totalorder %s19, 1
    %p126 = por %p124, %p125
    %p127 = scmp.ne.s32.totalorder %s118, %s119
    %p128 = scmp.eq.s32.totalorder %s19, 0
    %p129 = por %p127, %p128
    %p130 = scmp.ne.s32.totalorder %s118, %s119
    %p131 = scmp.eq.s32.totalorder %s20, 1
    %p132 = por %p130, %p131
    %p134 = scmp.ne.s32.totalorder %s119, %s133
    %p135 = scmp.eq.s32.totalorder %s20, 0
    %p136 = por %p134, %p135
    %s138 = sadd.s32 %s137, 1
    %p141 = scmp.eq.s32.totalorder %s14, 1
    %p142 = scmp.ne.s32.totalorder %s137, %s139
    %p143 = scmp.eq.s32.totalorder %s14, 0
    %p144 = por %p142, %p143
    %p145 = scmp.ne.s32.totalorder %s137, %s139
    %p146 = scmp.eq.s32.totalorder %s19, 1
    %p147 = por %p145, %p146
    %p148 = scmp.ne.s32.totalorder %s139, %s140
    %p149 = scmp.eq.s32.totalorder %s19, 0
    %p150 = por %p148, %p149
    %p151 = scmp.ne.s32.totalorder %s139, %s140
    %p152 = scmp.eq.s32.totalorder %s20, 1
    %p153 = por %p151, %p152
    %p155 = scmp.ne.s32.totalorder %s140, %s154
    %p156 = scmp.eq.s32.totalorder %s20, 0
    %p157 = por %p155, %p156
    %s159 = sadd.s32 %s158, 1
    %p162 = scmp.eq.s32.totalorder %s14, 1
    %p163 = scmp.ne.s32.totalorder %s158, %s160
    %p164 = scmp.eq.s32.totalorder %s14, 0
    %p165 = por %p163, %p164
    %p166 = scmp.ne.s32.totalorder %s158, %s160
    %p167 = scmp.eq.s32.totalorder %s19, 1
    %p168 = por %p166, %p167
    %p169 = scmp.ne.s32.totalorder %s160, %s161
    %p170 = scmp.eq.s32.totalorder %s19, 0
    %p171 = por %p169, %p170
    %p172 = scmp.ne.s32.totalorder %s160, %s161
    %p173 = scmp.eq.s32.totalorder %s20, 1
    %p174 = por %p172, %p173
    %p176 = scmp.ne.s32.totalorder %s161, %s175
    %p177 = scmp.eq.s32.totalorder %s20, 0
    %p178 = por %p176, %p177
    %s180 = sadd.s32 %s179, 1
    %p183 = scmp.eq.s32.totalorder %s14, 1
    %p184 = scmp.ne.s32.totalorder %s179, %s181
    %p185 = scmp.eq.s32.totalorder %s14, 0
    %p186 = por %p184, %p185
    %p187 = scmp.ne.s32.totalorder %s179, %s181
    %p188 = scmp.eq.s32.totalorder %s19, 1
    %p189 = por %p187, %p188
    %p190 = scmp.ne.s32.totalorder %s181, %s182
    %p191 = scmp.eq.s32.totalorder %s19, 0
    %p192 = por %p190, %p191
    %p193 = scmp.ne.s32.totalorder %s181, %s182
    %p194 = scmp.eq.s32.totalorder %s20, 1
    %p195 = por %p193, %p194
    %p197 = scmp.ne.s32.totalorder %s182, %s196
    %p198 = scmp.eq.s32.totalorder %s20, 0
    %p199 = por %p197, %p198
    %s200 = ssub.s32 %s14, %s21
    %p201 = scmp.eq.s32.totalorder %s200, 0
    %s203 = sadd.s32 %s202, 1
    %s204 = scalar_select %p201, %s202, %s203
    %p207 = pneg %p201
    %p208 = scmp.eq.s32.totalorder %s14, 1
    %p209 = por %p207, %p208
    %p210 = scmp.ne.s32.totalorder %s202, %s205
    %p211 = scmp.eq.s32.totalorder %s14, 0
    %p212 = por %p210, %p211
    %p213 = scmp.ne.s32.totalorder %s202, %s205
    %p214 = scmp.eq.s32.totalorder %s19, 1
    %p215 = por %p213, %p214
    %p216 = scmp.ne.s32.totalorder %s205, %s206
    %p217 = scmp.eq.s32.totalorder %s19, 0
    %p218 = por %p216, %p217
    %p219 = scmp.ne.s32.totalorder %s205, %s206
    %p220 = scmp.eq.s32.totalorder %s20, 1
    %p221 = por %p219, %p220
    %p223 = scmp.ne.s32.totalorder %s206, %s222
    %p224 = scmp.eq.s32.totalorder %s20, 0
    %p225 = por %p223, %p224
    %p226 = scmp.le.s32.totalorder 1, %s14
    %p227 = scmp.lt.s32.totalorder %s14, 3
    %p228 = pnand %p226, %p227
    %p229 = pneg %p228
    // Predicated region
    $region9: #{up_forward.1} parent=5 // pred_check
      _
    $region10: #{up_forward.1} parent=5 // pred_check_branch
      %231 = sbr.rel (%p228) target = $region12
    $region11: #{up_forward.1} parent=5 // pred_region
      %s232 = ssub.s32 %s14, 1
      // Predicated region
      $region13: #{up_forward.1} parent=11 // pred_check
        %p233 = pneg %p87
      $region14: #{up_forward.1} parent=11 // pred_check_branch
        %235 = sbr.rel (%p233) target = $region16
      $region15: #{up_forward.1} parent=11 // pred_region
        _
      $region16: #{up_forward.1} parent=11 // pred_fallthru
        _
      // Predicated region
      $region17: #{up_forward.1} parent=11 // pred_check
        %p236 = pneg %p108
      $region18: #{up_forward.1} parent=11 // pred_check_branch
        %238 = sbr.rel (%p236) target = $region20
      $region19: #{up_forward.1} parent=11 // pred_region
        _
      $region20: #{up_forward.1} parent=11 // pred_fallthru
        _
      // Predicated region
      $region21: #{up_forward.1} parent=11 // pred_check
        %p239 = pneg %p129
      $region22: #{up_forward.1} parent=11 // pred_check_branch
        %241 = sbr.rel (%p239) target = $region24
      $region23: #{up_forward.1} parent=11 // pred_region
        _
      $region24: #{up_forward.1} parent=11 // pred_fallthru
        _
      // Predicated region
      $region25: #{up_forward.1} parent=11 // pred_check
        %p242 = pneg %p150
      $region26: #{up_forward.1} parent=11 // pred_check_branch
        %244 = sbr.rel (%p242) target = $region28
      $region27: #{up_forward.1} parent=11 // pred_region
        _
      $region28: #{up_forward.1} parent=11 // pred_fallthru
        _
      // Predicated region
      $region29: #{up_forward.1} parent=11 // pred_check
        %p245 = pneg %p171
      $region30: #{up_forward.1} parent=11 // pred_check_branch
        %247 = sbr.rel (%p245) target = $region32
      $region31: #{up_forward.1} parent=11 // pred_region
        _
      $region32: #{up_forward.1} parent=11 // pred_fallthru
        _
      // Predicated region
      $region33: #{up_forward.1} parent=11 // pred_check
        %p248 = pneg %p192
      $region34: #{up_forward.1} parent=11 // pred_check_branch
        %250 = sbr.rel (%p248) target = $region36
      $region35: #{up_forward.1} parent=11 // pred_region
        _
      $region36: #{up_forward.1} parent=11 // pred_fallthru
        _
    $region12: #{up_forward.1} parent=5 // pred_fallthru
      _
    %p251 = scmp.lt.s32.totalorder %s14, 2
    // Predicated region
    $region37: #{up_forward.1} parent=5 // pred_check
      %p252 = pneg %p251
    $region38: #{up_forward.1} parent=5 // pred_check_branch
      %254 = sbr.rel (%p252) target = $region40
    $region39: #{up_forward.1} parent=5 // pred_region
      // Predicated region
      $region41: #{up_forward.1} parent=39 // pred_check
        %p255 = pneg %p34
      $region42: #{up_forward.1} parent=39 // pred_check_branch
        %257 = sbr.rel (%p255) target = $region44
      $region43: #{up_forward.1} parent=39 // pred_region
        %p258 = scmp.lt.s32.totalorder %s14, 1
        %s259 = scalar_select %p258, %s14, 1
        %s260 = smul.addr %s259, 2
        %s261 = smul.addr %s260, 4
        %s262 = scalar_lea.vmem %s0, %s261
      $region44: #{up_forward.1} parent=39 // pred_fallthru
        _
      // Predicated region
      $region45: #{up_forward.1} parent=39 // pred_check
        %p263 = pneg %p60
      $region46: #{up_forward.1} parent=39 // pred_check_branch
        %265 = sbr.rel (%p263) target = $region48
      $region47: #{up_forward.1} parent=39 // pred_region
        %p266 = scmp.lt.s32.totalorder %s14, 1
        %s267 = scalar_select %p266, %s14, 1
        %s268 = smul.addr %s267, 8
        %s269 = smul.addr %s268, 4
        %s270 = scalar_lea.vmem %s1, %s269
      $region48: #{up_forward.1} parent=39 // pred_fallthru
        _
    $region40: #{up_forward.1} parent=5 // pred_fallthru
      _
    %p271 = scmp.le.s32.totalorder 1, %s14
    %p272 = scmp.lt.s32.totalorder %s14, 3
    %p273 = pnand %p271, %p272
    %p274 = pneg %p273
    // Predicated region
    $region49: #{up_forward.1} parent=5 // pred_check
      _
    $region50: #{up_forward.1} parent=5 // pred_check_branch
      %276 = sbr.rel (%p273) target = $region52
    $region51: #{up_forward.1} parent=5 // pred_region
      %s277 = ssub.s32 %s14, 1
      %p278 = scmp.lt.s32.totalorder %s19, 1
      %s279 = scalar_select %p278, %s19, 1
      %s280 = smul.addr %s279, 2
      %s281 = smul.addr %s280, 4
      %s282 = scalar_lea.vmem %s0, %s281
      %p283 = pneg %p40
      %p284 = pneg %p37
      %p285 = scmp.lt.s32.totalorder %s19, 1
      %s286 = scalar_select %p285, %s19, 1
      %s287 = smul.addr %s286, 8
      %s288 = smul.addr %s287, 4
      %s289 = scalar_lea.vmem %s1, %s288
      %p290 = pneg %p66
      %p291 = pneg %p63
      %p292 = pneg %p87
      %p293 = pneg %p84
      %p294 = pneg %p108
      %p295 = pneg %p105
      %p296 = pneg %p129
      %p297 = pneg %p126
      %p298 = pneg %p150
      %p299 = pneg %p147
      %p300 = pneg %p171
      %p301 = pneg %p168
      %p302 = pneg %p192
      %p303 = pneg %p189
      %p304 = pneg %p218
      %p305 = pneg %p215
      %p306 = scmp.lt.s32.totalorder %s19, 1
      %s307 = scalar_select %p306, %s19, 1
      %s308 = smul.addr %s307, 8
      %s309 = smul.addr %s308, 8
      %s310 = scalar_lea.vmem %s8, %s309
      %p311 = scmp.lt.s32.totalorder %s19, 1
      %s312 = scalar_select %p311, %s19, 1
      %s313 = smul.addr %s312, 2
      %s314 = smul.addr %s313, 4
      %s315 = scalar_lea.vmem %s0, %s314
      %p316 = scmp.lt.s32.totalorder %s19, 1
      %s317 = scalar_select %p316, %s19, 1
      %s318 = smul.addr %s317, 8
      %s319 = smul.addr %s318, 4
      %s320 = scalar_lea.vmem %s1, %s319
      %p321 = scmp.lt.s32.totalorder %s19, 1
      %s322 = scalar_select %p321, %s19, 1
      %s323 = smul.addr %s322, 8
      %s324 = smul.addr %s323, 8
      %s325 = scalar_lea.vmem %s8, %s324
      %327 = vst [vmem:[#allocation2] sm:$0xff] 0.0
      %328 = vst [vmem:[#allocation2 + $0x48] sm:$0xff] 0.0
      %v329 = vld [vmem:[%s315] sm:$0xff]
      %v330 = vld [vmem:[%s2] sm:$0xff]
      %v331 = vld [vmem:[%s2 + $0x8] sm:$0xff]
      %v332 = vld [vmem:[%s2 + $0x10] sm:$0xff]
      %v333 = vld [vmem:[%s2 + $0x18] sm:$0xff]
      %v334 = vld [vmem:[%s2 + $0x20] sm:$0xff]
      %v335 = vld [vmem:[%s2 + $0x28] sm:$0xff]
      %v336 = vld [vmem:[%s2 + $0x30] sm:$0xff]
      %v337 = vld [vmem:[%s2 + $0x38] sm:$0xff]
      %v338 = vld [vmem:[%s2 + $0x40] sm:$0xff]
      %v339 = vld [vmem:[%s2 + $0x48] sm:$0xff]
      %v340 = vld [vmem:[%s2 + $0x50] sm:$0xff]
      %v341 = vld [vmem:[%s2 + $0x58] sm:$0xff]
      %v342 = vld [vmem:[%s2 + $0x60] sm:$0xff]
      %v343 = vld [vmem:[%s2 + $0x68] sm:$0xff]
      %v344 = vld [vmem:[%s2 + $0x70] sm:$0xff]
      %v345 = vld [vmem:[%s2 + $0x78] sm:$0xff]
      %v346 = vld [vmem:[%s2 + $0x80] sm:$0xff]
      %v347 = vld [vmem:[%s2 + $0x88] sm:$0xff]
      %v348 = vld [vmem:[%s2 + $0x90] sm:$0xff]
      %v349 = vld [vmem:[%s2 + $0x98] sm:$0xff]
      %v350 = vld [vmem:[%s2 + $0xa0] sm:$0xff]
      %v351 = vld [vmem:[%s2 + $0xa8] sm:$0xff]
      %v352 = vld [vmem:[%s2 + $0xb0] sm:$0xff]
      %v353 = vld [vmem:[%s2 + $0xb8] sm:$0xff]
      %v354 = vld [vmem:[%s2 + $0xc0] sm:$0xff]
      %v355 = vld [vmem:[%s2 + $0xc8] sm:$0xff]
      %v356 = vld [vmem:[%s2 + $0xd0] sm:$0xff]
      %v357 = vld [vmem:[%s2 + $0xd8] sm:$0xff]
      %v358 = vld [vmem:[%s2 + $0xe0] sm:$0xff]
      %v359 = vld [vmem:[%s2 + $0xe8] sm:$0xff]
      %v360 = vld [vmem:[%s2 + $0xf0] sm:$0xff]
      %v361 = vld [vmem:[%s2 + $0xf8] sm:$0xff]
      %v362 = vld [vmem:[%s2 + $0x100] sm:$0xff]
      %v363 = vld [vmem:[%s2 + $0x108] sm:$0xff]
      %v364 = vld [vmem:[%s2 + $0x110] sm:$0xff]
      %v365 = vld [vmem:[%s2 + $0x118] sm:$0xff]
      %v366 = vld [vmem:[%s2 + $0x120] sm:$0xff]
      %v367 = vld [vmem:[%s2 + $0x128] sm:$0xff]
      %v368 = vld [vmem:[%s2 + $0x130] sm:$0xff]
      %v369 = vld [vmem:[%s2 + $0x138] sm:$0xff]
      %v370 = vld [vmem:[%s2 + $0x140] sm:$0xff]
      %v371 = vld [vmem:[%s2 + $0x148] sm:$0xff]
      %v372 = vld [vmem:[%s2 + $0x150] sm:$0xff]
      %v373 = vld [vmem:[%s2 + $0x158] sm:$0xff]
      %v374 = vld [vmem:[%s2 + $0x160] sm:$0xff]
      %v375 = vld [vmem:[%s2 + $0x168] sm:$0xff]
      %v376 = vld [vmem:[%s2 + $0x170] sm:$0xff]
      %v377 = vld [vmem:[%s2 + $0x178] sm:$0xff]
      %v378 = vld [vmem:[%s2 + $0x180] sm:$0xff]
      %v379 = vld [vmem:[%s2 + $0x188] sm:$0xff]
      %v380 = vld [vmem:[%s2 + $0x190] sm:$0xff]
      %v381 = vld [vmem:[%s2 + $0x198] sm:$0xff]
      %v382 = vld [vmem:[%s2 + $0x1a0] sm:$0xff]
      %v383 = vld [vmem:[%s2 + $0x1a8] sm:$0xff]
      %v384 = vld [vmem:[%s2 + $0x1b0] sm:$0xff]
      %v385 = vld [vmem:[%s2 + $0x1b8] sm:$0xff]
      %v386 = vld [vmem:[%s2 + $0x1c0] sm:$0xff]
      %v387 = vld [vmem:[%s2 + $0x1c8] sm:$0xff]
      %v388 = vld [vmem:[%s2 + $0x1d0] sm:$0xff]
      %v389 = vld [vmem:[%s2 + $0x1d8] sm:$0xff]
      %v390 = vld [vmem:[%s2 + $0x1e0] sm:$0xff]
      %v391 = vld [vmem:[%s2 + $0x1e8] sm:$0xff]
      %v392 = vld [vmem:[%s2 + $0x1f0] sm:$0xff]
      %v393 = vld [vmem:[%s2 + $0x1f8] sm:$0xff]
      %v394 = vld [vmem:[%s2 + $0x200] sm:$0xff]
      %v395 = vld [vmem:[%s2 + $0x208] sm:$0xff]
      %v396 = vld [vmem:[%s2 + $0x210] sm:$0xff]
      %v397 = vld [vmem:[%s2 + $0x218] sm:$0xff]
      %v398 = vld [vmem:[%s2 + $0x220] sm:$0xff]
      %v399 = vld [vmem:[%s2 + $0x228] sm:$0xff]
      %v400 = vld [vmem:[%s2 + $0x230] sm:$0xff]
      %v401 = vld [vmem:[%s2 + $0x238] sm:$0xff]
      %v402 = vld [vmem:[%s2 + $0x240] sm:$0xff]
      %v403 = vld [vmem:[%s2 + $0x248] sm:$0xff]
      %v404 = vld [vmem:[%s2 + $0x250] sm:$0xff]
      %v405 = vld [vmem:[%s2 + $0x258] sm:$0xff]
      %v406 = vld [vmem:[%s2 + $0x260] sm:$0xff]
      %v407 = vld [vmem:[%s2 + $0x268] sm:$0xff]
      %v408 = vld [vmem:[%s2 + $0x270] sm:$0xff]
      %v409 = vld [vmem:[%s2 + $0x278] sm:$0xff]
      %v410 = vld [vmem:[%s2 + $0x280] sm:$0xff]
      %v411 = vld [vmem:[%s2 + $0x288] sm:$0xff]
      %v412 = vld [vmem:[%s2 + $0x290] sm:$0xff]
      %v413 = vld [vmem:[%s2 + $0x298] sm:$0xff]
      %v414 = vld [vmem:[%s2 + $0x2a0] sm:$0xff]
      %v415 = vld [vmem:[%s2 + $0x2a8] sm:$0xff]
      %v416 = vld [vmem:[%s2 + $0x2b0] sm:$0xff]
      %v417 = vld [vmem:[%s2 + $0x2b8] sm:$0xff]
      %v418 = vld [vmem:[%s2 + $0x2c0] sm:$0xff]
      %v419 = vld [vmem:[%s2 + $0x2c8] sm:$0xff]
      %v420 = vld [vmem:[%s2 + $0x2d0] sm:$0xff]
      %v421 = vld [vmem:[%s2 + $0x2d8] sm:$0xff]
      %v422 = vld [vmem:[%s2 + $0x2e0] sm:$0xff]
      %v423 = vld [vmem:[%s2 + $0x2e8] sm:$0xff]
      %v424 = vld [vmem:[%s2 + $0x2f0] sm:$0xff]
      %v425 = vld [vmem:[%s2 + $0x2f8] sm:$0xff]
      %v426 = vld [vmem:[%s2 + $0x300] sm:$0xff]
      %v427 = vld [vmem:[%s2 + $0x308] sm:$0xff]
      %v428 = vld [vmem:[%s2 + $0x310] sm:$0xff]
      %v429 = vld [vmem:[%s2 + $0x318] sm:$0xff]
      %v430 = vld [vmem:[%s2 + $0x320] sm:$0xff]
      %v431 = vld [vmem:[%s2 + $0x328] sm:$0xff]
      %v432 = vld [vmem:[%s2 + $0x330] sm:$0xff]
      %v433 = vld [vmem:[%s2 + $0x338] sm:$0xff]
      %v434 = vld [vmem:[%s2 + $0x340] sm:$0xff]
      %v435 = vld [vmem:[%s2 + $0x348] sm:$0xff]
      %v436 = vld [vmem:[%s2 + $0x350] sm:$0xff]
      %v437 = vld [vmem:[%s2 + $0x358] sm:$0xff]
      %v438 = vld [vmem:[%s2 + $0x360] sm:$0xff]
      %v439 = vld [vmem:[%s2 + $0x368] sm:$0xff]
      %v440 = vld [vmem:[%s2 + $0x370] sm:$0xff]
      %v441 = vld [vmem:[%s2 + $0x378] sm:$0xff]
      %v442 = vld [vmem:[%s2 + $0x380] sm:$0xff]
      %v443 = vld [vmem:[%s2 + $0x388] sm:$0xff]
      %v444 = vld [vmem:[%s2 + $0x390] sm:$0xff]
      %v445 = vld [vmem:[%s2 + $0x398] sm:$0xff]
      %v446 = vld [vmem:[%s2 + $0x3a0] sm:$0xff]
      %v447 = vld [vmem:[%s2 + $0x3a8] sm:$0xff]
      %v448 = vld [vmem:[%s2 + $0x3b0] sm:$0xff]
      %v449 = vld [vmem:[%s2 + $0x3b8] sm:$0xff]
      %v450 = vld [vmem:[%s2 + $0x3c0] sm:$0xff]
      %v451 = vld [vmem:[%s2 + $0x3c8] sm:$0xff]
      %v452 = vld [vmem:[%s2 + $0x3d0] sm:$0xff]
      %v453 = vld [vmem:[%s2 + $0x3d8] sm:$0xff]
      %v454 = vld [vmem:[%s2 + $0x3e0] sm:$0xff]
      %v455 = vld [vmem:[%s2 + $0x3e8] sm:$0xff]
      %v456 = vld [vmem:[%s2 + $0x3f0] sm:$0xff]
      %v457 = vld [vmem:[%s2 + $0x3f8] sm:$0xff]
      %v458 = vld [vmem:[%s2 + $0x400] sm:$0xff]
      %v459 = vld [vmem:[%s2 + $0x408] sm:$0xff]
      %v460 = vld [vmem:[%s2 + $0x410] sm:$0xff]
      %v461 = vld [vmem:[%s2 + $0x418] sm:$0xff]
      %v462 = vld [vmem:[%s2 + $0x420] sm:$0xff]
      %v463 = vld [vmem:[%s2 + $0x428] sm:$0xff]
      %v464 = vld [vmem:[%s2 + $0x430] sm:$0xff]
      %v465 = vld [vmem:[%s2 + $0x438] sm:$0xff]
      %v466 = vld [vmem:[%s2 + $0x440] sm:$0xff]
      %v467 = vld [vmem:[%s2 + $0x448] sm:$0xff]
      %v468 = vld [vmem:[%s2 + $0x450] sm:$0xff]
      %v469 = vld [vmem:[%s2 + $0x458] sm:$0xff]
      %v470 = vld [vmem:[%s2 + $0x460] sm:$0xff]
      %v471 = vld [vmem:[%s2 + $0x468] sm:$0xff]
      %v472 = vld [vmem:[%s2 + $0x470] sm:$0xff]
      %v473 = vld [vmem:[%s2 + $0x478] sm:$0xff]
      %v474 = vld [vmem:[%s2 + $0x480] sm:$0xff]
      %v475 = vld [vmem:[%s2 + $0x488] sm:$0xff]
      %v476 = vld [vmem:[%s2 + $0x490] sm:$0xff]
      %v477 = vld [vmem:[%s2 + $0x498] sm:$0xff]
      %v478 = vld [vmem:[%s2 + $0x4a0] sm:$0xff]
      %v479 = vld [vmem:[%s2 + $0x4a8] sm:$0xff]
      %v480 = vld [vmem:[%s2 + $0x4b0] sm:$0xff]
      %v481 = vld [vmem:[%s2 + $0x4b8] sm:$0xff]
      %v482 = vld [vmem:[%s2 + $0x4c0] sm:$0xff]
      %v483 = vld [vmem:[%s2 + $0x4c8] sm:$0xff]
      %v484 = vld [vmem:[%s2 + $0x4d0] sm:$0xff]
      %v485 = vld [vmem:[%s2 + $0x4d8] sm:$0xff]
      %v486 = vld [vmem:[%s2 + $0x4e0] sm:$0xff]
      %v487 = vld [vmem:[%s2 + $0x4e8] sm:$0xff]
      %v488 = vld [vmem:[%s2 + $0x4f0] sm:$0xff]
      %v489 = vld [vmem:[%s2 + $0x4f8] sm:$0xff]
      %v490 = vld [vmem:[%s2 + $0x500] sm:$0xff]
      %v491 = vld [vmem:[%s2 + $0x508] sm:$0xff]
      %v492 = vld [vmem:[%s2 + $0x510] sm:$0xff]
      %v493 = vld [vmem:[%s2 + $0x518] sm:$0xff]
      %v494 = vld [vmem:[%s2 + $0x520] sm:$0xff]
      %v495 = vld [vmem:[%s2 + $0x528] sm:$0xff]
      %v496 = vld [vmem:[%s2 + $0x530] sm:$0xff]
      %v497 = vld [vmem:[%s2 + $0x538] sm:$0xff]
      %v498 = vld [vmem:[%s2 + $0x540] sm:$0xff]
      %v499 = vld [vmem:[%s2 + $0x548] sm:$0xff]
      %v500 = vld [vmem:[%s2 + $0x550] sm:$0xff]
      %v501 = vld [vmem:[%s2 + $0x558] sm:$0xff]
      %v502 = vld [vmem:[%s2 + $0x560] sm:$0xff]
      %v503 = vld [vmem:[%s2 + $0x568] sm:$0xff]
      %v504 = vld [vmem:[%s2 + $0x570] sm:$0xff]
      %v505 = vld [vmem:[%s2 + $0x578] sm:$0xff]
      %v506 = vld [vmem:[%s2 + $0x580] sm:$0xff]
      %v507 = vld [vmem:[%s2 + $0x588] sm:$0xff]
      %v508 = vld [vmem:[%s2 + $0x590] sm:$0xff]
      %v509 = vld [vmem:[%s2 + $0x598] sm:$0xff]
      %v510 = vld [vmem:[%s2 + $0x5a0] sm:$0xff]
      %v511 = vld [vmem:[%s2 + $0x5a8] sm:$0xff]
      %v512 = vld [vmem:[%s2 + $0x5b0] sm:$0xff]
      %v513 = vld [vmem:[%s2 + $0x5b8] sm:$0xff]
      %v514 = vld [vmem:[%s2 + $0x5c0] sm:$0xff]
      %v515 = vld [vmem:[%s2 + $0x5c8] sm:$0xff]
      %v516 = vld [vmem:[%s2 + $0x5d0] sm:$0xff]
      %v517 = vld [vmem:[%s2 + $0x5d8] sm:$0xff]
      %v518 = vld [vmem:[%s2 + $0x5e0] sm:$0xff]
      %v519 = vld [vmem:[%s2 + $0x5e8] sm:$0xff]
      %v520 = vld [vmem:[%s2 + $0x5f0] sm:$0xff]
      %v521 = vld [vmem:[%s2 + $0x5f8] sm:$0xff]
      %v522 = vld [vmem:[%s2 + $0x600] sm:$0xff]
      %v523 = vld [vmem:[%s2 + $0x608] sm:$0xff]
      %v524 = vld [vmem:[%s2 + $0x610] sm:$0xff]
      %v525 = vld [vmem:[%s2 + $0x618] sm:$0xff]
      %v526 = vld [vmem:[%s2 + $0x620] sm:$0xff]
      %v527 = vld [vmem:[%s2 + $0x628] sm:$0xff]
      %v528 = vld [vmem:[%s2 + $0x630] sm:$0xff]
      %v529 = vld [vmem:[%s2 + $0x638] sm:$0xff]
      %v530 = vld [vmem:[%s2 + $0x640] sm:$0xff]
      %v531 = vld [vmem:[%s2 + $0x648] sm:$0xff]
      %v532 = vld [vmem:[%s2 + $0x650] sm:$0xff]
      %v533 = vld [vmem:[%s2 + $0x658] sm:$0xff]
      %v534 = vld [vmem:[%s2 + $0x660] sm:$0xff]
      %v535 = vld [vmem:[%s2 + $0x668] sm:$0xff]
      %v536 = vld [vmem:[%s2 + $0x670] sm:$0xff]
      %v537 = vld [vmem:[%s2 + $0x678] sm:$0xff]
      %v538 = vld [vmem:[%s2 + $0x680] sm:$0xff]
      %v539 = vld [vmem:[%s2 + $0x688] sm:$0xff]
      %v540 = vld [vmem:[%s2 + $0x690] sm:$0xff]
      %v541 = vld [vmem:[%s2 + $0x698] sm:$0xff]
      %v542 = vld [vmem:[%s2 + $0x6a0] sm:$0xff]
      %v543 = vld [vmem:[%s2 + $0x6a8] sm:$0xff]
      %v544 = vld [vmem:[%s2 + $0x6b0] sm:$0xff]
      %v545 = vld [vmem:[%s2 + $0x6b8] sm:$0xff]
      %v546 = vld [vmem:[%s2 + $0x6c0] sm:$0xff]
      %v547 = vld [vmem:[%s2 + $0x6c8] sm:$0xff]
      %v548 = vld [vmem:[%s2 + $0x6d0] sm:$0xff]
      %v549 = vld [vmem:[%s2 + $0x6d8] sm:$0xff]
      %v550 = vld [vmem:[%s2 + $0x6e0] sm:$0xff]
      %v551 = vld [vmem:[%s2 + $0x6e8] sm:$0xff]
      %v552 = vld [vmem:[%s2 + $0x6f0] sm:$0xff]
      %v553 = vld [vmem:[%s2 + $0x6f8] sm:$0xff]
      %v554 = vld [vmem:[%s2 + $0x700] sm:$0xff]
      %v555 = vld [vmem:[%s2 + $0x708] sm:$0xff]
      %v556 = vld [vmem:[%s2 + $0x710] sm:$0xff]
      %v557 = vld [vmem:[%s2 + $0x718] sm:$0xff]
      %v558 = vld [vmem:[%s2 + $0x720] sm:$0xff]
      %v559 = vld [vmem:[%s2 + $0x728] sm:$0xff]
      %v560 = vld [vmem:[%s2 + $0x730] sm:$0xff]
      %v561 = vld [vmem:[%s2 + $0x738] sm:$0xff]
      %v562 = vld [vmem:[%s2 + $0x740] sm:$0xff]
      %v563 = vld [vmem:[%s2 + $0x748] sm:$0xff]
      %v564 = vld [vmem:[%s2 + $0x750] sm:$0xff]
      %v565 = vld [vmem:[%s2 + $0x758] sm:$0xff]
      %v566 = vld [vmem:[%s2 + $0x760] sm:$0xff]
      %v567 = vld [vmem:[%s2 + $0x768] sm:$0xff]
      %v568 = vld [vmem:[%s2 + $0x770] sm:$0xff]
      %v569 = vld [vmem:[%s2 + $0x778] sm:$0xff]
      %v570 = vld [vmem:[%s2 + $0x780] sm:$0xff]
      %v571 = vld [vmem:[%s2 + $0x788] sm:$0xff]
      %v572 = vld [vmem:[%s2 + $0x790] sm:$0xff]
      %v573 = vld [vmem:[%s2 + $0x798] sm:$0xff]
      %v574 = vld [vmem:[%s2 + $0x7a0] sm:$0xff]
      %v575 = vld [vmem:[%s2 + $0x7a8] sm:$0xff]
      %v576 = vld [vmem:[%s2 + $0x7b0] sm:$0xff]
      %v577 = vld [vmem:[%s2 + $0x7b8] sm:$0xff]
      %v578 = vld [vmem:[%s2 + $0x7c0] sm:$0xff]
      %v579 = vld [vmem:[%s2 + $0x7c8] sm:$0xff]
      %v580 = vld [vmem:[%s2 + $0x7d0] sm:$0xff]
      %v581 = vld [vmem:[%s2 + $0x7d8] sm:$0xff]
      %v582 = vld [vmem:[%s2 + $0x7e0] sm:$0xff]
      %v583 = vld [vmem:[%s2 + $0x7e8] sm:$0xff]
      %v584 = vld [vmem:[%s2 + $0x7f0] sm:$0xff]
      %v585 = vld [vmem:[%s2 + $0x7f8] sm:$0xff]
      %587 = vst [vmem:[#allocation1] ss:$2 sm:$0xff] %v329
      %v588 = vld.sshfl [vmem:[#allocation1] sm:$0xff pattern:$0x75316420]
      %v589 = vld.sshfl [vmem:[#allocation1 + $0x8] sm:$0xff pattern:$0x75316420]
      %592 = vmatpush.msra.mxu0 %v450
      %593 = vmatpush.msra.mxu0 %v442
      %594 = vmatpush.msra.mxu0 %v434
      %595 = vmatpush.msra.mxu0 %v426
      %596 = vmatpush.msra.mxu0 %v418
      %597 = vmatpush.msra.mxu0 %v410
      %598 = vmatpush.msra.mxu0 %v402
      %599 = vmatpush.msra.mxu0 %v394
      %600 = vmatpush.msra.mxu0 %v386
      %601 = vmatpush.msra.mxu0 %v378
      %602 = vmatpush.msra.mxu0 %v370
      %603 = vmatpush.msra.mxu0 %v362
      %604 = vmatpush.msra.mxu0 %v354
      %605 = vmatpush.msra.mxu0 %v346
      %606 = vmatpush.msra.mxu0 %v338
      %607 = vmatpush.msra.mxu0 %v330
      %608 = vmatmul.f32.gmra.mxu0 %v588
      %v609 = vpop.f32.mrf.mxu0
      %v610 = vadd.f32 0.0, %v609
      %611 = vdwg.mxu0
      %612 = vmatpush.msra.mxu0 %v578
      %613 = vmatpush.msra.mxu0 %v570
      %614 = vmatpush.msra.mxu0 %v562
      %615 = vmatpush.msra.mxu0 %v554
      %616 = vmatpush.msra.mxu0 %v546
      %617 = vmatpush.msra.mxu0 %v538
      %618 = vmatpush.msra.mxu0 %v530
      %619 = vmatpush.msra.mxu0 %v522
      %620 = vmatpush.msra.mxu0 %v514
      %621 = vmatpush.msra.mxu0 %v506
      %622 = vmatpush.msra.mxu0 %v498
      %623 = vmatpush.msra.mxu0 %v490
      %624 = vmatpush.msra.mxu0 %v482
      %625 = vmatpush.msra.mxu0 %v474
      %626 = vmatpush.msra.mxu0 %v466
      %627 = vmatpush.msra.mxu0 %v458
      %628 = vmatmul.f32.gmra.mxu0 %v589
      %v629 = vpop.f32.mrf.mxu0
      %v630 = vadd.f32 %v610, %v629
      %631 = vdwg.mxu0
      %632 = vmatpush.msra.mxu0 %v451
      %633 = vmatpush.msra.mxu0 %v443
      %634 = vmatpush.msra.mxu0 %v435
      %635 = vmatpush.msra.mxu0 %v427
      %636 = vmatpush.msra.mxu0 %v419
      %637 = vmatpush.msra.mxu0 %v411
      %638 = vmatpush.msra.mxu0 %v403
      %639 = vmatpush.msra.mxu0 %v395
      %640 = vmatpush.msra.mxu0 %v387
      %641 = vmatpush.msra.mxu0 %v379
      %642 = vmatpush.msra.mxu0 %v371
      %643 = vmatpush.msra.mxu0 %v363
      %644 = vmatpush.msra.mxu0 %v355
      %645 = vmatpush.msra.mxu0 %v347
      %646 = vmatpush.msra.mxu0 %v339
      %647 = vmatpush.msra.mxu0 %v331
      %648 = vmatmul.f32.gmra.mxu0 %v588
      %v649 = vpop.f32.mrf.mxu0
      %v650 = vadd.f32 0.0, %v649
      %651 = vdwg.mxu0
      %652 = vmatpush.msra.mxu0 %v579
      %653 = vmatpush.msra.mxu0 %v571
      %654 = vmatpush.msra.mxu0 %v563
      %655 = vmatpush.msra.mxu0 %v555
      %656 = vmatpush.msra.mxu0 %v547
      %657 = vmatpush.msra.mxu0 %v539
      %658 = vmatpush.msra.mxu0 %v531
      %659 = vmatpush.msra.mxu0 %v523
      %660 = vmatpush.msra.mxu0 %v515
      %661 = vmatpush.msra.mxu0 %v507
      %662 = vmatpush.msra.mxu0 %v499
      %663 = vmatpush.msra.mxu0 %v491
      %664 = vmatpush.msra.mxu0 %v483
      %665 = vmatpush.msra.mxu0 %v475
      %666 = vmatpush.msra.mxu0 %v467
      %667 = vmatpush.msra.mxu0 %v459
      %668 = vmatmul.f32.gmra.mxu0 %v589
      %v669 = vpop.f32.mrf.mxu0
      %v670 = vadd.f32 %v650, %v669
      %671 = vdwg.mxu0
      %672 = vmatpush.msra.mxu0 %v452
      %673 = vmatpush.msra.mxu0 %v444
      %674 = vmatpush.msra.mxu0 %v436
      %675 = vmatpush.msra.mxu0 %v428
      %676 = vmatpush.msra.mxu0 %v420
      %677 = vmatpush.msra.mxu0 %v412
      %678 = vmatpush.msra.mxu0 %v404
      %679 = vmatpush.msra.mxu0 %v396
      %680 = vmatpush.msra.mxu0 %v388
      %681 = vmatpush.msra.mxu0 %v380
      %682 = vmatpush.msra.mxu0 %v372
      %683 = vmatpush.msra.mxu0 %v364
      %684 = vmatpush.msra.mxu0 %v356
      %685 = vmatpush.msra.mxu0 %v348
      %686 = vmatpush.msra.mxu0 %v340
      %687 = vmatpush.msra.mxu0 %v332
      %688 = vmatmul.f32.gmra.mxu0 %v588
      %v689 = vpop.f32.mrf.mxu0
      %v690 = vadd.f32 0.0, %v689
      %691 = vdwg.mxu0
      %692 = vmatpush.msra.mxu0 %v580
      %693 = vmatpush.msra.mxu0 %v572
      %694 = vmatpush.msra.mxu0 %v564
      %695 = vmatpush.msra.mxu0 %v556
      %696 = vmatpush.msra.mxu0 %v548
      %697 = vmatpush.msra.mxu0 %v540
      %698 = vmatpush.msra.mxu0 %v532
      %699 = vmatpush.msra.mxu0 %v524
      %700 = vmatpush.msra.mxu0 %v516
      %701 = vmatpush.msra.mxu0 %v508
      %702 = vmatpush.msra.mxu0 %v500
      %703 = vmatpush.msra.mxu0 %v492
      %704 = vmatpush.msra.mxu0 %v484
      %705 = vmatpush.msra.mxu0 %v476
      %706 = vmatpush.msra.mxu0 %v468
      %707 = vmatpush.msra.mxu0 %v460
      %708 = vmatmul.f32.gmra.mxu0 %v589
      %v709 = vpop.f32.mrf.mxu0
      %v710 = vadd.f32 %v690, %v709
      %711 = vdwg.mxu0
      %712 = vmatpush.msra.mxu0 %v453
      %713 = vmatpush.msra.mxu0 %v445
      %714 = vmatpush.msra.mxu0 %v437
      %715 = vmatpush.msra.mxu0 %v429
      %716 = vmatpush.msra.mxu0 %v421
      %717 = vmatpush.msra.mxu0 %v413
      %718 = vmatpush.msra.mxu0 %v405
      %719 = vmatpush.msra.mxu0 %v397
      %720 = vmatpush.msra.mxu0 %v389
      %721 = vmatpush.msra.mxu0 %v381
      %722 = vmatpush.msra.mxu0 %v373
      %723 = vmatpush.msra.mxu0 %v365
      %724 = vmatpush.msra.mxu0 %v357
      %725 = vmatpush.msra.mxu0 %v349
      %726 = vmatpush.msra.mxu0 %v341
      %727 = vmatpush.msra.mxu0 %v333
      %728 = vmatmul.f32.gmra.mxu0 %v588
      %v729 = vpop.f32.mrf.mxu0
      %v730 = vadd.f32 0.0, %v729
      %731 = vdwg.mxu0
      %732 = vmatpush.msra.mxu0 %v581
      %733 = vmatpush.msra.mxu0 %v573
      %734 = vmatpush.msra.mxu0 %v565
      %735 = vmatpush.msra.mxu0 %v557
      %736 = vmatpush.msra.mxu0 %v549
      %737 = vmatpush.msra.mxu0 %v541
      %738 = vmatpush.msra.mxu0 %v533
      %739 = vmatpush.msra.mxu0 %v525
      %740 = vmatpush.msra.mxu0 %v517
      %741 = vmatpush.msra.mxu0 %v509
      %742 = vmatpush.msra.mxu0 %v501
      %743 = vmatpush.msra.mxu0 %v493
      %744 = vmatpush.msra.mxu0 %v485
      %745 = vmatpush.msra.mxu0 %v477
      %746 = vmatpush.msra.mxu0 %v469
      %747 = vmatpush.msra.mxu0 %v461
      %748 = vmatmul.f32.gmra.mxu0 %v589
      %v749 = vpop.f32.mrf.mxu0
      %v750 = vadd.f32 %v730, %v749
      %751 = vdwg.mxu0
      %752 = vmatpush.msra.mxu0 %v454
      %753 = vmatpush.msra.mxu0 %v446
      %754 = vmatpush.msra.mxu0 %v438
      %755 = vmatpush.msra.mxu0 %v430
      %756 = vmatpush.msra.mxu0 %v422
      %757 = vmatpush.msra.mxu0 %v414
      %758 = vmatpush.msra.mxu0 %v406
      %759 = vmatpush.msra.mxu0 %v398
      %760 = vmatpush.msra.mxu0 %v390
      %761 = vmatpush.msra.mxu0 %v382
      %762 = vmatpush.msra.mxu0 %v374
      %763 = vmatpush.msra.mxu0 %v366
      %764 = vmatpush.msra.mxu0 %v358
      %765 = vmatpush.msra.mxu0 %v350
      %766 = vmatpush.msra.mxu0 %v342
      %767 = vmatpush.msra.mxu0 %v334
      %768 = vmatmul.f32.gmra.mxu0 %v588
      %v769 = vpop.f32.mrf.mxu0
      %v770 = vadd.f32 0.0, %v769
      %771 = vdwg.mxu0
      %772 = vmatpush.msra.mxu0 %v582
      %773 = vmatpush.msra.mxu0 %v574
      %774 = vmatpush.msra.mxu0 %v566
      %775 = vmatpush.msra.mxu0 %v558
      %776 = vmatpush.msra.mxu0 %v550
      %777 = vmatpush.msra.mxu0 %v542
      %778 = vmatpush.msra.mxu0 %v534
      %779 = vmatpush.msra.mxu0 %v526
      %780 = vmatpush.msra.mxu0 %v518
      %781 = vmatpush.msra.mxu0 %v510
      %782 = vmatpush.msra.mxu0 %v502
      %783 = vmatpush.msra.mxu0 %v494
      %784 = vmatpush.msra.mxu0 %v486
      %785 = vmatpush.msra.mxu0 %v478
      %786 = vmatpush.msra.mxu0 %v470
      %787 = vmatpush.msra.mxu0 %v462
      %788 = vmatmul.f32.gmra.mxu0 %v589
      %v789 = vpop.f32.mrf.mxu0
      %v790 = vadd.f32 %v770, %v789
      %791 = vdwg.mxu0
      %792 = vmatpush.msra.mxu0 %v455
      %793 = vmatpush.msra.mxu0 %v447
      %794 = vmatpush.msra.mxu0 %v439
      %795 = vmatpush.msra.mxu0 %v431
      %796 = vmatpush.msra.mxu0 %v423
      %797 = vmatpush.msra.mxu0 %v415
      %798 = vmatpush.msra.mxu0 %v407
      %799 = vmatpush.msra.mxu0 %v399
      %800 = vmatpush.msra.mxu0 %v391
      %801 = vmatpush.msra.mxu0 %v383
      %802 = vmatpush.msra.mxu0 %v375
      %803 = vmatpush.msra.mxu0 %v367
      %804 = vmatpush.msra.mxu0 %v359
      %805 = vmatpush.msra.mxu0 %v351
      %806 = vmatpush.msra.mxu0 %v343
      %807 = vmatpush.msra.mxu0 %v335
      %808 = vmatmul.f32.gmra.mxu0 %v588
      %v809 = vpop.f32.mrf.mxu0
      %v810 = vadd.f32 0.0, %v809
      %811 = vdwg.mxu0
      %812 = vmatpush.msra.mxu0 %v583
      %813 = vmatpush.msra.mxu0 %v575
      %814 = vmatpush.msra.mxu0 %v567
      %815 = vmatpush.msra.mxu0 %v559
      %816 = vmatpush.msra.mxu0 %v551
      %817 = vmatpush.msra.mxu0 %v543
      %818 = vmatpush.msra.mxu0 %v535
      %819 = vmatpush.msra.mxu0 %v527
      %820 = vmatpush.msra.mxu0 %v519
      %821 = vmatpush.msra.mxu0 %v511
      %822 = vmatpush.msra.mxu0 %v503
      %823 = vmatpush.msra.mxu0 %v495
      %824 = vmatpush.msra.mxu0 %v487
      %825 = vmatpush.msra.mxu0 %v479
      %826 = vmatpush.msra.mxu0 %v471
      %827 = vmatpush.msra.mxu0 %v463
      %828 = vmatmul.f32.gmra.mxu0 %v589
      %v829 = vpop.f32.mrf.mxu0
      %v830 = vadd.f32 %v810, %v829
      %831 = vdwg.mxu0
      %832 = vmatpush.msra.mxu0 %v456
      %833 = vmatpush.msra.mxu0 %v448
      %834 = vmatpush.msra.mxu0 %v440
      %835 = vmatpush.msra.mxu0 %v432
      %836 = vmatpush.msra.mxu0 %v424
      %837 = vmatpush.msra.mxu0 %v416
      %838 = vmatpush.msra.mxu0 %v408
      %839 = vmatpush.msra.mxu0 %v400
      %840 = vmatpush.msra.mxu0 %v392
      %841 = vmatpush.msra.mxu0 %v384
      %842 = vmatpush.msra.mxu0 %v376
      %843 = vmatpush.msra.mxu0 %v368
      %844 = vmatpush.msra.mxu0 %v360
      %845 = vmatpush.msra.mxu0 %v352
      %846 = vmatpush.msra.mxu0 %v344
      %847 = vmatpush.msra.mxu0 %v336
      %848 = vmatmul.f32.gmra.mxu0 %v588
      %v849 = vpop.f32.mrf.mxu0
      %v850 = vadd.f32 0.0, %v849
      %851 = vdwg.mxu0
      %852 = vmatpush.msra.mxu0 %v584
      %853 = vmatpush.msra.mxu0 %v576
      %854 = vmatpush.msra.mxu0 %v568
      %855 = vmatpush.msra.mxu0 %v560
      %856 = vmatpush.msra.mxu0 %v552
      %857 = vmatpush.msra.mxu0 %v544
      %858 = vmatpush.msra.mxu0 %v536
      %859 = vmatpush.msra.mxu0 %v528
      %860 = vmatpush.msra.mxu0 %v520
      %861 = vmatpush.msra.mxu0 %v512
      %862 = vmatpush.msra.mxu0 %v504
      %863 = vmatpush.msra.mxu0 %v496
      %864 = vmatpush.msra.mxu0 %v488
      %865 = vmatpush.msra.mxu0 %v480
      %866 = vmatpush.msra.mxu0 %v472
      %867 = vmatpush.msra.mxu0 %v464
      %868 = vmatmul.f32.gmra.mxu0 %v589
      %v869 = vpop.f32.mrf.mxu0
      %v870 = vadd.f32 %v850, %v869
      %871 = vdwg.mxu0
      %872 = vmatpush.msra.mxu0 %v457
      %873 = vmatpush.msra.mxu0 %v449
      %874 = vmatpush.msra.mxu0 %v441
      %875 = vmatpush.msra.mxu0 %v433
      %876 = vmatpush.msra.mxu0 %v425
      %877 = vmatpush.msra.mxu0 %v417
      %878 = vmatpush.msra.mxu0 %v409
      %879 = vmatpush.msra.mxu0 %v401
      %880 = vmatpush.msra.mxu0 %v393
      %881 = vmatpush.msra.mxu0 %v385
      %882 = vmatpush.msra.mxu0 %v377
      %883 = vmatpush.msra.mxu0 %v369
      %884 = vmatpush.msra.mxu0 %v361
      %885 = vmatpush.msra.mxu0 %v353
      %886 = vmatpush.msra.mxu0 %v345
      %887 = vmatpush.msra.mxu0 %v337
      %888 = vmatmul.f32.gmra.mxu0 %v588
      %v889 = vpop.f32.mrf.mxu0
      %v890 = vadd.f32 0.0, %v889
      %891 = vdwg.mxu0
      %892 = vmatpush.msra.mxu0 %v585
      %893 = vmatpush.msra.mxu0 %v577
      %894 = vmatpush.msra.mxu0 %v569
      %895 = vmatpush.msra.mxu0 %v561
      %896 = vmatpush.msra.mxu0 %v553
      %897 = vmatpush.msra.mxu0 %v545
      %898 = vmatpush.msra.mxu0 %v537
      %899 = vmatpush.msra.mxu0 %v529
      %900 = vmatpush.msra.mxu0 %v521
      %901 = vmatpush.msra.mxu0 %v513
      %902 = vmatpush.msra.mxu0 %v505
      %903 = vmatpush.msra.mxu0 %v497
      %904 = vmatpush.msra.mxu0 %v489
      %905 = vmatpush.msra.mxu0 %v481
      %906 = vmatpush.msra.mxu0 %v473
      %907 = vmatpush.msra.mxu0 %v465
      %908 = vmatmul.f32.gmra.mxu0 %v589
      %v909 = vpop.f32.mrf.mxu0
      %v910 = vadd.f32 %v890, %v909
      %911 = vdwg.mxu0
      %v912 = vld [vmem:[%s320] sm:$0xff]
      %v913 = vld [vmem:[%s320 + $0x8] sm:$0xff]
      %v914 = vld [vmem:[%s320 + $0x10] sm:$0xff]
      %v915 = vld [vmem:[%s320 + $0x18] sm:$0xff]
      %920 = vst [vmem:[#allocation1] ss:$2 sm:$0xff] %v912
      %s921 = scalar_lea.vmem [#allocation1], 16
      %922 = vst [vmem:[%s921] ss:$2 sm:$0xff] %v913
      %s923 = scalar_lea.vmem [#allocation1], 32
      %924 = vst [vmem:[%s923] ss:$2 sm:$0xff] %v914
      %s925 = scalar_lea.vmem [#allocation1], 48
      %926 = vst [vmem:[%s925] ss:$2 sm:$0xff] %v915
      %v927 = vld.sshfl [vmem:[#allocation1] sm:$0xff pattern:$0x75316420]
      %v928 = vld.sshfl [vmem:[#allocation1 + $0x8] sm:$0xff pattern:$0x75316420]
      %v929 = vld.sshfl [vmem:[#allocation1 + $0x10] sm:$0xff pattern:$0x75316420]
      %v930 = vld.sshfl [vmem:[#allocation1 + $0x18] sm:$0xff pattern:$0x75316420]
      %v931 = vld.sshfl [vmem:[#allocation1 + $0x20] sm:$0xff pattern:$0x75316420]
      %v932 = vld.sshfl [vmem:[#allocation1 + $0x28] sm:$0xff pattern:$0x75316420]
      %v933 = vld.sshfl [vmem:[#allocation1 + $0x30] sm:$0xff pattern:$0x75316420]
      %v934 = vld.sshfl [vmem:[#allocation1 + $0x38] sm:$0xff pattern:$0x75316420]
      %v951 = vrot.slane %v630, 4
      %v952 = vrot.slane %v670, 4
      %v953 = vrot.slane %v710, 4
      %v954 = vrot.slane %v750, 4
      %v955 = vrot.slane %v790, 4
      %v956 = vrot.slane %v830, 4
      %v957 = vrot.slane %v870, 4
      %v958 = vrot.slane %v910, 4
      %vm967 = vcmask 1043456
      %v968 = vsel %vm967, %v927, %v951
      %v969 = vsel %vm967, %v928, %v952
      %v970 = vsel %vm967, %v929, %v953
      %v971 = vsel %vm967, %v930, %v954
      %v972 = vsel %vm967, %v931, %v955
      %v973 = vsel %vm967, %v932, %v956
      %v974 = vsel %vm967, %v933, %v957
      %v975 = vsel %vm967, %v934, %v958
      %976 = vst [vmem:[#allocation2 + $0x8] sm:$0xff] %v968
      %977 = vst [vmem:[#allocation2 + $0x10] sm:$0xff] %v969
      %978 = vst [vmem:[#allocation2 + $0x18] sm:$0xff] %v970
      %979 = vst [vmem:[#allocation2 + $0x20] sm:$0xff] %v971
      %980 = vst [vmem:[#allocation2 + $0x28] sm:$0xff] %v972
      %981 = vst [vmem:[#allocation2 + $0x30] sm:$0xff] %v973
      %982 = vst [vmem:[#allocation2 + $0x38] sm:$0xff] %v974
      %983 = vst [vmem:[#allocation2 + $0x40] sm:$0xff] %v975
      %v984 = vld [vmem:[#allocation2] sm:$0xff]
      %v985 = vld [vmem:[#allocation2 + $0x8] sm:$0xff]
      %v986 = vld [vmem:[#allocation2 + $0x10] sm:$0xff]
      %v987 = vld [vmem:[#allocation2 + $0x18] sm:$0xff]
      %v988 = vld [vmem:[#allocation2 + $0x20] sm:$0xff]
      %v989 = vld [vmem:[#allocation2 + $0x28] sm:$0xff]
      %v990 = vld [vmem:[#allocation2 + $0x30] sm:$0xff]
      %v991 = vld [vmem:[#allocation2 + $0x38] sm:$0xff]
      %v992 = vld [vmem:[#allocation2 + $0x40] sm:$0xff]
      %v993 = vld [vmem:[%s3] ss:$8 sm:$0xf]
      %v994 = vld [vmem:[%s3] ss:$8 sm:$0xf0]
      %v995 = vor.u32 %v993, %v994
      %v997 = vperm.slane %v995, 0
      %v998 = vperm.slane %v995, 1
      %v999 = vperm.slane %v995, 2
      %v1000 = vperm.slane %v995, 3
      %v1001 = vperm.slane %v995, 4
      %v1002 = vperm.slane %v995, 5
      %v1003 = vperm.slane %v995, 6
      %v1004 = vperm.slane %v995, 7
      %1005 = vrot.lane.b32.xlu0 %v997, 60
      %v1006 = vpop.permute.xlu0 %1005
      %1007 = vrot.lane.b32.xlu0 %v998, 60
      %v1008 = vpop.permute.xlu0 %1007
      %1009 = vrot.lane.b32.xlu0 %v999, 60
      %v1010 = vpop.permute.xlu0 %1009
      %1011 = vrot.lane.b32.xlu0 %v1000, 60
      %v1012 = vpop.permute.xlu0 %1011
      %1013 = vrot.lane.b32.xlu0 %v1001, 60
      %v1014 = vpop.permute.xlu0 %1013
      %1015 = vrot.lane.b32.xlu0 %v1002, 60
      %v1016 = vpop.permute.xlu0 %1015
      %1017 = vrot.lane.b32.xlu0 %v1003, 60
      %v1018 = vpop.permute.xlu0 %1017
      %1019 = vrot.lane.b32.xlu0 %v1004, 60
      %v1020 = vpop.permute.xlu0 %1019
      %vm1021 = vcmask 490496
      %v1022 = vsel %vm1021, %v1006, %v1008
      %v1023 = vsel %vm1021, %v1008, %v1010
      %v1024 = vsel %vm1021, %v1010, %v1012
      %v1025 = vsel %vm1021, %v1012, %v1014
      %v1026 = vsel %vm1021, %v1014, %v1016
      %v1027 = vsel %vm1021, %v1016, %v1018
      %v1028 = vsel %vm1021, %v1018, %v1020
      %v1038 = vmul.f32 %v984, %v1006
      %v1039 = vmul.f32 %v985, %v1022
      %v1040 = vmul.f32 %v986, %v1023
      %v1041 = vmul.f32 %v987, %v1024
      %v1042 = vmul.f32 %v988, %v1025
      %v1043 = vmul.f32 %v989, %v1026
      %v1044 = vmul.f32 %v990, %v1027
      %v1045 = vmul.f32 %v991, %v1028
      %v1046 = vmul.f32 %v992, %v1020
      %s1047 = scalar_lea.vmem %s3, 1
      %v1048 = vld [vmem:[%s1047] ss:$8 sm:$0xf]
      %v1049 = vld [vmem:[%s1047] ss:$8 sm:$0xf0]
      %v1050 = vor.u32 %v1048, %v1049
      %v1052 = vperm.slane %v1050, 0
      %v1053 = vperm.slane %v1050, 1
      %v1054 = vperm.slane %v1050, 2
      %v1055 = vperm.slane %v1050, 3
      %v1056 = vperm.slane %v1050, 4
      %v1057 = vperm.slane %v1050, 5
      %v1058 = vperm.slane %v1050, 6
      %v1059 = vperm.slane %v1050, 7
      %1060 = vrot.lane.b32.xlu0 %v1052, 64
      %v1061 = vpop.permute.xlu0 %1060
      %1062 = vrot.lane.b32.xlu0 %v1053, 64
      %v1063 = vpop.permute.xlu0 %1062
      %1064 = vrot.lane.b32.xlu0 %v1054, 64
      %v1065 = vpop.permute.xlu0 %1064
      %1066 = vrot.lane.b32.xlu0 %v1055, 64
      %v1067 = vpop.permute.xlu0 %1066
      %1068 = vrot.lane.b32.xlu0 %v1056, 64
      %v1069 = vpop.permute.xlu0 %1068
      %1070 = vrot.lane.b32.xlu0 %v1057, 64
      %v1071 = vpop.permute.xlu0 %1070
      %1072 = vrot.lane.b32.xlu0 %v1058, 64
      %v1073 = vpop.permute.xlu0 %1072
      %1074 = vrot.lane.b32.xlu0 %v1059, 64
      %v1075 = vpop.permute.xlu0 %1074
      %vm1076 = vcmask 523264
      %v1077 = vsel %vm1076, %v1061, %v1063
      %v1078 = vsel %vm1076, %v1063, %v1065
      %v1079 = vsel %vm1076, %v1065, %v1067
      %v1080 = vsel %vm1076, %v1067, %v1069
      %v1081 = vsel %vm1076, %v1069, %v1071
      %v1082 = vsel %vm1076, %v1071, %v1073
      %v1083 = vsel %vm1076, %v1073, %v1075
      %v1093 = vmul.f32 %v984, %v1061
      %v1094 = vmul.f32 %v985, %v1077
      %v1095 = vmul.f32 %v986, %v1078
      %v1096 = vmul.f32 %v987, %v1079
      %v1097 = vmul.f32 %v988, %v1080
      %v1098 = vmul.f32 %v989, %v1081
      %v1099 = vmul.f32 %v990, %v1082
      %v1100 = vmul.f32 %v991, %v1083
      %v1101 = vmul.f32 %v992, %v1075
      %s1102 = scalar_lea.vmem %s3, 2
      %v1103 = vld [vmem:[%s1102] ss:$8 sm:$0xf]
      %v1104 = vld [vmem:[%s1102] ss:$8 sm:$0xf0]
      %v1105 = vor.u32 %v1103, %v1104
      %v1107 = vperm.slane %v1105, 0
      %v1108 = vperm.slane %v1105, 1
      %v1109 = vperm.slane %v1105, 2
      %v1110 = vperm.slane %v1105, 3
      %v1111 = vperm.slane %v1105, 4
      %v1112 = vperm.slane %v1105, 5
      %v1113 = vperm.slane %v1105, 6
      %v1114 = vperm.slane %v1105, 7
      %1115 = vrot.lane.b32.xlu0 %v1107, 68
      %v1116 = vpop.permute.xlu0 %1115
      %1117 = vrot.lane.b32.xlu0 %v1108, 68
      %v1118 = vpop.permute.xlu0 %1117
      %1119 = vrot.lane.b32.xlu0 %v1109, 68
      %v1120 = vpop.permute.xlu0 %1119
      %1121 = vrot.lane.b32.xlu0 %v1110, 68
      %v1122 = vpop.permute.xlu0 %1121
      %1123 = vrot.lane.b32.xlu0 %v1111, 68
      %v1124 = vpop.permute.xlu0 %1123
      %1125 = vrot.lane.b32.xlu0 %v1112, 68
      %v1126 = vpop.permute.xlu0 %1125
      %1127 = vrot.lane.b32.xlu0 %v1113, 68
      %v1128 = vpop.permute.xlu0 %1127
      %1129 = vrot.lane.b32.xlu0 %v1114, 68
      %v1130 = vpop.permute.xlu0 %1129
      %vm1131 = vcmask 556032
      %v1132 = vsel %vm1131, %v1116, %v1118
      %v1133 = vsel %vm1131, %v1118, %v1120
      %v1134 = vsel %vm1131, %v1120, %v1122
      %v1135 = vsel %vm1131, %v1122, %v1124
      %v1136 = vsel %vm1131, %v1124, %v1126
      %v1137 = vsel %vm1131, %v1126, %v1128
      %v1138 = vsel %vm1131, %v1128, %v1130
      %v1148 = vmul.f32 %v984, %v1116
      %v1149 = vmul.f32 %v985, %v1132
      %v1150 = vmul.f32 %v986, %v1133
      %v1151 = vmul.f32 %v987, %v1134
      %v1152 = vmul.f32 %v988, %v1135
      %v1153 = vmul.f32 %v989, %v1136
      %v1154 = vmul.f32 %v990, %v1137
      %v1155 = vmul.f32 %v991, %v1138
      %v1156 = vmul.f32 %v992, %v1130
      %s1157 = scalar_lea.vmem %s3, 3
      %v1158 = vld [vmem:[%s1157] ss:$8 sm:$0xf]
      %v1159 = vld [vmem:[%s1157] ss:$8 sm:$0xf0]
      %v1160 = vor.u32 %v1158, %v1159
      %v1162 = vperm.slane %v1160, 0
      %v1163 = vperm.slane %v1160, 1
      %v1164 = vperm.slane %v1160, 2
      %v1165 = vperm.slane %v1160, 3
      %v1166 = vperm.slane %v1160, 4
      %v1167 = vperm.slane %v1160, 5
      %v1168 = vperm.slane %v1160, 6
      %v1169 = vperm.slane %v1160, 7
      %1170 = vrot.lane.b32.xlu0 %v1162, 124
      %v1171 = vpop.permute.xlu0 %1170
      %1172 = vrot.lane.b32.xlu0 %v1163, 124
      %v1173 = vpop.permute.xlu0 %1172
      %1174 = vrot.lane.b32.xlu0 %v1164, 124
      %v1175 = vpop.permute.xlu0 %1174
      %1176 = vrot.lane.b32.xlu0 %v1165, 124
      %v1177 = vpop.permute.xlu0 %1176
      %1178 = vrot.lane.b32.xlu0 %v1166, 124
      %v1179 = vpop.permute.xlu0 %1178
      %1180 = vrot.lane.b32.xlu0 %v1167, 124
      %v1181 = vpop.permute.xlu0 %1180
      %1182 = vrot.lane.b32.xlu0 %v1168, 124
      %v1183 = vpop.permute.xlu0 %1182
      %1184 = vrot.lane.b32.xlu0 %v1169, 124
      %v1185 = vpop.permute.xlu0 %1184
      %vm1186 = vcmask 1014784
      %v1187 = vsel %vm1186, %v1171, %v1173
      %v1188 = vsel %vm1186, %v1173, %v1175
      %v1189 = vsel %vm1186, %v1175, %v1177
      %v1190 = vsel %vm1186, %v1177, %v1179
      %v1191 = vsel %vm1186, %v1179, %v1181
      %v1192 = vsel %vm1186, %v1181, %v1183
      %v1193 = vsel %vm1186, %v1183, %v1185
      %v1203 = vmul.f32 %v984, %v1171
      %v1204 = vmul.f32 %v985, %v1187
      %v1205 = vmul.f32 %v986, %v1188
      %v1206 = vmul.f32 %v987, %v1189
      %v1207 = vmul.f32 %v988, %v1190
      %v1208 = vmul.f32 %v989, %v1191
      %v1209 = vmul.f32 %v990, %v1192
      %v1210 = vmul.f32 %v991, %v1193
      %v1211 = vmul.f32 %v992, %v1185
      %v1212 = vld [vmem:[#allocation2 + $0x8] sm:$0xff]
      %v1213 = vld [vmem:[#allocation2 + $0x10] sm:$0xff]
      %v1214 = vld [vmem:[#allocation2 + $0x18] sm:$0xff]
      %v1215 = vld [vmem:[#allocation2 + $0x20] sm:$0xff]
      %v1216 = vld [vmem:[#allocation2 + $0x28] sm:$0xff]
      %v1217 = vld [vmem:[#allocation2 + $0x30] sm:$0xff]
      %v1218 = vld [vmem:[#allocation2 + $0x38] sm:$0xff]
      %v1219 = vld [vmem:[#allocation2 + $0x40] sm:$0xff]
      %v1220 = vld [vmem:[#allocation2 + $0x48] sm:$0xff]
      %s1221 = scalar_lea.vmem %s3, 5
      %v1222 = vld [vmem:[%s1221] ss:$8 sm:$0xf]
      %v1223 = vld [vmem:[%s1221] ss:$8 sm:$0xf0]
      %v1224 = vor.u32 %v1222, %v1223
      %v1226 = vperm.slane %v1224, 0
      %v1227 = vperm.slane %v1224, 1
      %v1228 = vperm.slane %v1224, 2
      %v1229 = vperm.slane %v1224, 3
      %v1230 = vperm.slane %v1224, 4
      %v1231 = vperm.slane %v1224, 5
      %v1232 = vperm.slane %v1224, 6
      %v1233 = vperm.slane %v1224, 7
      %1234 = vrot.lane.b32.xlu0 %v1226, 4
      %v1235 = vpop.permute.xlu0 %1234
      %1236 = vrot.lane.b32.xlu0 %v1227, 4
      %v1237 = vpop.permute.xlu0 %1236
      %1238 = vrot.lane.b32.xlu0 %v1228, 4
      %v1239 = vpop.permute.xlu0 %1238
      %1240 = vrot.lane.b32.xlu0 %v1229, 4
      %v1241 = vpop.permute.xlu0 %1240
      %1242 = vrot.lane.b32.xlu0 %v1230, 4
      %v1243 = vpop.permute.xlu0 %1242
      %1244 = vrot.lane.b32.xlu0 %v1231, 4
      %v1245 = vpop.permute.xlu0 %1244
      %1246 = vrot.lane.b32.xlu0 %v1232, 4
      %v1247 = vpop.permute.xlu0 %1246
      %1248 = vrot.lane.b32.xlu0 %v1233, 4
      %v1249 = vpop.permute.xlu0 %1248
      %vm1250 = vcmask 31744
      %v1251 = vsel %vm1250, %v1235, %v1237
      %v1252 = vsel %vm1250, %v1237, %v1239
      %v1253 = vsel %vm1250, %v1239, %v1241
      %v1254 = vsel %vm1250, %v1241, %v1243
      %v1255 = vsel %vm1250, %v1243, %v1245
      %v1256 = vsel %vm1250, %v1245, %v1247
      %v1257 = vsel %vm1250, %v1247, %v1249
      %v1267 = vmul.f32 %v1212, %v1235
      %v1268 = vmul.f32 %v1213, %v1251
      %v1269 = vmul.f32 %v1214, %v1252
      %v1270 = vmul.f32 %v1215, %v1253
      %v1271 = vmul.f32 %v1216, %v1254
      %v1272 = vmul.f32 %v1217, %v1255
      %v1273 = vmul.f32 %v1218, %v1256
      %v1274 = vmul.f32 %v1219, %v1257
      %v1275 = vmul.f32 %v1220, %v1249
      %s1276 = scalar_lea.vmem %s3, 6
      %v1277 = vld [vmem:[%s1276] ss:$8 sm:$0xf]
      %v1278 = vld [vmem:[%s1276] ss:$8 sm:$0xf0]
      %v1279 = vor.u32 %v1277, %v1278
      %v1281 = vperm.slane %v1279, 0
      %v1282 = vperm.slane %v1279, 1
      %v1283 = vperm.slane %v1279, 2
      %v1284 = vperm.slane %v1279, 3
      %v1285 = vperm.slane %v1279, 4
      %v1286 = vperm.slane %v1279, 5
      %v1287 = vperm.slane %v1279, 6
      %v1288 = vperm.slane %v1279, 7
      %1289 = vrot.lane.b32.xlu0 %v1281, 60
      %v1290 = vpop.permute.xlu0 %1289
      %1291 = vrot.lane.b32.xlu0 %v1282, 60
      %v1292 = vpop.permute.xlu0 %1291
      %1293 = vrot.lane.b32.xlu0 %v1283, 60
      %v1294 = vpop.permute.xlu0 %1293
      %1295 = vrot.lane.b32.xlu0 %v1284, 60
      %v1296 = vpop.permute.xlu0 %1295
      %1297 = vrot.lane.b32.xlu0 %v1285, 60
      %v1298 = vpop.permute.xlu0 %1297
      %1299 = vrot.lane.b32.xlu0 %v1286, 60
      %v1300 = vpop.permute.xlu0 %1299
      %1301 = vrot.lane.b32.xlu0 %v1287, 60
      %v1302 = vpop.permute.xlu0 %1301
      %1303 = vrot.lane.b32.xlu0 %v1288, 60
      %v1304 = vpop.permute.xlu0 %1303
      %v1305 = vsel %vm1021, %v1290, %v1292
      %v1306 = vsel %vm1021, %v1292, %v1294
      %v1307 = vsel %vm1021, %v1294, %v1296
      %v1308 = vsel %vm1021, %v1296, %v1298
      %v1309 = vsel %vm1021, %v1298, %v1300
      %v1310 = vsel %vm1021, %v1300, %v1302
      %v1311 = vsel %vm1021, %v1302, %v1304
      %v1321 = vmul.f32 %v1212, %v1290
      %v1322 = vmul.f32 %v1213, %v1305
      %v1323 = vmul.f32 %v1214, %v1306
      %v1324 = vmul.f32 %v1215, %v1307
      %v1325 = vmul.f32 %v1216, %v1308
      %v1326 = vmul.f32 %v1217, %v1309
      %v1327 = vmul.f32 %v1218, %v1310
      %v1328 = vmul.f32 %v1219, %v1311
      %v1329 = vmul.f32 %v1220, %v1304
      %s1330 = scalar_lea.vmem %s3, 7
      %v1331 = vld [vmem:[%s1330] ss:$8 sm:$0xf]
      %v1332 = vld [vmem:[%s1330] ss:$8 sm:$0xf0]
      %v1333 = vor.u32 %v1331, %v1332
      %v1335 = vperm.slane %v1333, 0
      %v1336 = vperm.slane %v1333, 1
      %v1337 = vperm.slane %v1333, 2
      %v1338 = vperm.slane %v1333, 3
      %v1339 = vperm.slane %v1333, 4
      %v1340 = vperm.slane %v1333, 5
      %v1341 = vperm.slane %v1333, 6
      %v1342 = vperm.slane %v1333, 7
      %1343 = vrot.lane.b32.xlu0 %v1335, 64
      %v1344 = vpop.permute.xlu0 %1343
      %1345 = vrot.lane.b32.xlu0 %v1336, 64
      %v1346 = vpop.permute.xlu0 %1345
      %1347 = vrot.lane.b32.xlu0 %v1337, 64
      %v1348 = vpop.permute.xlu0 %1347
      %1349 = vrot.lane.b32.xlu0 %v1338, 64
      %v1350 = vpop.permute.xlu0 %1349
      %1351 = vrot.lane.b32.xlu0 %v1339, 64
      %v1352 = vpop.permute.xlu0 %1351
      %1353 = vrot.lane.b32.xlu0 %v1340, 64
      %v1354 = vpop.permute.xlu0 %1353
      %1355 = vrot.lane.b32.xlu0 %v1341, 64
      %v1356 = vpop.permute.xlu0 %1355
      %1357 = vrot.lane.b32.xlu0 %v1342, 64
      %v1358 = vpop.permute.xlu0 %1357
      %v1359 = vsel %vm1076, %v1344, %v1346
      %v1360 = vsel %vm1076, %v1346, %v1348
      %v1361 = vsel %vm1076, %v1348, %v1350
      %v1362 = vsel %vm1076, %v1350, %v1352
      %v1363 = vsel %vm1076, %v1352, %v1354
      %v1364 = vsel %vm1076, %v1354, %v1356
      %v1365 = vsel %vm1076, %v1356, %v1358
      %v1375 = vmul.f32 %v1212, %v1344
      %v1376 = vmul.f32 %v1213, %v1359
      %v1377 = vmul.f32 %v1214, %v1360
      %v1378 = vmul.f32 %v1215, %v1361
      %v1379 = vmul.f32 %v1216, %v1362
      %v1380 = vmul.f32 %v1217, %v1363
      %v1381 = vmul.f32 %v1218, %v1364
      %v1382 = vmul.f32 %v1219, %v1365
      %v1383 = vmul.f32 %v1220, %v1358
      %s1384 = scalar_lea.vmem %s3, 64
      %v1385 = vld [vmem:[%s1384] ss:$8 sm:$0xf]
      %v1386 = vld [vmem:[%s1384] ss:$8 sm:$0xf0]
      %v1387 = vor.u32 %v1385, %v1386
      %v1389 = vperm.slane %v1387, 0
      %v1390 = vperm.slane %v1387, 1
      %v1391 = vperm.slane %v1387, 2
      %v1392 = vperm.slane %v1387, 3
      %v1393 = vperm.slane %v1387, 4
      %v1394 = vperm.slane %v1387, 5
      %v1395 = vperm.slane %v1387, 6
      %v1396 = vperm.slane %v1387, 7
      %1397 = vrot.lane.b32.xlu0 %v1389, 68
      %v1398 = vpop.permute.xlu0 %1397
      %1399 = vrot.lane.b32.xlu0 %v1390, 68
      %v1400 = vpop.permute.xlu0 %1399
      %1401 = vrot.lane.b32.xlu0 %v1391, 68
      %v1402 = vpop.permute.xlu0 %1401
      %1403 = vrot.lane.b32.xlu0 %v1392, 68
      %v1404 = vpop.permute.xlu0 %1403
      %1405 = vrot.lane.b32.xlu0 %v1393, 68
      %v1406 = vpop.permute.xlu0 %1405
      %1407 = vrot.lane.b32.xlu0 %v1394, 68
      %v1408 = vpop.permute.xlu0 %1407
      %1409 = vrot.lane.b32.xlu0 %v1395, 68
      %v1410 = vpop.permute.xlu0 %1409
      %1411 = vrot.lane.b32.xlu0 %v1396, 68
      %v1412 = vpop.permute.xlu0 %1411
      %v1413 = vsel %vm1131, %v1398, %v1400
      %v1414 = vsel %vm1131, %v1400, %v1402
      %v1415 = vsel %vm1131, %v1402, %v1404
      %v1416 = vsel %vm1131, %v1404, %v1406
      %v1417 = vsel %vm1131, %v1406, %v1408
      %v1418 = vsel %vm1131, %v1408, %v1410
      %v1419 = vsel %vm1131, %v1410, %v1412
      %v1429 = vmul.f32 %v1212, %v1398
      %v1430 = vmul.f32 %v1213, %v1413
      %v1431 = vmul.f32 %v1214, %v1414
      %v1432 = vmul.f32 %v1215, %v1415
      %v1433 = vmul.f32 %v1216, %v1416
      %v1434 = vmul.f32 %v1217, %v1417
      %v1435 = vmul.f32 %v1218, %v1418
      %v1436 = vmul.f32 %v1219, %v1419
      %v1437 = vmul.f32 %v1220, %v1412
      %1447 = vrot.lane.b32.xlu0 %v1093, 124
      %v1448 = vpop.permute.xlu0 %1447
      %1449 = vrot.lane.b32.xlu0 %v1094, 124
      %v1450 = vpop.permute.xlu0 %1449
      %1451 = vrot.lane.b32.xlu0 %v1095, 124
      %v1452 = vpop.permute.xlu0 %1451
      %1453 = vrot.lane.b32.xlu0 %v1096, 124
      %v1454 = vpop.permute.xlu0 %1453
      %1455 = vrot.lane.b32.xlu0 %v1097, 124
      %v1456 = vpop.permute.xlu0 %1455
      %1457 = vrot.lane.b32.xlu0 %v1098, 124
      %v1458 = vpop.permute.xlu0 %1457
      %1459 = vrot.lane.b32.xlu0 %v1099, 124
      %v1460 = vpop.permute.xlu0 %1459
      %1461 = vrot.lane.b32.xlu0 %v1100, 124
      %v1462 = vpop.permute.xlu0 %1461
      %1463 = vrot.lane.b32.xlu0 %v1101, 124
      %v1464 = vpop.permute.xlu0 %1463
      %v1465 = vsel %vm1186, %v1448, %v1450
      %v1466 = vsel %vm1186, %v1450, %v1452
      %v1467 = vsel %vm1186, %v1452, %v1454
      %v1468 = vsel %vm1186, %v1454, %v1456
      %v1469 = vsel %vm1186, %v1456, %v1458
      %v1470 = vsel %vm1186, %v1458, %v1460
      %v1471 = vsel %vm1186, %v1460, %v1462
      %v1472 = vsel %vm1186, %v1462, %v1464
      %1491 = vrot.lane.b32.xlu0 %v1148, 120
      %v1492 = vpop.permute.xlu0 %1491
      %1493 = vrot.lane.b32.xlu0 %v1149, 120
      %v1494 = vpop.permute.xlu0 %1493
      %1495 = vrot.lane.b32.xlu0 %v1150, 120
      %v1496 = vpop.permute.xlu0 %1495
      %1497 = vrot.lane.b32.xlu0 %v1151, 120
      %v1498 = vpop.permute.xlu0 %1497
      %1499 = vrot.lane.b32.xlu0 %v1152, 120
      %v1500 = vpop.permute.xlu0 %1499
      %1501 = vrot.lane.b32.xlu0 %v1153, 120
      %v1502 = vpop.permute.xlu0 %1501
      %1503 = vrot.lane.b32.xlu0 %v1154, 120
      %v1504 = vpop.permute.xlu0 %1503
      %1505 = vrot.lane.b32.xlu0 %v1155, 120
      %v1506 = vpop.permute.xlu0 %1505
      %1507 = vrot.lane.b32.xlu0 %v1156, 120
      %v1508 = vpop.permute.xlu0 %1507
      %vm1509 = vcmask 982016
      %v1510 = vsel %vm1509, %v1492, %v1494
      %v1511 = vsel %vm1509, %v1494, %v1496
      %v1512 = vsel %vm1509, %v1496, %v1498
      %v1513 = vsel %vm1509, %v1498, %v1500
      %v1514 = vsel %vm1509, %v1500, %v1502
      %v1515 = vsel %vm1509, %v1502, %v1504
      %v1516 = vsel %vm1509, %v1504, %v1506
      %v1517 = vsel %vm1509, %v1506, %v1508
      %1536 = vrot.lane.b32.xlu0 %v1203, 64
      %v1537 = vpop.permute.xlu0 %1536
      %1538 = vrot.lane.b32.xlu0 %v1204, 64
      %v1539 = vpop.permute.xlu0 %1538
      %1540 = vrot.lane.b32.xlu0 %v1205, 64
      %v1541 = vpop.permute.xlu0 %1540
      %1542 = vrot.lane.b32.xlu0 %v1206, 64
      %v1543 = vpop.permute.xlu0 %1542
      %1544 = vrot.lane.b32.xlu0 %v1207, 64
      %v1545 = vpop.permute.xlu0 %1544
      %1546 = vrot.lane.b32.xlu0 %v1208, 64
      %v1547 = vpop.permute.xlu0 %1546
      %1548 = vrot.lane.b32.xlu0 %v1209, 64
      %v1549 = vpop.permute.xlu0 %1548
      %1550 = vrot.lane.b32.xlu0 %v1210, 64
      %v1551 = vpop.permute.xlu0 %1550
      %1552 = vrot.lane.b32.xlu0 %v1211, 64
      %v1553 = vpop.permute.xlu0 %1552
      %v1554 = vsel %vm1076, %v1537, %v1539
      %v1555 = vsel %vm1076, %v1539, %v1541
      %v1556 = vsel %vm1076, %v1541, %v1543
      %v1557 = vsel %vm1076, %v1543, %v1545
      %v1558 = vsel %vm1076, %v1545, %v1547
      %v1559 = vsel %vm1076, %v1547, %v1549
      %v1560 = vsel %vm1076, %v1549, %v1551
      %v1561 = vsel %vm1076, %v1551, %v1553
      %1579 = vrot.lane.b32.xlu0 %v985, 60
      %v1580 = vpop.permute.xlu0 %1579
      %1581 = vrot.lane.b32.xlu0 %v986, 60
      %v1582 = vpop.permute.xlu0 %1581
      %1583 = vrot.lane.b32.xlu0 %v987, 60
      %v1584 = vpop.permute.xlu0 %1583
      %1585 = vrot.lane.b32.xlu0 %v988, 60
      %v1586 = vpop.permute.xlu0 %1585
      %1587 = vrot.lane.b32.xlu0 %v989, 60
      %v1588 = vpop.permute.xlu0 %1587
      %1589 = vrot.lane.b32.xlu0 %v990, 60
      %v1590 = vpop.permute.xlu0 %1589
      %1591 = vrot.lane.b32.xlu0 %v991, 60
      %v1592 = vpop.permute.xlu0 %1591
      %1593 = vrot.lane.b32.xlu0 %v992, 60
      %v1594 = vpop.permute.xlu0 %1593
      %v1595 = vsel %vm1021, %v1580, %v1582
      %v1596 = vsel %vm1021, %v1582, %v1584
      %v1597 = vsel %vm1021, %v1584, %v1586
      %v1598 = vsel %vm1021, %v1586, %v1588
      %v1599 = vsel %vm1021, %v1588, %v1590
      %v1600 = vsel %vm1021, %v1590, %v1592
      %v1601 = vsel %vm1021, %v1592, %v1594
      %1620 = vrot.lane.b32.xlu0 %v1267, 56
      %v1621 = vpop.permute.xlu0 %1620
      %1622 = vrot.lane.b32.xlu0 %v1268, 56
      %v1623 = vpop.permute.xlu0 %1622
      %1624 = vrot.lane.b32.xlu0 %v1269, 56
      %v1625 = vpop.permute.xlu0 %1624
      %1626 = vrot.lane.b32.xlu0 %v1270, 56
      %v1627 = vpop.permute.xlu0 %1626
      %1628 = vrot.lane.b32.xlu0 %v1271, 56
      %v1629 = vpop.permute.xlu0 %1628
      %1630 = vrot.lane.b32.xlu0 %v1272, 56
      %v1631 = vpop.permute.xlu0 %1630
      %1632 = vrot.lane.b32.xlu0 %v1273, 56
      %v1633 = vpop.permute.xlu0 %1632
      %1634 = vrot.lane.b32.xlu0 %v1274, 56
      %v1635 = vpop.permute.xlu0 %1634
      %1636 = vrot.lane.b32.xlu0 %v1275, 56
      %v1637 = vpop.permute.xlu0 %1636
      %vm1638 = vcmask 457728
      %v1639 = vsel %vm1638, %v1621, %v1623
      %v1640 = vsel %vm1638, %v1623, %v1625
      %v1641 = vsel %vm1638, %v1625, %v1627
      %v1642 = vsel %vm1638, %v1627, %v1629
      %v1643 = vsel %vm1638, %v1629, %v1631
      %v1644 = vsel %vm1638, %v1631, %v1633
      %v1645 = vsel %vm1638, %v1633, %v1635
      %v1646 = vsel %vm1638, %v1635, %v1637
      %1665 = vrot.lane.b32.xlu0 %v1375, 124
      %v1666 = vpop.permute.xlu0 %1665
      %1667 = vrot.lane.b32.xlu0 %v1376, 124
      %v1668 = vpop.permute.xlu0 %1667
      %1669 = vrot.lane.b32.xlu0 %v1377, 124
      %v1670 = vpop.permute.xlu0 %1669
      %1671 = vrot.lane.b32.xlu0 %v1378, 124
      %v1672 = vpop.permute.xlu0 %1671
      %1673 = vrot.lane.b32.xlu0 %v1379, 124
      %v1674 = vpop.permute.xlu0 %1673
      %1675 = vrot.lane.b32.xlu0 %v1380, 124
      %v1676 = vpop.permute.xlu0 %1675
      %1677 = vrot.lane.b32.xlu0 %v1381, 124
      %v1678 = vpop.permute.xlu0 %1677
      %1679 = vrot.lane.b32.xlu0 %v1382, 124
      %v1680 = vpop.permute.xlu0 %1679
      %1681 = vrot.lane.b32.xlu0 %v1383, 124
      %v1682 = vpop.permute.xlu0 %1681
      %v1683 = vsel %vm1186, %v1666, %v1668
      %v1684 = vsel %vm1186, %v1668, %v1670
      %v1685 = vsel %vm1186, %v1670, %v1672
      %v1686 = vsel %vm1186, %v1672, %v1674
      %v1687 = vsel %vm1186, %v1674, %v1676
      %v1688 = vsel %vm1186, %v1676, %v1678
      %v1689 = vsel %vm1186, %v1678, %v1680
      %v1690 = vsel %vm1186, %v1680, %v1682
      %1709 = vrot.lane.b32.xlu0 %v1429, 120
      %v1710 = vpop.permute.xlu0 %1709
      %1711 = vrot.lane.b32.xlu0 %v1430, 120
      %v1712 = vpop.permute.xlu0 %1711
      %1713 = vrot.lane.b32.xlu0 %v1431, 120
      %v1714 = vpop.permute.xlu0 %1713
      %1715 = vrot.lane.b32.xlu0 %v1432, 120
      %v1716 = vpop.permute.xlu0 %1715
      %1717 = vrot.lane.b32.xlu0 %v1433, 120
      %v1718 = vpop.permute.xlu0 %1717
      %1719 = vrot.lane.b32.xlu0 %v1434, 120
      %v1720 = vpop.permute.xlu0 %1719
      %1721 = vrot.lane.b32.xlu0 %v1435, 120
      %v1722 = vpop.permute.xlu0 %1721
      %1723 = vrot.lane.b32.xlu0 %v1436, 120
      %v1724 = vpop.permute.xlu0 %1723
      %1725 = vrot.lane.b32.xlu0 %v1437, 120
      %v1726 = vpop.permute.xlu0 %1725
      %v1727 = vsel %vm1509, %v1710, %v1712
      %v1728 = vsel %vm1509, %v1712, %v1714
      %v1729 = vsel %vm1509, %v1714, %v1716
      %v1730 = vsel %vm1509, %v1716, %v1718
      %v1731 = vsel %vm1509, %v1718, %v1720
      %v1732 = vsel %vm1509, %v1720, %v1722
      %v1733 = vsel %vm1509, %v1722, %v1724
      %v1734 = vsel %vm1509, %v1724, %v1726
      %v1744 = vpack.c.bf16 %v1465, %v1038
      %v1745 = vpack.c.bf16 %v1466, %v1039
      %v1746 = vpack.c.bf16 %v1467, %v1040
      %v1747 = vpack.c.bf16 %v1468, %v1041
      %v1748 = vpack.c.bf16 %v1469, %v1042
      %v1749 = vpack.c.bf16 %v1470, %v1043
      %v1750 = vpack.c.bf16 %v1471, %v1044
      %v1751 = vpack.c.bf16 %v1472, %v1045
      %v1752 = vpack.c.bf16 %v1464, %v1046
      %v1753 = vpack.c.bf16 %v1554, %v1510
      %v1754 = vpack.c.bf16 %v1555, %v1511
      %v1755 = vpack.c.bf16 %v1556, %v1512
      %v1756 = vpack.c.bf16 %v1557, %v1513
      %v1757 = vpack.c.bf16 %v1558, %v1514
      %v1758 = vpack.c.bf16 %v1559, %v1515
      %v1759 = vpack.c.bf16 %v1560, %v1516
      %v1760 = vpack.c.bf16 %v1561, %v1517
      %v1761 = vpack.c.bf16 %v1553, %v1508
      %v1762 = vpack.c.bf16 %v1621, %v1580
      %v1763 = vpack.c.bf16 %v1639, %v1595
      %v1764 = vpack.c.bf16 %v1640, %v1596
      %v1765 = vpack.c.bf16 %v1641, %v1597
      %v1766 = vpack.c.bf16 %v1642, %v1598
      %v1767 = vpack.c.bf16 %v1643, %v1599
      %v1768 = vpack.c.bf16 %v1644, %v1600
      %v1769 = vpack.c.bf16 %v1645, %v1601
      %v1770 = vpack.c.bf16 %v1646, %v1594
      %v1771 = vpack.c.bf16 %v1683, %v1321
      %v1772 = vpack.c.bf16 %v1684, %v1322
      %v1773 = vpack.c.bf16 %v1685, %v1323
      %v1774 = vpack.c.bf16 %v1686, %v1324
      %v1775 = vpack.c.bf16 %v1687, %v1325
      %v1776 = vpack.c.bf16 %v1688, %v1326
      %v1777 = vpack.c.bf16 %v1689, %v1327
      %v1778 = vpack.c.bf16 %v1690, %v1328
      %v1779 = vpack.c.bf16 %v1682, %v1329
      %v1780 = vpack.c.bf16 %v1727, %v1727
      %v1781 = vpack.c.bf16 %v1728, %v1728
      %v1782 = vpack.c.bf16 %v1729, %v1729
      %v1783 = vpack.c.bf16 %v1730, %v1730
      %v1784 = vpack.c.bf16 %v1731, %v1731
      %v1785 = vpack.c.bf16 %v1732, %v1732
      %v1786 = vpack.c.bf16 %v1733, %v1733
      %v1787 = vpack.c.bf16 %v1734, %v1734
      %v1788 = vpack.c.bf16 %v1726, %v1726
      %v1789 = vld [vmem:[%s4] sm:$0xf]
      %v1790 = vld [vmem:[%s5] sm:$0xff]
      %1792 = vset.pattern.permute.xlu0 0
      %1793 = vperm.xlu0 %1792, %v1790
      %v1794 = vpop.permute.xlu0 %1793
      %1841 = vrot.lane.b32.xlu0 %v1744, 68
      %v1842 = vpop.permute.xlu0 %1841
      %1843 = vrot.lane.b32.xlu0 %v1745, 68
      %v1844 = vpop.permute.xlu0 %1843
      %1845 = vrot.lane.b32.xlu0 %v1746, 68
      %v1846 = vpop.permute.xlu0 %1845
      %1847 = vrot.lane.b32.xlu0 %v1747, 68
      %v1848 = vpop.permute.xlu0 %1847
      %1849 = vrot.lane.b32.xlu0 %v1748, 68
      %v1850 = vpop.permute.xlu0 %1849
      %1851 = vrot.lane.b32.xlu0 %v1749, 68
      %v1852 = vpop.permute.xlu0 %1851
      %1853 = vrot.lane.b32.xlu0 %v1750, 68
      %v1854 = vpop.permute.xlu0 %1853
      %1855 = vrot.lane.b32.xlu0 %v1751, 68
      %v1856 = vpop.permute.xlu0 %1855
      %1857 = vrot.lane.b32.xlu0 %v1752, 68
      %v1858 = vpop.permute.xlu0 %1857
      %1859 = vrot.lane.b32.xlu0 %v1753, 68
      %v1860 = vpop.permute.xlu0 %1859
      %1861 = vrot.lane.b32.xlu0 %v1754, 68
      %v1862 = vpop.permute.xlu0 %1861
      %1863 = vrot.lane.b32.xlu0 %v1755, 68
      %v1864 = vpop.permute.xlu0 %1863
      %1865 = vrot.lane.b32.xlu0 %v1756, 68
      %v1866 = vpop.permute.xlu0 %1865
      %1867 = vrot.lane.b32.xlu0 %v1757, 68
      %v1868 = vpop.permute.xlu0 %1867
      %1869 = vrot.lane.b32.xlu0 %v1758, 68
      %v1870 = vpop.permute.xlu0 %1869
      %1871 = vrot.lane.b32.xlu0 %v1759, 68
      %v1872 = vpop.permute.xlu0 %1871
      %1873 = vrot.lane.b32.xlu0 %v1760, 68
      %v1874 = vpop.permute.xlu0 %1873
      %1875 = vrot.lane.b32.xlu0 %v1761, 68
      %v1876 = vpop.permute.xlu0 %1875
      %1877 = vrot.lane.b32.xlu0 %v1762, 68
      %v1878 = vpop.permute.xlu0 %1877
      %1879 = vrot.lane.b32.xlu0 %v1763, 68
      %v1880 = vpop.permute.xlu0 %1879
      %1881 = vrot.lane.b32.xlu0 %v1764, 68
      %v1882 = vpop.permute.xlu0 %1881
      %1883 = vrot.lane.b32.xlu0 %v1765, 68
      %v1884 = vpop.permute.xlu0 %1883
      %1885 = vrot.lane.b32.xlu0 %v1766, 68
      %v1886 = vpop.permute.xlu0 %1885
      %1887 = vrot.lane.b32.xlu0 %v1767, 68
      %v1888 = vpop.permute.xlu0 %1887
      %1889 = vrot.lane.b32.xlu0 %v1768, 68
      %v1890 = vpop.permute.xlu0 %1889
      %1891 = vrot.lane.b32.xlu0 %v1769, 68
      %v1892 = vpop.permute.xlu0 %1891
      %1893 = vrot.lane.b32.xlu0 %v1770, 68
      %v1894 = vpop.permute.xlu0 %1893
      %1895 = vrot.lane.b32.xlu0 %v1771, 68
      %v1896 = vpop.permute.xlu0 %1895
      %1897 = vrot.lane.b32.xlu0 %v1772, 68
      %v1898 = vpop.permute.xlu0 %1897
      %1899 = vrot.lane.b32.xlu0 %v1773, 68
      %v1900 = vpop.permute.xlu0 %1899
      %1901 = vrot.lane.b32.xlu0 %v1774, 68
      %v1902 = vpop.permute.xlu0 %1901
      %1903 = vrot.lane.b32.xlu0 %v1775, 68
      %v1904 = vpop.permute.xlu0 %1903
      %1905 = vrot.lane.b32.xlu0 %v1776, 68
      %v1906 = vpop.permute.xlu0 %1905
      %1907 = vrot.lane.b32.xlu0 %v1777, 68
      %v1908 = vpop.permute.xlu0 %1907
      %1909 = vrot.lane.b32.xlu0 %v1778, 68
      %v1910 = vpop.permute.xlu0 %1909
      %1911 = vrot.lane.b32.xlu0 %v1779, 68
      %v1912 = vpop.permute.xlu0 %1911
      %1913 = vrot.lane.b32.xlu0 %v1780, 68
      %v1914 = vpop.permute.xlu0 %1913
      %1915 = vrot.lane.b32.xlu0 %v1781, 68
      %v1916 = vpop.permute.xlu0 %1915
      %1917 = vrot.lane.b32.xlu0 %v1782, 68
      %v1918 = vpop.permute.xlu0 %1917
      %1919 = vrot.lane.b32.xlu0 %v1783, 68
      %v1920 = vpop.permute.xlu0 %1919
      %1921 = vrot.lane.b32.xlu0 %v1784, 68
      %v1922 = vpop.permute.xlu0 %1921
      %1923 = vrot.lane.b32.xlu0 %v1785, 68
      %v1924 = vpop.permute.xlu0 %1923
      %1925 = vrot.lane.b32.xlu0 %v1786, 68
      %v1926 = vpop.permute.xlu0 %1925
      %1927 = vrot.lane.b32.xlu0 %v1787, 68
      %v1928 = vpop.permute.xlu0 %1927
      %1929 = vrot.lane.b32.xlu0 %v1788, 68
      %v1930 = vpop.permute.xlu0 %1929
      %vm1931 = vcmask 556032
      %v1932 = vsel %vm1931, %v1842, %v1844
      %v1933 = vsel %vm1931, %v1844, %v1846
      %v1934 = vsel %vm1931, %v1846, %v1848
      %v1935 = vsel %vm1931, %v1848, %v1850
      %v1936 = vsel %vm1931, %v1850, %v1852
      %v1937 = vsel %vm1931, %v1852, %v1854
      %v1938 = vsel %vm1931, %v1854, %v1856
      %v1939 = vsel %vm1931, %v1856, %v1858
      %v1940 = vsel %vm1931, %v1860, %v1862
      %v1941 = vsel %vm1931, %v1862, %v1864
      %v1942 = vsel %vm1931, %v1864, %v1866
      %v1943 = vsel %vm1931, %v1866, %v1868
      %v1944 = vsel %vm1931, %v1868, %v1870
      %v1945 = vsel %vm1931, %v1870, %v1872
      %v1946 = vsel %vm1931, %v1872, %v1874
      %v1947 = vsel %vm1931, %v1874, %v1876
      %v1948 = vsel %vm1931, %v1878, %v1880
      %v1949 = vsel %vm1931, %v1880, %v1882
      %v1950 = vsel %vm1931, %v1882, %v1884
      %v1951 = vsel %vm1931, %v1884, %v1886
      %v1952 = vsel %vm1931, %v1886, %v1888
      %v1953 = vsel %vm1931, %v1888, %v1890
      %v1954 = vsel %vm1931, %v1890, %v1892
      %v1955 = vsel %vm1931, %v1892, %v1894
      %v1956 = vsel %vm1931, %v1896, %v1898
      %v1957 = vsel %vm1931, %v1898, %v1900
      %v1958 = vsel %vm1931, %v1900, %v1902
      %v1959 = vsel %vm1931, %v1902, %v1904
      %v1960 = vsel %vm1931, %v1904, %v1906
      %v1961 = vsel %vm1931, %v1906, %v1908
      %v1962 = vsel %vm1931, %v1908, %v1910
      %v1963 = vsel %vm1931, %v1910, %v1912
      %v1964 = vsel %vm1931, %v1914, %v1916
      %v1965 = vsel %vm1931, %v1916, %v1918
      %v1966 = vsel %vm1931, %v1918, %v1920
      %v1967 = vsel %vm1931, %v1920, %v1922
      %v1968 = vsel %vm1931, %v1922, %v1924
      %v1969 = vsel %vm1931, %v1924, %v1926
      %v1970 = vsel %vm1931, %v1926, %v1928
      %v1971 = vsel %vm1931, %v1928, %v1930
      %vm2004 = vcmask 588800
      %v2006 = vsel %vm2004, %v1789, 0
      %v2009 = vsel %vm967, %v1964, 0
      %v2012 = vsel %vm967, %v1965, 0
      %v2015 = vsel %vm967, %v1966, 0
      %v2018 = vsel %vm967, %v1967, 0
      %v2021 = vsel %vm967, %v1968, 0
      %v2024 = vsel %vm967, %v1969, 0
      %v2027 = vsel %vm967, %v1970, 0
      %v2030 = vsel %vm967, %v1971, 0
      %2032 = vmatpush.bf16.msra.mxu0 0
      %2033 = vmatpush.bf16.msra.mxu0 0
      %2034 = vmatpush.bf16.msra.mxu0 0
      %2035 = vmatpush.bf16.msra.mxu0 %v2009
      %2036 = vmatpush.bf16.msra.mxu0 %v1956
      %2037 = vmatpush.bf16.msra.mxu0 %v1948
      %2038 = vmatpush.bf16.msra.mxu0 %v1940
      %2039 = vmatpush.bf16.msra.mxu0 %v1932
      %2040 = vmatmul.bf16.gmra.mxu0 %v2006
      %v2041 = vpop.f32.mrf.mxu0
      %v2042 = vadd.f32 %v1794, %v2041
      %v2043 = vpop.f32.mrf.mxu0
      %2044 = vdwg.mxu0
      %2045 = vmatpush.bf16.msra.mxu0 0
      %2046 = vmatpush.bf16.msra.mxu0 0
      %2047 = vmatpush.bf16.msra.mxu0 0
      %2048 = vmatpush.bf16.msra.mxu0 %v2012
      %2049 = vmatpush.bf16.msra.mxu0 %v1957
      %2050 = vmatpush.bf16.msra.mxu0 %v1949
      %2051 = vmatpush.bf16.msra.mxu0 %v1941
      %2052 = vmatpush.bf16.msra.mxu0 %v1933
      %2053 = vmatmul.bf16.gmra.mxu0 %v2006
      %v2054 = vpop.f32.mrf.mxu0
      %v2055 = vadd.f32 %v1794, %v2054
      %v2056 = vpop.f32.mrf.mxu0
      %2057 = vdwg.mxu0
      %2058 = vmatpush.bf16.msra.mxu0 0
      %2059 = vmatpush.bf16.msra.mxu0 0
      %2060 = vmatpush.bf16.msra.mxu0 0
      %2061 = vmatpush.bf16.msra.mxu0 %v2015
      %2062 = vmatpush.bf16.msra.mxu0 %v1958
      %2063 = vmatpush.bf16.msra.mxu0 %v1950
      %2064 = vmatpush.bf16.msra.mxu0 %v1942
      %2065 = vmatpush.bf16.msra.mxu0 %v1934
      %2066 = vmatmul.bf16.gmra.mxu0 %v2006
      %v2067 = vpop.f32.mrf.mxu0
      %v2068 = vadd.f32 %v1794, %v2067
      %v2069 = vpop.f32.mrf.mxu0
      %2070 = vdwg.mxu0
      %2071 = vmatpush.bf16.msra.mxu0 0
      %2072 = vmatpush.bf16.msra.mxu0 0
      %2073 = vmatpush.bf16.msra.mxu0 0
      %2074 = vmatpush.bf16.msra.mxu0 %v2018
      %2075 = vmatpush.bf16.msra.mxu0 %v1959
      %2076 = vmatpush.bf16.msra.mxu0 %v1951
      %2077 = vmatpush.bf16.msra.mxu0 %v1943
      %2078 = vmatpush.bf16.msra.mxu0 %v1935
      %2079 = vmatmul.bf16.gmra.mxu0 %v2006
      %v2080 = vpop.f32.mrf.mxu0
      %v2081 = vadd.f32 %v1794, %v2080
      %v2082 = vpop.f32.mrf.mxu0
      %2083 = vdwg.mxu0
      %2084 = vmatpush.bf16.msra.mxu0 0
      %2085 = vmatpush.bf16.msra.mxu0 0
      %2086 = vmatpush.bf16.msra.mxu0 0
      %2087 = vmatpush.bf16.msra.mxu0 %v2021
      %2088 = vmatpush.bf16.msra.mxu0 %v1960
      %2089 = vmatpush.bf16.msra.mxu0 %v1952
      %2090 = vmatpush.bf16.msra.mxu0 %v1944
      %2091 = vmatpush.bf16.msra.mxu0 %v1936
      %2092 = vmatmul.bf16.gmra.mxu0 %v2006
      %v2093 = vpop.f32.mrf.mxu0
      %v2094 = vadd.f32 %v1794, %v2093
      %v2095 = vpop.f32.mrf.mxu0
      %2096 = vdwg.mxu0
      %2097 = vmatpush.bf16.msra.mxu0 0
      %2098 = vmatpush.bf16.msra.mxu0 0
      %2099 = vmatpush.bf16.msra.mxu0 0
      %2100 = vmatpush.bf16.msra.mxu0 %v2024
      %2101 = vmatpush.bf16.msra.mxu0 %v1961
      %2102 = vmatpush.bf16.msra.mxu0 %v1953
      %2103 = vmatpush.bf16.msra.mxu0 %v1945
      %2104 = vmatpush.bf16.msra.mxu0 %v1937
      %2105 = vmatmul.bf16.gmra.mxu0 %v2006
      %v2106 = vpop.f32.mrf.mxu0
      %v2107 = vadd.f32 %v1794, %v2106
      %v2108 = vpop.f32.mrf.mxu0
      %2109 = vdwg.mxu0
      %2110 = vmatpush.bf16.msra.mxu0 0
      %2111 = vmatpush.bf16.msra.mxu0 0
      %2112 = vmatpush.bf16.msra.mxu0 0
      %2113 = vmatpush.bf16.msra.mxu0 %v2027
      %2114 = vmatpush.bf16.msra.mxu0 %v1962
      %2115 = vmatpush.bf16.msra.mxu0 %v1954
      %2116 = vmatpush.bf16.msra.mxu0 %v1946
      %2117 = vmatpush.bf16.msra.mxu0 %v1938
      %2118 = vmatmul.bf16.gmra.mxu0 %v2006
      %v2119 = vpop.f32.mrf.mxu0
      %v2120 = vadd.f32 %v1794, %v2119
      %v2121 = vpop.f32.mrf.mxu0
      %2122 = vdwg.mxu0
      %2123 = vmatpush.bf16.msra.mxu0 0
      %2124 = vmatpush.bf16.msra.mxu0 0
      %2125 = vmatpush.bf16.msra.mxu0 0
      %2126 = vmatpush.bf16.msra.mxu0 %v2030
      %2127 = vmatpush.bf16.msra.mxu0 %v1963
      %2128 = vmatpush.bf16.msra.mxu0 %v1955
      %2129 = vmatpush.bf16.msra.mxu0 %v1947
      %2130 = vmatpush.bf16.msra.mxu0 %v1939
      %2131 = vmatmul.bf16.gmra.mxu0 %v2006
      %v2132 = vpop.f32.mrf.mxu0
      %v2133 = vadd.f32 %v1794, %v2132
      %v2134 = vpop.f32.mrf.mxu0
      %2135 = vdwg.mxu0
      %v2136 = vmax.f32 %v2042, 0.0
      %v2137 = vmax.f32 %v2055, 0.0
      %v2138 = vmax.f32 %v2068, 0.0
      %v2139 = vmax.f32 %v2081, 0.0
      %v2140 = vmax.f32 %v2094, 0.0
      %v2141 = vmax.f32 %v2107, 0.0
      %v2142 = vmax.f32 %v2120, 0.0
      %v2143 = vmax.f32 %v2133, 0.0
      %2144 = vst [vmem:[#allocation2 + $0x8] sm:$0xff] %v2136
      %2145 = vst [vmem:[#allocation2 + $0x10] sm:$0xff] %v2137
      %2146 = vst [vmem:[#allocation2 + $0x18] sm:$0xff] %v2138
      %2147 = vst [vmem:[#allocation2 + $0x20] sm:$0xff] %v2139
      %2148 = vst [vmem:[#allocation2 + $0x28] sm:$0xff] %v2140
      %2149 = vst [vmem:[#allocation2 + $0x30] sm:$0xff] %v2141
      %2150 = vst [vmem:[#allocation2 + $0x38] sm:$0xff] %v2142
      %2151 = vst [vmem:[#allocation2 + $0x40] sm:$0xff] %v2143
      %v2152 = vld [vmem:[#allocation2] sm:$0xff]
      %v2153 = vld [vmem:[#allocation2 + $0x8] sm:$0xff]
      %v2154 = vld [vmem:[#allocation2 + $0x10] sm:$0xff]
      %v2155 = vld [vmem:[#allocation2 + $0x18] sm:$0xff]
      %v2156 = vld [vmem:[#allocation2 + $0x20] sm:$0xff]
      %v2157 = vld [vmem:[#allocation2 + $0x28] sm:$0xff]
      %v2158 = vld [vmem:[#allocation2 + $0x30] sm:$0xff]
      %v2159 = vld [vmem:[#allocation2 + $0x38] sm:$0xff]
      %v2160 = vld [vmem:[#allocation2 + $0x40] sm:$0xff]
      %v2161 = vld [vmem:[%s3] ss:$8 sm:$0xf]
      %v2162 = vld [vmem:[%s3] ss:$8 sm:$0xf0]
      %v2163 = vor.u32 %v2161, %v2162
      %v2165 = vperm.slane %v2163, 0
      %v2166 = vperm.slane %v2163, 1
      %v2167 = vperm.slane %v2163, 2
      %v2168 = vperm.slane %v2163, 3
      %v2169 = vperm.slane %v2163, 4
      %v2170 = vperm.slane %v2163, 5
      %v2171 = vperm.slane %v2163, 6
      %v2172 = vperm.slane %v2163, 7
      %2173 = vrot.lane.b32.xlu0 %v2165, 60
      %v2174 = vpop.permute.xlu0 %2173
      %2175 = vrot.lane.b32.xlu0 %v2166, 60
      %v2176 = vpop.permute.xlu0 %2175
      %2177 = vrot.lane.b32.xlu0 %v2167, 60
      %v2178 = vpop.permute.xlu0 %2177
      %2179 = vrot.lane.b32.xlu0 %v2168, 60
      %v2180 = vpop.permute.xlu0 %2179
      %2181 = vrot.lane.b32.xlu0 %v2169, 60
      %v2182 = vpop.permute.xlu0 %2181
      %2183 = vrot.lane.b32.xlu0 %v2170, 60
      %v2184 = vpop.permute.xlu0 %2183
      %2185 = vrot.lane.b32.xlu0 %v2171, 60
      %v2186 = vpop.permute.xlu0 %2185
      %2187 = vrot.lane.b32.xlu0 %v2172, 60
      %v2188 = vpop.permute.xlu0 %2187
      %v2189 = vsel %vm1021, %v2174, %v2176
      %v2190 = vsel %vm1021, %v2176, %v2178
      %v2191 = vsel %vm1021, %v2178, %v2180
      %v2192 = vsel %vm1021, %v2180, %v2182
      %v2193 = vsel %vm1021, %v2182, %v2184
      %v2194 = vsel %vm1021, %v2184, %v2186
      %v2195 = vsel %vm1021, %v2186, %v2188
      %v2205 = vmul.f32 %v2152, %v2174
      %v2206 = vmul.f32 %v2153, %v2189
      %v2207 = vmul.f32 %v2154, %v2190
      %v2208 = vmul.f32 %v2155, %v2191
      %v2209 = vmul.f32 %v2156, %v2192
      %v2210 = vmul.f32 %v2157, %v2193
      %v2211 = vmul.f32 %v2158, %v2194
      %v2212 = vmul.f32 %v2159, %v2195
      %v2213 = vmul.f32 %v2160, %v2188
      %v2214 = vld [vmem:[%s1047] ss:$8 sm:$0xf]
      %v2215 = vld [vmem:[%s1047] ss:$8 sm:$0xf0]
      %v2216 = vor.u32 %v2214, %v2215
      %v2218 = vperm.slane %v2216, 0
      %v2219 = vperm.slane %v2216, 1
      %v2220 = vperm.slane %v2216, 2
      %v2221 = vperm.slane %v2216, 3
      %v2222 = vperm.slane %v2216, 4
      %v2223 = vperm.slane %v2216, 5
      %v2224 = vperm.slane %v2216, 6
      %v2225 = vperm.slane %v2216, 7
      %2226 = vrot.lane.b32.xlu0 %v2218, 64
      %v2227 = vpop.permute.xlu0 %2226
      %2228 = vrot.lane.b32.xlu0 %v2219, 64
      %v2229 = vpop.permute.xlu0 %2228
      %2230 = vrot.lane.b32.xlu0 %v2220, 64
      %v2231 = vpop.permute.xlu0 %2230
      %2232 = vrot.lane.b32.xlu0 %v2221, 64
      %v2233 = vpop.permute.xlu0 %2232
      %2234 = vrot.lane.b32.xlu0 %v2222, 64
      %v2235 = vpop.permute.xlu0 %2234
      %2236 = vrot.lane.b32.xlu0 %v2223, 64
      %v2237 = vpop.permute.xlu0 %2236
      %2238 = vrot.lane.b32.xlu0 %v2224, 64
      %v2239 = vpop.permute.xlu0 %2238
      %2240 = vrot.lane.b32.xlu0 %v2225, 64
      %v2241 = vpop.permute.xlu0 %2240
      %v2242 = vsel %vm1076, %v2227, %v2229
      %v2243 = vsel %vm1076, %v2229, %v2231
      %v2244 = vsel %vm1076, %v2231, %v2233
      %v2245 = vsel %vm1076, %v2233, %v2235
      %v2246 = vsel %vm1076, %v2235, %v2237
      %v2247 = vsel %vm1076, %v2237, %v2239
      %v2248 = vsel %vm1076, %v2239, %v2241
      %v2258 = vmul.f32 %v2152, %v2227
      %v2259 = vmul.f32 %v2153, %v2242
      %v2260 = vmul.f32 %v2154, %v2243
      %v2261 = vmul.f32 %v2155, %v2244
      %v2262 = vmul.f32 %v2156, %v2245
      %v2263 = vmul.f32 %v2157, %v2246
      %v2264 = vmul.f32 %v2158, %v2247
      %v2265 = vmul.f32 %v2159, %v2248
      %v2266 = vmul.f32 %v2160, %v2241
      %v2267 = vld [vmem:[%s1102] ss:$8 sm:$0xf]
      %v2268 = vld [vmem:[%s1102] ss:$8 sm:$0xf0]
      %v2269 = vor.u32 %v2267, %v2268
      %v2271 = vperm.slane %v2269, 0
      %v2272 = vperm.slane %v2269, 1
      %v2273 = vperm.slane %v2269, 2
      %v2274 = vperm.slane %v2269, 3
      %v2275 = vperm.slane %v2269, 4
      %v2276 = vperm.slane %v2269, 5
      %v2277 = vperm.slane %v2269, 6
      %v2278 = vperm.slane %v2269, 7
      %2279 = vrot.lane.b32.xlu0 %v2271, 68
      %v2280 = vpop.permute.xlu0 %2279
      %2281 = vrot.lane.b32.xlu0 %v2272, 68
      %v2282 = vpop.permute.xlu0 %2281
      %2283 = vrot.lane.b32.xlu0 %v2273, 68
      %v2284 = vpop.permute.xlu0 %2283
      %2285 = vrot.lane.b32.xlu0 %v2274, 68
      %v2286 = vpop.permute.xlu0 %2285
      %2287 = vrot.lane.b32.xlu0 %v2275, 68
      %v2288 = vpop.permute.xlu0 %2287
      %2289 = vrot.lane.b32.xlu0 %v2276, 68
      %v2290 = vpop.permute.xlu0 %2289
      %2291 = vrot.lane.b32.xlu0 %v2277, 68
      %v2292 = vpop.permute.xlu0 %2291
      %2293 = vrot.lane.b32.xlu0 %v2278, 68
      %v2294 = vpop.permute.xlu0 %2293
      %v2295 = vsel %vm1131, %v2280, %v2282
      %v2296 = vsel %vm1131, %v2282, %v2284
      %v2297 = vsel %vm1131, %v2284, %v2286
      %v2298 = vsel %vm1131, %v2286, %v2288
      %v2299 = vsel %vm1131, %v2288, %v2290
      %v2300 = vsel %vm1131, %v2290, %v2292
      %v2301 = vsel %vm1131, %v2292, %v2294
      %v2311 = vmul.f32 %v2152, %v2280
      %v2312 = vmul.f32 %v2153, %v2295
      %v2313 = vmul.f32 %v2154, %v2296
      %v2314 = vmul.f32 %v2155, %v2297
      %v2315 = vmul.f32 %v2156, %v2298
      %v2316 = vmul.f32 %v2157, %v2299
      %v2317 = vmul.f32 %v2158, %v2300
      %v2318 = vmul.f32 %v2159, %v2301
      %v2319 = vmul.f32 %v2160, %v2294
      %v2320 = vld [vmem:[%s1157] ss:$8 sm:$0xf]
      %v2321 = vld [vmem:[%s1157] ss:$8 sm:$0xf0]
      %v2322 = vor.u32 %v2320, %v2321
      %v2324 = vperm.slane %v2322, 0
      %v2325 = vperm.slane %v2322, 1
      %v2326 = vperm.slane %v2322, 2
      %v2327 = vperm.slane %v2322, 3
      %v2328 = vperm.slane %v2322, 4
      %v2329 = vperm.slane %v2322, 5
      %v2330 = vperm.slane %v2322, 6
      %v2331 = vperm.slane %v2322, 7
      %2332 = vrot.lane.b32.xlu0 %v2324, 124
      %v2333 = vpop.permute.xlu0 %2332
      %2334 = vrot.lane.b32.xlu0 %v2325, 124
      %v2335 = vpop.permute.xlu0 %2334
      %2336 = vrot.lane.b32.xlu0 %v2326, 124
      %v2337 = vpop.permute.xlu0 %2336
      %2338 = vrot.lane.b32.xlu0 %v2327, 124
      %v2339 = vpop.permute.xlu0 %2338
      %2340 = vrot.lane.b32.xlu0 %v2328, 124
      %v2341 = vpop.permute.xlu0 %2340
      %2342 = vrot.lane.b32.xlu0 %v2329, 124
      %v2343 = vpop.permute.xlu0 %2342
      %2344 = vrot.lane.b32.xlu0 %v2330, 124
      %v2345 = vpop.permute.xlu0 %2344
      %2346 = vrot.lane.b32.xlu0 %v2331, 124
      %v2347 = vpop.permute.xlu0 %2346
      %v2348 = vsel %vm1186, %v2333, %v2335
      %v2349 = vsel %vm1186, %v2335, %v2337
      %v2350 = vsel %vm1186, %v2337, %v2339
      %v2351 = vsel %vm1186, %v2339, %v2341
      %v2352 = vsel %vm1186, %v2341, %v2343
      %v2353 = vsel %vm1186, %v2343, %v2345
      %v2354 = vsel %vm1186, %v2345, %v2347
      %v2364 = vmul.f32 %v2152, %v2333
      %v2365 = vmul.f32 %v2153, %v2348
      %v2366 = vmul.f32 %v2154, %v2349
      %v2367 = vmul.f32 %v2155, %v2350
      %v2368 = vmul.f32 %v2156, %v2351
      %v2369 = vmul.f32 %v2157, %v2352
      %v2370 = vmul.f32 %v2158, %v2353
      %v2371 = vmul.f32 %v2159, %v2354
      %v2372 = vmul.f32 %v2160, %v2347
      %v2373 = vld [vmem:[#allocation2 + $0x8] sm:$0xff]
      %v2374 = vld [vmem:[#allocation2 + $0x10] sm:$0xff]
      %v2375 = vld [vmem:[#allocation2 + $0x18] sm:$0xff]
      %v2376 = vld [vmem:[#allocation2 + $0x20] sm:$0xff]
      %v2377 = vld [vmem:[#allocation2 + $0x28] sm:$0xff]
      %v2378 = vld [vmem:[#allocation2 + $0x30] sm:$0xff]
      %v2379 = vld [vmem:[#allocation2 + $0x38] sm:$0xff]
      %v2380 = vld [vmem:[#allocation2 + $0x40] sm:$0xff]
      %v2381 = vld [vmem:[#allocation2 + $0x48] sm:$0xff]
      %v2382 = vld [vmem:[%s1221] ss:$8 sm:$0xf]
      %v2383 = vld [vmem:[%s1221] ss:$8 sm:$0xf0]
      %v2384 = vor.u32 %v2382, %v2383
      %v2386 = vperm.slane %v2384, 0
      %v2387 = vperm.slane %v2384, 1
      %v2388 = vperm.slane %v2384, 2
      %v2389 = vperm.slane %v2384, 3
      %v2390 = vperm.slane %v2384, 4
      %v2391 = vperm.slane %v2384, 5
      %v2392 = vperm.slane %v2384, 6
      %v2393 = vperm.slane %v2384, 7
      %2394 = vrot.lane.b32.xlu0 %v2386, 4
      %v2395 = vpop.permute.xlu0 %2394
      %2396 = vrot.lane.b32.xlu0 %v2387, 4
      %v2397 = vpop.permute.xlu0 %2396
      %2398 = vrot.lane.b32.xlu0 %v2388, 4
      %v2399 = vpop.permute.xlu0 %2398
      %2400 = vrot.lane.b32.xlu0 %v2389, 4
      %v2401 = vpop.permute.xlu0 %2400
      %2402 = vrot.lane.b32.xlu0 %v2390, 4
      %v2403 = vpop.permute.xlu0 %2402
      %2404 = vrot.lane.b32.xlu0 %v2391, 4
      %v2405 = vpop.permute.xlu0 %2404
      %2406 = vrot.lane.b32.xlu0 %v2392, 4
      %v2407 = vpop.permute.xlu0 %2406
      %2408 = vrot.lane.b32.xlu0 %v2393, 4
      %v2409 = vpop.permute.xlu0 %2408
      %v2410 = vsel %vm1250, %v2395, %v2397
      %v2411 = vsel %vm1250, %v2397, %v2399
      %v2412 = vsel %vm1250, %v2399, %v2401
      %v2413 = vsel %vm1250, %v2401, %v2403
      %v2414 = vsel %vm1250, %v2403, %v2405
      %v2415 = vsel %vm1250, %v2405, %v2407
      %v2416 = vsel %vm1250, %v2407, %v2409
      %v2426 = vmul.f32 %v2373, %v2395
      %v2427 = vmul.f32 %v2374, %v2410
      %v2428 = vmul.f32 %v2375, %v2411
      %v2429 = vmul.f32 %v2376, %v2412
      %v2430 = vmul.f32 %v2377, %v2413
      %v2431 = vmul.f32 %v2378, %v2414
      %v2432 = vmul.f32 %v2379, %v2415
      %v2433 = vmul.f32 %v2380, %v2416
      %v2434 = vmul.f32 %v2381, %v2409
      %v2435 = vld [vmem:[%s1276] ss:$8 sm:$0xf]
      %v2436 = vld [vmem:[%s1276] ss:$8 sm:$0xf0]
      %v2437 = vor.u32 %v2435, %v2436
      %v2439 = vperm.slane %v2437, 0
      %v2440 = vperm.slane %v2437, 1
      %v2441 = vperm.slane %v2437, 2
      %v2442 = vperm.slane %v2437, 3
      %v2443 = vperm.slane %v2437, 4
      %v2444 = vperm.slane %v2437, 5
      %v2445 = vperm.slane %v2437, 6
      %v2446 = vperm.slane %v2437, 7
      %2447 = vrot.lane.b32.xlu0 %v2439, 60
      %v2448 = vpop.permute.xlu0 %2447
      %2449 = vrot.lane.b32.xlu0 %v2440, 60
      %v2450 = vpop.permute.xlu0 %2449
      %2451 = vrot.lane.b32.xlu0 %v2441, 60
      %v2452 = vpop.permute.xlu0 %2451
      %2453 = vrot.lane.b32.xlu0 %v2442, 60
      %v2454 = vpop.permute.xlu0 %2453
      %2455 = vrot.lane.b32.xlu0 %v2443, 60
      %v2456 = vpop.permute.xlu0 %2455
      %2457 = vrot.lane.b32.xlu0 %v2444, 60
      %v2458 = vpop.permute.xlu0 %2457
      %2459 = vrot.lane.b32.xlu0 %v2445, 60
      %v2460 = vpop.permute.xlu0 %2459
      %2461 = vrot.lane.b32.xlu0 %v2446, 60
      %v2462 = vpop.permute.xlu0 %2461
      %v2463 = vsel %vm1021, %v2448, %v2450
      %v2464 = vsel %vm1021, %v2450, %v2452
      %v2465 = vsel %vm1021, %v2452, %v2454
      %v2466 = vsel %vm1021, %v2454, %v2456
      %v2467 = vsel %vm1021, %v2456, %v2458
      %v2468 = vsel %vm1021, %v2458, %v2460
      %v2469 = vsel %vm1021, %v2460, %v2462
      %v2479 = vmul.f32 %v2373, %v2448
      %v2480 = vmul.f32 %v2374, %v2463
      %v2481 = vmul.f32 %v2375, %v2464
      %v2482 = vmul.f32 %v2376, %v2465
      %v2483 = vmul.f32 %v2377, %v2466
      %v2484 = vmul.f32 %v2378, %v2467
      %v2485 = vmul.f32 %v2379, %v2468
      %v2486 = vmul.f32 %v2380, %v2469
      %v2487 = vmul.f32 %v2381, %v2462
      %v2488 = vld [vmem:[%s1330] ss:$8 sm:$0xf]
      %v2489 = vld [vmem:[%s1330] ss:$8 sm:$0xf0]
      %v2490 = vor.u32 %v2488, %v2489
      %v2492 = vperm.slane %v2490, 0
      %v2493 = vperm.slane %v2490, 1
      %v2494 = vperm.slane %v2490, 2
      %v2495 = vperm.slane %v2490, 3
      %v2496 = vperm.slane %v2490, 4
      %v2497 = vperm.slane %v2490, 5
      %v2498 = vperm.slane %v2490, 6
      %v2499 = vperm.slane %v2490, 7
      %2500 = vrot.lane.b32.xlu0 %v2492, 64
      %v2501 = vpop.permute.xlu0 %2500
      %2502 = vrot.lane.b32.xlu0 %v2493, 64
      %v2503 = vpop.permute.xlu0 %2502
      %2504 = vrot.lane.b32.xlu0 %v2494, 64
      %v2505 = vpop.permute.xlu0 %2504
      %2506 = vrot.lane.b32.xlu0 %v2495, 64
      %v2507 = vpop.permute.xlu0 %2506
      %2508 = vrot.lane.b32.xlu0 %v2496, 64
      %v2509 = vpop.permute.xlu0 %2508
      %2510 = vrot.lane.b32.xlu0 %v2497, 64
      %v2511 = vpop.permute.xlu0 %2510
      %2512 = vrot.lane.b32.xlu0 %v2498, 64
      %v2513 = vpop.permute.xlu0 %2512
      %2514 = vrot.lane.b32.xlu0 %v2499, 64
      %v2515 = vpop.permute.xlu0 %2514
      %v2516 = vsel %vm1076, %v2501, %v2503
      %v2517 = vsel %vm1076, %v2503, %v2505
      %v2518 = vsel %vm1076, %v2505, %v2507
      %v2519 = vsel %vm1076, %v2507, %v2509
      %v2520 = vsel %vm1076, %v2509, %v2511
      %v2521 = vsel %vm1076, %v2511, %v2513
      %v2522 = vsel %vm1076, %v2513, %v2515
      %v2532 = vmul.f32 %v2373, %v2501
      %v2533 = vmul.f32 %v2374, %v2516
      %v2534 = vmul.f32 %v2375, %v2517
      %v2535 = vmul.f32 %v2376, %v2518
      %v2536 = vmul.f32 %v2377, %v2519
      %v2537 = vmul.f32 %v2378, %v2520
      %v2538 = vmul.f32 %v2379, %v2521
      %v2539 = vmul.f32 %v2380, %v2522
      %v2540 = vmul.f32 %v2381, %v2515
      %v2541 = vld [vmem:[%s1384] ss:$8 sm:$0xf]
      %v2542 = vld [vmem:[%s1384] ss:$8 sm:$0xf0]
      %v2543 = vor.u32 %v2541, %v2542
      %v2545 = vperm.slane %v2543, 0
      %v2546 = vperm.slane %v2543, 1
      %v2547 = vperm.slane %v2543, 2
      %v2548 = vperm.slane %v2543, 3
      %v2549 = vperm.slane %v2543, 4
      %v2550 = vperm.slane %v2543, 5
      %v2551 = vperm.slane %v2543, 6
      %v2552 = vperm.slane %v2543, 7
      %2553 = vrot.lane.b32.xlu0 %v2545, 68
      %v2554 = vpop.permute.xlu0 %2553
      %2555 = vrot.lane.b32.xlu0 %v2546, 68
      %v2556 = vpop.permute.xlu0 %2555
      %2557 = vrot.lane.b32.xlu0 %v2547, 68
      %v2558 = vpop.permute.xlu0 %2557
      %2559 = vrot.lane.b32.xlu0 %v2548, 68
      %v2560 = vpop.permute.xlu0 %2559
      %2561 = vrot.lane.b32.xlu0 %v2549, 68
      %v2562 = vpop.permute.xlu0 %2561
      %2563 = vrot.lane.b32.xlu0 %v2550, 68
      %v2564 = vpop.permute.xlu0 %2563
      %2565 = vrot.lane.b32.xlu0 %v2551, 68
      %v2566 = vpop.permute.xlu0 %2565
      %2567 = vrot.lane.b32.xlu0 %v2552, 68
      %v2568 = vpop.permute.xlu0 %2567
      %v2569 = vsel %vm1131, %v2554, %v2556
      %v2570 = vsel %vm1131, %v2556, %v2558
      %v2571 = vsel %vm1131, %v2558, %v2560
      %v2572 = vsel %vm1131, %v2560, %v2562
      %v2573 = vsel %vm1131, %v2562, %v2564
      %v2574 = vsel %vm1131, %v2564, %v2566
      %v2575 = vsel %vm1131, %v2566, %v2568
      %v2585 = vmul.f32 %v2373, %v2554
      %v2586 = vmul.f32 %v2374, %v2569
      %v2587 = vmul.f32 %v2375, %v2570
      %v2588 = vmul.f32 %v2376, %v2571
      %v2589 = vmul.f32 %v2377, %v2572
      %v2590 = vmul.f32 %v2378, %v2573
      %v2591 = vmul.f32 %v2379, %v2574
      %v2592 = vmul.f32 %v2380, %v2575
      %v2593 = vmul.f32 %v2381, %v2568
      %2603 = vrot.lane.b32.xlu0 %v2258, 124
      %v2604 = vpop.permute.xlu0 %2603
      %2605 = vrot.lane.b32.xlu0 %v2259, 124
      %v2606 = vpop.permute.xlu0 %2605
      %2607 = vrot.lane.b32.xlu0 %v2260, 124
      %v2608 = vpop.permute.xlu0 %2607
      %2609 = vrot.lane.b32.xlu0 %v2261, 124
      %v2610 = vpop.permute.xlu0 %2609
      %2611 = vrot.lane.b32.xlu0 %v2262, 124
      %v2612 = vpop.permute.xlu0 %2611
      %2613 = vrot.lane.b32.xlu0 %v2263, 124
      %v2614 = vpop.permute.xlu0 %2613
      %2615 = vrot.lane.b32.xlu0 %v2264, 124
      %v2616 = vpop.permute.xlu0 %2615
      %2617 = vrot.lane.b32.xlu0 %v2265, 124
      %v2618 = vpop.permute.xlu0 %2617
      %2619 = vrot.lane.b32.xlu0 %v2266, 124
      %v2620 = vpop.permute.xlu0 %2619
      %v2621 = vsel %vm1186, %v2604, %v2606
      %v2622 = vsel %vm1186, %v2606, %v2608
      %v2623 = vsel %vm1186, %v2608, %v2610
      %v2624 = vsel %vm1186, %v2610, %v2612
      %v2625 = vsel %vm1186, %v2612, %v2614
      %v2626 = vsel %vm1186, %v2614, %v2616
      %v2627 = vsel %vm1186, %v2616, %v2618
      %v2628 = vsel %vm1186, %v2618, %v2620
      %2647 = vrot.lane.b32.xlu0 %v2311, 120
      %v2648 = vpop.permute.xlu0 %2647
      %2649 = vrot.lane.b32.xlu0 %v2312, 120
      %v2650 = vpop.permute.xlu0 %2649
      %2651 = vrot.lane.b32.xlu0 %v2313, 120
      %v2652 = vpop.permute.xlu0 %2651
      %2653 = vrot.lane.b32.xlu0 %v2314, 120
      %v2654 = vpop.permute.xlu0 %2653
      %2655 = vrot.lane.b32.xlu0 %v2315, 120
      %v2656 = vpop.permute.xlu0 %2655
      %2657 = vrot.lane.b32.xlu0 %v2316, 120
      %v2658 = vpop.permute.xlu0 %2657
      %2659 = vrot.lane.b32.xlu0 %v2317, 120
      %v2660 = vpop.permute.xlu0 %2659
      %2661 = vrot.lane.b32.xlu0 %v2318, 120
      %v2662 = vpop.permute.xlu0 %2661
      %2663 = vrot.lane.b32.xlu0 %v2319, 120
      %v2664 = vpop.permute.xlu0 %2663
      %v2665 = vsel %vm1509, %v2648, %v2650
      %v2666 = vsel %vm1509, %v2650, %v2652
      %v2667 = vsel %vm1509, %v2652, %v2654
      %v2668 = vsel %vm1509, %v2654, %v2656
      %v2669 = vsel %vm1509, %v2656, %v2658
      %v2670 = vsel %vm1509, %v2658, %v2660
      %v2671 = vsel %vm1509, %v2660, %v2662
      %v2672 = vsel %vm1509, %v2662, %v2664
      %2691 = vrot.lane.b32.xlu0 %v2364, 64
      %v2692 = vpop.permute.xlu0 %2691
      %2693 = vrot.lane.b32.xlu0 %v2365, 64
      %v2694 = vpop.permute.xlu0 %2693
      %2695 = vrot.lane.b32.xlu0 %v2366, 64
      %v2696 = vpop.permute.xlu0 %2695
      %2697 = vrot.lane.b32.xlu0 %v2367, 64
      %v2698 = vpop.permute.xlu0 %2697
      %2699 = vrot.lane.b32.xlu0 %v2368, 64
      %v2700 = vpop.permute.xlu0 %2699
      %2701 = vrot.lane.b32.xlu0 %v2369, 64
      %v2702 = vpop.permute.xlu0 %2701
      %2703 = vrot.lane.b32.xlu0 %v2370, 64
      %v2704 = vpop.permute.xlu0 %2703
      %2705 = vrot.lane.b32.xlu0 %v2371, 64
      %v2706 = vpop.permute.xlu0 %2705
      %2707 = vrot.lane.b32.xlu0 %v2372, 64
      %v2708 = vpop.permute.xlu0 %2707
      %v2709 = vsel %vm1076, %v2692, %v2694
      %v2710 = vsel %vm1076, %v2694, %v2696
      %v2711 = vsel %vm1076, %v2696, %v2698
      %v2712 = vsel %vm1076, %v2698, %v2700
      %v2713 = vsel %vm1076, %v2700, %v2702
      %v2714 = vsel %vm1076, %v2702, %v2704
      %v2715 = vsel %vm1076, %v2704, %v2706
      %v2716 = vsel %vm1076, %v2706, %v2708
      %2734 = vrot.lane.b32.xlu0 %v2153, 60
      %v2735 = vpop.permute.xlu0 %2734
      %2736 = vrot.lane.b32.xlu0 %v2154, 60
      %v2737 = vpop.permute.xlu0 %2736
      %2738 = vrot.lane.b32.xlu0 %v2155, 60
      %v2739 = vpop.permute.xlu0 %2738
      %2740 = vrot.lane.b32.xlu0 %v2156, 60
      %v2741 = vpop.permute.xlu0 %2740
      %2742 = vrot.lane.b32.xlu0 %v2157, 60
      %v2743 = vpop.permute.xlu0 %2742
      %2744 = vrot.lane.b32.xlu0 %v2158, 60
      %v2745 = vpop.permute.xlu0 %2744
      %2746 = vrot.lane.b32.xlu0 %v2159, 60
      %v2747 = vpop.permute.xlu0 %2746
      %2748 = vrot.lane.b32.xlu0 %v2160, 60
      %v2749 = vpop.permute.xlu0 %2748
      %v2750 = vsel %vm1021, %v2735, %v2737
      %v2751 = vsel %vm1021, %v2737, %v2739
      %v2752 = vsel %vm1021, %v2739, %v2741
      %v2753 = vsel %vm1021, %v2741, %v2743
      %v2754 = vsel %vm1021, %v2743, %v2745
      %v2755 = vsel %vm1021, %v2745, %v2747
      %v2756 = vsel %vm1021, %v2747, %v2749
      %2775 = vrot.lane.b32.xlu0 %v2426, 56
      %v2776 = vpop.permute.xlu0 %2775
      %2777 = vrot.lane.b32.xlu0 %v2427, 56
      %v2778 = vpop.permute.xlu0 %2777
      %2779 = vrot.lane.b32.xlu0 %v2428, 56
      %v2780 = vpop.permute.xlu0 %2779
      %2781 = vrot.lane.b32.xlu0 %v2429, 56
      %v2782 = vpop.permute.xlu0 %2781
      %2783 = vrot.lane.b32.xlu0 %v2430, 56
      %v2784 = vpop.permute.xlu0 %2783
      %2785 = vrot.lane.b32.xlu0 %v2431, 56
      %v2786 = vpop.permute.xlu0 %2785
      %2787 = vrot.lane.b32.xlu0 %v2432, 56
      %v2788 = vpop.permute.xlu0 %2787
      %2789 = vrot.lane.b32.xlu0 %v2433, 56
      %v2790 = vpop.permute.xlu0 %2789
      %2791 = vrot.lane.b32.xlu0 %v2434, 56
      %v2792 = vpop.permute.xlu0 %2791
      %v2793 = vsel %vm1638, %v2776, %v2778
      %v2794 = vsel %vm1638, %v2778, %v2780
      %v2795 = vsel %vm1638, %v2780, %v2782
      %v2796 = vsel %vm1638, %v2782, %v2784
      %v2797 = vsel %vm1638, %v2784, %v2786
      %v2798 = vsel %vm1638, %v2786, %v2788
      %v2799 = vsel %vm1638, %v2788, %v2790
      %v2800 = vsel %vm1638, %v2790, %v2792
      %2819 = vrot.lane.b32.xlu0 %v2532, 124
      %v2820 = vpop.permute.xlu0 %2819
      %2821 = vrot.lane.b32.xlu0 %v2533, 124
      %v2822 = vpop.permute.xlu0 %2821
      %2823 = vrot.lane.b32.xlu0 %v2534, 124
      %v2824 = vpop.permute.xlu0 %2823
      %2825 = vrot.lane.b32.xlu0 %v2535, 124
      %v2826 = vpop.permute.xlu0 %2825
      %2827 = vrot.lane.b32.xlu0 %v2536, 124
      %v2828 = vpop.permute.xlu0 %2827
      %2829 = vrot.lane.b32.xlu0 %v2537, 124
      %v2830 = vpop.permute.xlu0 %2829
      %2831 = vrot.lane.b32.xlu0 %v2538, 124
      %v2832 = vpop.permute.xlu0 %2831
      %2833 = vrot.lane.b32.xlu0 %v2539, 124
      %v2834 = vpop.permute.xlu0 %2833
      %2835 = vrot.lane.b32.xlu0 %v2540, 124
      %v2836 = vpop.permute.xlu0 %2835
      %v2837 = vsel %vm1186, %v2820, %v2822
      %v2838 = vsel %vm1186, %v2822, %v2824
      %v2839 = vsel %vm1186, %v2824, %v2826
      %v2840 = vsel %vm1186, %v2826, %v2828
      %v2841 = vsel %vm1186, %v2828, %v2830
      %v2842 = vsel %vm1186, %v2830, %v2832
      %v2843 = vsel %vm1186, %v2832, %v2834
      %v2844 = vsel %vm1186, %v2834, %v2836
      %2863 = vrot.lane.b32.xlu0 %v2585, 120
      %v2864 = vpop.permute.xlu0 %2863
      %2865 = vrot.lane.b32.xlu0 %v2586, 120
      %v2866 = vpop.permute.xlu0 %2865
      %2867 = vrot.lane.b32.xlu0 %v2587, 120
      %v2868 = vpop.permute.xlu0 %2867
      %2869 = vrot.lane.b32.xlu0 %v2588, 120
      %v2870 = vpop.permute.xlu0 %2869
      %2871 = vrot.lane.b32.xlu0 %v2589, 120
      %v2872 = vpop.permute.xlu0 %2871
      %2873 = vrot.lane.b32.xlu0 %v2590, 120
      %v2874 = vpop.permute.xlu0 %2873
      %2875 = vrot.lane.b32.xlu0 %v2591, 120
      %v2876 = vpop.permute.xlu0 %2875
      %2877 = vrot.lane.b32.xlu0 %v2592, 120
      %v2878 = vpop.permute.xlu0 %2877
      %2879 = vrot.lane.b32.xlu0 %v2593, 120
      %v2880 = vpop.permute.xlu0 %2879
      %v2881 = vsel %vm1509, %v2864, %v2866
      %v2882 = vsel %vm1509, %v2866, %v2868
      %v2883 = vsel %vm1509, %v2868, %v2870
      %v2884 = vsel %vm1509, %v2870, %v2872
      %v2885 = vsel %vm1509, %v2872, %v2874
      %v2886 = vsel %vm1509, %v2874, %v2876
      %v2887 = vsel %vm1509, %v2876, %v2878
      %v2888 = vsel %vm1509, %v2878, %v2880
      %v2898 = vpack.c.bf16 %v2621, %v2205
      %v2899 = vpack.c.bf16 %v2622, %v2206
      %v2900 = vpack.c.bf16 %v2623, %v2207
      %v2901 = vpack.c.bf16 %v2624, %v2208
      %v2902 = vpack.c.bf16 %v2625, %v2209
      %v2903 = vpack.c.bf16 %v2626, %v2210
      %v2904 = vpack.c.bf16 %v2627, %v2211
      %v2905 = vpack.c.bf16 %v2628, %v2212
      %v2906 = vpack.c.bf16 %v2620, %v2213
      %v2907 = vpack.c.bf16 %v2709, %v2665
      %v2908 = vpack.c.bf16 %v2710, %v2666
      %v2909 = vpack.c.bf16 %v2711, %v2667
      %v2910 = vpack.c.bf16 %v2712, %v2668
      %v2911 = vpack.c.bf16 %v2713, %v2669
      %v2912 = vpack.c.bf16 %v2714, %v2670
      %v2913 = vpack.c.bf16 %v2715, %v2671
      %v2914 = vpack.c.bf16 %v2716, %v2672
      %v2915 = vpack.c.bf16 %v2708, %v2664
      %v2916 = vpack.c.bf16 %v2776, %v2735
      %v2917 = vpack.c.bf16 %v2793, %v2750
      %v2918 = vpack.c.bf16 %v2794, %v2751
      %v2919 = vpack.c.bf16 %v2795, %v2752
      %v2920 = vpack.c.bf16 %v2796, %v2753
      %v2921 = vpack.c.bf16 %v2797, %v2754
      %v2922 = vpack.c.bf16 %v2798, %v2755
      %v2923 = vpack.c.bf16 %v2799, %v2756
      %v2924 = vpack.c.bf16 %v2800, %v2749
      %v2925 = vpack.c.bf16 %v2837, %v2479
      %v2926 = vpack.c.bf16 %v2838, %v2480
      %v2927 = vpack.c.bf16 %v2839, %v2481
      %v2928 = vpack.c.bf16 %v2840, %v2482
      %v2929 = vpack.c.bf16 %v2841, %v2483
      %v2930 = vpack.c.bf16 %v2842, %v2484
      %v2931 = vpack.c.bf16 %v2843, %v2485
      %v2932 = vpack.c.bf16 %v2844, %v2486
      %v2933 = vpack.c.bf16 %v2836, %v2487
      %v2934 = vpack.c.bf16 %v2881, %v2881
      %v2935 = vpack.c.bf16 %v2882, %v2882
      %v2936 = vpack.c.bf16 %v2883, %v2883
      %v2937 = vpack.c.bf16 %v2884, %v2884
      %v2938 = vpack.c.bf16 %v2885, %v2885
      %v2939 = vpack.c.bf16 %v2886, %v2886
      %v2940 = vpack.c.bf16 %v2887, %v2887
      %v2941 = vpack.c.bf16 %v2888, %v2888
      %v2942 = vpack.c.bf16 %v2880, %v2880
      %v2943 = vld [vmem:[%s6] sm:$0xf]
      %v2944 = vld [vmem:[%s7] sm:$0xff]
      %2946 = vset.pattern.permute.xlu0 0
      %2947 = vperm.xlu0 %2946, %v2944
      %v2948 = vpop.permute.xlu0 %2947
      %2995 = vrot.lane.b32.xlu0 %v2898, 68
      %v2996 = vpop.permute.xlu0 %2995
      %2997 = vrot.lane.b32.xlu0 %v2899, 68
      %v2998 = vpop.permute.xlu0 %2997
      %2999 = vrot.lane.b32.xlu0 %v2900, 68
      %v3000 = vpop.permute.xlu0 %2999
      %3001 = vrot.lane.b32.xlu0 %v2901, 68
      %v3002 = vpop.permute.xlu0 %3001
      %3003 = vrot.lane.b32.xlu0 %v2902, 68
      %v3004 = vpop.permute.xlu0 %3003
      %3005 = vrot.lane.b32.xlu0 %v2903, 68
      %v3006 = vpop.permute.xlu0 %3005
      %3007 = vrot.lane.b32.xlu0 %v2904, 68
      %v3008 = vpop.permute.xlu0 %3007
      %3009 = vrot.lane.b32.xlu0 %v2905, 68
      %v3010 = vpop.permute.xlu0 %3009
      %3011 = vrot.lane.b32.xlu0 %v2906, 68
      %v3012 = vpop.permute.xlu0 %3011
      %3013 = vrot.lane.b32.xlu0 %v2907, 68
      %v3014 = vpop.permute.xlu0 %3013
      %3015 = vrot.lane.b32.xlu0 %v2908, 68
      %v3016 = vpop.permute.xlu0 %3015
      %3017 = vrot.lane.b32.xlu0 %v2909, 68
      %v3018 = vpop.permute.xlu0 %3017
      %3019 = vrot.lane.b32.xlu0 %v2910, 68
      %v3020 = vpop.permute.xlu0 %3019
      %3021 = vrot.lane.b32.xlu0 %v2911, 68
      %v3022 = vpop.permute.xlu0 %3021
      %3023 = vrot.lane.b32.xlu0 %v2912, 68
      %v3024 = vpop.permute.xlu0 %3023
      %3025 = vrot.lane.b32.xlu0 %v2913, 68
      %v3026 = vpop.permute.xlu0 %3025
      %3027 = vrot.lane.b32.xlu0 %v2914, 68
      %v3028 = vpop.permute.xlu0 %3027
      %3029 = vrot.lane.b32.xlu0 %v2915, 68
      %v3030 = vpop.permute.xlu0 %3029
      %3031 = vrot.lane.b32.xlu0 %v2916, 68
      %v3032 = vpop.permute.xlu0 %3031
      %3033 = vrot.lane.b32.xlu0 %v2917, 68
      %v3034 = vpop.permute.xlu0 %3033
      %3035 = vrot.lane.b32.xlu0 %v2918, 68
      %v3036 = vpop.permute.xlu0 %3035
      %3037 = vrot.lane.b32.xlu0 %v2919, 68
      %v3038 = vpop.permute.xlu0 %3037
      %3039 = vrot.lane.b32.xlu0 %v2920, 68
      %v3040 = vpop.permute.xlu0 %3039
      %3041 = vrot.lane.b32.xlu0 %v2921, 68
      %v3042 = vpop.permute.xlu0 %3041
      %3043 = vrot.lane.b32.xlu0 %v2922, 68
      %v3044 = vpop.permute.xlu0 %3043
      %3045 = vrot.lane.b32.xlu0 %v2923, 68
      %v3046 = vpop.permute.xlu0 %3045
      %3047 = vrot.lane.b32.xlu0 %v2924, 68
      %v3048 = vpop.permute.xlu0 %3047
      %3049 = vrot.lane.b32.xlu0 %v2925, 68
      %v3050 = vpop.permute.xlu0 %3049
      %3051 = vrot.lane.b32.xlu0 %v2926, 68
      %v3052 = vpop.permute.xlu0 %3051
      %3053 = vrot.lane.b32.xlu0 %v2927, 68
      %v3054 = vpop.permute.xlu0 %3053
      %3055 = vrot.lane.b32.xlu0 %v2928, 68
      %v3056 = vpop.permute.xlu0 %3055
      %3057 = vrot.lane.b32.xlu0 %v2929, 68
      %v3058 = vpop.permute.xlu0 %3057
      %3059 = vrot.lane.b32.xlu0 %v2930, 68
      %v3060 = vpop.permute.xlu0 %3059
      %3061 = vrot.lane.b32.xlu0 %v2931, 68
      %v3062 = vpop.permute.xlu0 %3061
      %3063 = vrot.lane.b32.xlu0 %v2932, 68
      %v3064 = vpop.permute.xlu0 %3063
      %3065 = vrot.lane.b32.xlu0 %v2933, 68
      %v3066 = vpop.permute.xlu0 %3065
      %3067 = vrot.lane.b32.xlu0 %v2934, 68
      %v3068 = vpop.permute.xlu0 %3067
      %3069 = vrot.lane.b32.xlu0 %v2935, 68
      %v3070 = vpop.permute.xlu0 %3069
      %3071 = vrot.lane.b32.xlu0 %v2936, 68
      %v3072 = vpop.permute.xlu0 %3071
      %3073 = vrot.lane.b32.xlu0 %v2937, 68
      %v3074 = vpop.permute.xlu0 %3073
      %3075 = vrot.lane.b32.xlu0 %v2938, 68
      %v3076 = vpop.permute.xlu0 %3075
      %3077 = vrot.lane.b32.xlu0 %v2939, 68
      %v3078 = vpop.permute.xlu0 %3077
      %3079 = vrot.lane.b32.xlu0 %v2940, 68
      %v3080 = vpop.permute.xlu0 %3079
      %3081 = vrot.lane.b32.xlu0 %v2941, 68
      %v3082 = vpop.permute.xlu0 %3081
      %3083 = vrot.lane.b32.xlu0 %v2942, 68
      %v3084 = vpop.permute.xlu0 %3083
      %v3085 = vsel %vm1931, %v2996, %v2998
      %v3086 = vsel %vm1931, %v2998, %v3000
      %v3087 = vsel %vm1931, %v3000, %v3002
      %v3088 = vsel %vm1931, %v3002, %v3004
      %v3089 = vsel %vm1931, %v3004, %v3006
      %v3090 = vsel %vm1931, %v3006, %v3008
      %v3091 = vsel %vm1931, %v3008, %v3010
      %v3092 = vsel %vm1931, %v3010, %v3012
      %v3093 = vsel %vm1931, %v3014, %v3016
      %v3094 = vsel %vm1931, %v3016, %v3018
      %v3095 = vsel %vm1931, %v3018, %v3020
      %v3096 = vsel %vm1931, %v3020, %v3022
      %v3097 = vsel %vm1931, %v3022, %v3024
      %v3098 = vsel %vm1931, %v3024, %v3026
      %v3099 = vsel %vm1931, %v3026, %v3028
      %v3100 = vsel %vm1931, %v3028, %v3030
      %v3101 = vsel %vm1931, %v3032, %v3034
      %v3102 = vsel %vm1931, %v3034, %v3036
      %v3103 = vsel %vm1931, %v3036, %v3038
      %v3104 = vsel %vm1931, %v3038, %v3040
      %v3105 = vsel %vm1931, %v3040, %v3042
      %v3106 = vsel %vm1931, %v3042, %v3044
      %v3107 = vsel %vm1931, %v3044, %v3046
      %v3108 = vsel %vm1931, %v3046, %v3048
      %v3109 = vsel %vm1931, %v3050, %v3052
      %v3110 = vsel %vm1931, %v3052, %v3054
      %v3111 = vsel %vm1931, %v3054, %v3056
      %v3112 = vsel %vm1931, %v3056, %v3058
      %v3113 = vsel %vm1931, %v3058, %v3060
      %v3114 = vsel %vm1931, %v3060, %v3062
      %v3115 = vsel %vm1931, %v3062, %v3064
      %v3116 = vsel %vm1931, %v3064, %v3066
      %v3117 = vsel %vm1931, %v3068, %v3070
      %v3118 = vsel %vm1931, %v3070, %v3072
      %v3119 = vsel %vm1931, %v3072, %v3074
      %v3120 = vsel %vm1931, %v3074, %v3076
      %v3121 = vsel %vm1931, %v3076, %v3078
      %v3122 = vsel %vm1931, %v3078, %v3080
      %v3123 = vsel %vm1931, %v3080, %v3082
      %v3124 = vsel %vm1931, %v3082, %v3084
      %v3158 = vsel %vm2004, %v2943, 0
      %v3161 = vsel %vm967, %v3117, 0
      %v3164 = vsel %vm967, %v3118, 0
      %v3167 = vsel %vm967, %v3119, 0
      %v3170 = vsel %vm967, %v3120, 0
      %v3173 = vsel %vm967, %v3121, 0
      %v3176 = vsel %vm967, %v3122, 0
      %v3179 = vsel %vm967, %v3123, 0
      %v3182 = vsel %vm967, %v3124, 0
      %3184 = vmatpush.bf16.msra.mxu0 0
      %3185 = vmatpush.bf16.msra.mxu0 0
      %3186 = vmatpush.bf16.msra.mxu0 0
      %3187 = vmatpush.bf16.msra.mxu0 %v3161
      %3188 = vmatpush.bf16.msra.mxu0 %v3109
      %3189 = vmatpush.bf16.msra.mxu0 %v3101
      %3190 = vmatpush.bf16.msra.mxu0 %v3093
      %3191 = vmatpush.bf16.msra.mxu0 %v3085
      %3192 = vmatmul.bf16.gmra.mxu0 %v3158
      %v3193 = vpop.f32.mrf.mxu0
      %v3194 = vadd.f32 %v2948, %v3193
      %v3195 = vpop.f32.mrf.mxu0
      %3196 = vdwg.mxu0
      %3197 = vmatpush.bf16.msra.mxu0 0
      %3198 = vmatpush.bf16.msra.mxu0 0
      %3199 = vmatpush.bf16.msra.mxu0 0
      %3200 = vmatpush.bf16.msra.mxu0 %v3164
      %3201 = vmatpush.bf16.msra.mxu0 %v3110
      %3202 = vmatpush.bf16.msra.mxu0 %v3102
      %3203 = vmatpush.bf16.msra.mxu0 %v3094
      %3204 = vmatpush.bf16.msra.mxu0 %v3086
      %3205 = vmatmul.bf16.gmra.mxu0 %v3158
      %v3206 = vpop.f32.mrf.mxu0
      %v3207 = vadd.f32 %v2948, %v3206
      %v3208 = vpop.f32.mrf.mxu0
      %3209 = vdwg.mxu0
      %3210 = vmatpush.bf16.msra.mxu0 0
      %3211 = vmatpush.bf16.msra.mxu0 0
      %3212 = vmatpush.bf16.msra.mxu0 0
      %3213 = vmatpush.bf16.msra.mxu0 %v3167
      %3214 = vmatpush.bf16.msra.mxu0 %v3111
      %3215 = vmatpush.bf16.msra.mxu0 %v3103
      %3216 = vmatpush.bf16.msra.mxu0 %v3095
      %3217 = vmatpush.bf16.msra.mxu0 %v3087
      %3218 = vmatmul.bf16.gmra.mxu0 %v3158
      %v3219 = vpop.f32.mrf.mxu0
      %v3220 = vadd.f32 %v2948, %v3219
      %v3221 = vpop.f32.mrf.mxu0
      %3222 = vdwg.mxu0
      %3223 = vmatpush.bf16.msra.mxu0 0
      %3224 = vmatpush.bf16.msra.mxu0 0
      %3225 = vmatpush.bf16.msra.mxu0 0
      %3226 = vmatpush.bf16.msra.mxu0 %v3170
      %3227 = vmatpush.bf16.msra.mxu0 %v3112
      %3228 = vmatpush.bf16.msra.mxu0 %v3104
      %3229 = vmatpush.bf16.msra.mxu0 %v3096
      %3230 = vmatpush.bf16.msra.mxu0 %v3088
      %3231 = vmatmul.bf16.gmra.mxu0 %v3158
      %v3232 = vpop.f32.mrf.mxu0
      %v3233 = vadd.f32 %v2948, %v3232
      %v3234 = vpop.f32.mrf.mxu0
      %3235 = vdwg.mxu0
      %3236 = vmatpush.bf16.msra.mxu0 0
      %3237 = vmatpush.bf16.msra.mxu0 0
      %3238 = vmatpush.bf16.msra.mxu0 0
      %3239 = vmatpush.bf16.msra.mxu0 %v3173
      %3240 = vmatpush.bf16.msra.mxu0 %v3113
      %3241 = vmatpush.bf16.msra.mxu0 %v3105
      %3242 = vmatpush.bf16.msra.mxu0 %v3097
      %3243 = vmatpush.bf16.msra.mxu0 %v3089
      %3244 = vmatmul.bf16.gmra.mxu0 %v3158
      %v3245 = vpop.f32.mrf.mxu0
      %v3246 = vadd.f32 %v2948, %v3245
      %v3247 = vpop.f32.mrf.mxu0
      %3248 = vdwg.mxu0
      %3249 = vmatpush.bf16.msra.mxu0 0
      %3250 = vmatpush.bf16.msra.mxu0 0
      %3251 = vmatpush.bf16.msra.mxu0 0
      %3252 = vmatpush.bf16.msra.mxu0 %v3176
      %3253 = vmatpush.bf16.msra.mxu0 %v3114
      %3254 = vmatpush.bf16.msra.mxu0 %v3106
      %3255 = vmatpush.bf16.msra.mxu0 %v3098
      %3256 = vmatpush.bf16.msra.mxu0 %v3090
      %3257 = vmatmul.bf16.gmra.mxu0 %v3158
      %v3258 = vpop.f32.mrf.mxu0
      %v3259 = vadd.f32 %v2948, %v3258
      %v3260 = vpop.f32.mrf.mxu0
      %3261 = vdwg.mxu0
      %3262 = vmatpush.bf16.msra.mxu0 0
      %3263 = vmatpush.bf16.msra.mxu0 0
      %3264 = vmatpush.bf16.msra.mxu0 0
      %3265 = vmatpush.bf16.msra.mxu0 %v3179
      %3266 = vmatpush.bf16.msra.mxu0 %v3115
      %3267 = vmatpush.bf16.msra.mxu0 %v3107
      %3268 = vmatpush.bf16.msra.mxu0 %v3099
      %3269 = vmatpush.bf16.msra.mxu0 %v3091
      %3270 = vmatmul.bf16.gmra.mxu0 %v3158
      %v3271 = vpop.f32.mrf.mxu0
      %v3272 = vadd.f32 %v2948, %v3271
      %v3273 = vpop.f32.mrf.mxu0
      %3274 = vdwg.mxu0
      %3275 = vmatpush.bf16.msra.mxu0 0
      %3276 = vmatpush.bf16.msra.mxu0 0
      %3277 = vmatpush.bf16.msra.mxu0 0
      %3278 = vmatpush.bf16.msra.mxu0 %v3182
      %3279 = vmatpush.bf16.msra.mxu0 %v3116
      %3280 = vmatpush.bf16.msra.mxu0 %v3108
      %3281 = vmatpush.bf16.msra.mxu0 %v3100
      %3282 = vmatpush.bf16.msra.mxu0 %v3092
      %3283 = vmatmul.bf16.gmra.mxu0 %v3158
      %v3284 = vpop.f32.mrf.mxu0
      %v3285 = vadd.f32 %v2948, %v3284
      %v3286 = vpop.f32.mrf.mxu0
      %3287 = vdwg.mxu0
      %v3288 = vmax.f32 %v3194, 0.0
      %v3289 = vmax.f32 %v3207, 0.0
      %v3290 = vmax.f32 %v3220, 0.0
      %v3291 = vmax.f32 %v3233, 0.0
      %v3292 = vmax.f32 %v3246, 0.0
      %v3293 = vmax.f32 %v3259, 0.0
      %v3294 = vmax.f32 %v3272, 0.0
      %v3295 = vmax.f32 %v3285, 0.0
      %3296 = vst [vmem:[%s325] sm:$0xff] %v3288
      %3297 = vst [vmem:[%s325 + $0x8] sm:$0xff] %v3289
      %3298 = vst [vmem:[%s325 + $0x10] sm:$0xff] %v3290
      %3299 = vst [vmem:[%s325 + $0x18] sm:$0xff] %v3291
      %3300 = vst [vmem:[%s325 + $0x20] sm:$0xff] %v3292
      %3301 = vst [vmem:[%s325 + $0x28] sm:$0xff] %v3293
      %3302 = vst [vmem:[%s325 + $0x30] sm:$0xff] %v3294
      %3303 = vst [vmem:[%s325 + $0x38] sm:$0xff] %v3295
      %p3304 = scmp.lt.s32.totalorder %s19, 1
      %s3305 = scalar_select %p3304, %s19, 1
      %s3306 = smul.addr %s3305, 8
      %s3307 = smul.addr %s3306, 8
      %s3308 = scalar_lea.vmem %s8, %s3307
      // Predicated region
      $region53: #{up_forward.1} parent=51 // pred_check
        %p3309 = pneg %p215
      $region54: #{up_forward.1} parent=51 // pred_check_branch
        %3311 = sbr.rel (%p3309) target = $region56
      $region55: #{up_forward.1} parent=51 // pred_region
        _
      $region56: #{up_forward.1} parent=51 // pred_fallthru
        _
    $region52: #{up_forward.1} parent=5 // pred_fallthru
      _
    %p3312 = scmp.le.s32.totalorder 2, %s14
    // Predicated region
    $region57: #{up_forward.1} parent=5 // pred_check
      %p3313 = pneg %p3312
    $region58: #{up_forward.1} parent=5 // pred_check_branch
      %3315 = sbr.rel (%p3313) target = $region60
    $region59: #{up_forward.1} parent=5 // pred_region
      %s3316 = ssub.s32 %s14, 2
      // Predicated region
      $region61: #{up_forward.1} parent=59 // pred_check
        %p3317 = pneg %p221
      $region62: #{up_forward.1} parent=59 // pred_check_branch
        %3319 = sbr.rel (%p3317) target = $region64
      $region63: #{up_forward.1} parent=59 // pred_region
        %p3320 = scmp.lt.s32.totalorder %s20, 1
        %s3321 = scalar_select %p3320, %s20, 1
        %s3322 = smul.addr %s3321, 8
        %s3323 = smul.addr %s3322, 8
        %s3324 = scalar_lea.vmem %s8, %s3323
      $region64: #{up_forward.1} parent=59 // pred_fallthru
        _
    $region60: #{up_forward.1} parent=5 // pred_fallthru
      _
  $region6: #{up_forward.1} parent=0 // loop_footer
    %s18 = sadd.s32 1, %s14
  $region7: #{up_forward.1} parent=0 // loop_footer_branch
    %13 = sbr.rel target = $region3
  $region8: #{up_forward.1} parent=0 // loop_exit
    _

</llo_original>
